<compile_context>
chip_gen: v7x
topology: tpu7x:2x2x1
jax: 0.10.0
libtpu: 0.0.40
codegen_flags: <defaults>
</compile_context>

<pallas_src>
import functools
import math

import jax
import jax.numpy as jnp
from jax import lax
from jax.experimental import pallas as pl
from jax.experimental.pallas import tpu as pltpu

# ---------------- small synthetic Llama config ----------------
VOCAB = 256
HIDDEN = 128
N_LAYERS = 2
N_HEADS = 4
HEAD_DIM = HIDDEN // N_HEADS          # 32
INTERMEDIATE = 256
RMS_EPS = 1e-6
ROPE_THETA = 10000.0
DTYPE = jnp.bfloat16                  # storage dtype; accumulation/norm/softmax math in f32


# =====================================================================================
# Kernel 1: fully fused decoder layer, one batch element per grid step
# =====================================================================================
def _llama_layer_kernel(x_ref, cos_ref, sin_ref, rot_ref,
                        in_norm_ref, post_norm_ref,
                        wqkv_ref, wo_ref, wgu_ref, wd_ref,
                        o_ref, attn_scratch,
                        *, nh, hd, inter, eps, scale):
    S = x_ref.shape[1]
    H = x_ref.shape[2]

    x = x_ref[0].astype(jnp.float32)                                   # (S, H) residual stream

    # ---- input RMSNorm (computed once per row block) ----
    var = jnp.mean(x * x, axis=-1, keepdims=True)
    h = ((x * lax.rsqrt(var + eps)) * in_norm_ref[...].astype(jnp.float32)).astype(wqkv_ref.dtype)

    # ---- QKV projection: bf16 operands into the MXU, f32 accumulation ----
    qkv = jnp.dot(h, wqkv_ref[...], preferred_element_type=jnp.float32)  # (S, 3H) f32
    q = qkv[:, :H]
    k = qkv[:, H:2 * H]
    v = qkv[:, 2 * H:].astype(wqkv_ref.dtype)                          # bf16 for the PV matmul

    # ---- RoPE (rotate-half) as a block-diagonal matmul: no lane concat, one tiny MXU op ----
    cos = cos_ref[0]                                                   # (S, H) f32, per-head tiled
    sin = sin_ref[0]
    q_rot = jnp.dot(q.astype(rot_ref.dtype), rot_ref[...], preferred_element_type=jnp.float32)
    k_rot = jnp.dot(k.astype(rot_ref.dtype), rot_ref[...], preferred_element_type=jnp.float32)
    q = (q * cos + q_rot * sin).astype(wqkv_ref.dtype)                 # bf16 MXU operands
    k = (k * cos + k_rot * sin).astype(wqkv_ref.dtype)

    # ---- causal self-attention per head; scores stay f32 so -1e30 mask is safe ----
    row = lax.broadcasted_iota(jnp.int32, (S, S), 0)
    col = lax.broadcasted_iota(jnp.int32, (S, S), 1)
    causal = col <= row
    # TODO(synk): at real HEAD_DIM=128 the contraction is full MXU width; for small head dims
    #             heads should be merged into one block-diagonal dot to raise MXU utilization.
    for hh in range(nh):                                               # static unroll, nh small
        sl = slice(hh * hd, (hh + 1) * hd)
        s = lax.dot_general(q[:, sl], k[:, sl], (((1,), (1,)), ((), ())),
                            preferred_element_type=jnp.float32) * scale        # (S, S) f32
        s = jnp.where(causal, s, -1e30)
        m = jnp.max(s, axis=-1, keepdims=True)
        p = jnp.exp(s - m)
        l = jnp.sum(p, axis=-1, keepdims=True)
        p = (p * pl.reciprocal(l, approx=True)).astype(wqkv_ref.dtype)  # EUP recip, bf16 into PV dot
        attn_scratch[:, sl] = jnp.dot(p, v[:, sl], preferred_element_type=jnp.float32)

    attn = attn_scratch[...].astype(wo_ref.dtype)                       # (S, H) bf16, no concat

    # ---- O projection + residual ----
    x1 = x + jnp.dot(attn, wo_ref[...], preferred_element_type=jnp.float32)

    # ---- post-attention RMSNorm + gate_up + SwiGLU + down + residual ----
    var2 = jnp.mean(x1 * x1, axis=-1, keepdims=True)
    h2 = ((x1 * lax.rsqrt(var2 + eps)) * post_norm_ref[...].astype(jnp.float32)).astype(wgu_ref.dtype)
    gu = jnp.dot(h2, wgu_ref[...], preferred_element_type=jnp.float32)   # (S, 2I) f32
    g = gu[:, :inter]
    u = gu[:, inter:]
    act = (g * jax.nn.sigmoid(g) * u).astype(wd_ref.dtype)               # SwiGLU, bf16 into down proj
    y = jnp.dot(act, wd_ref[...], preferred_element_type=jnp.float32)
    o_ref[0] = (x1 + y).astype(o_ref.dtype)


def llama_layer(x, cos_b, sin_b, rot_mat, in_norm, post_norm, wqkv, wo, wgu, wd, *, scale):
    """One fused decoder layer.  x:[B,S,H] bf16; cos/sin:[B,S,H] f32; rot:[H,H] bf16."""
    B, S, H = x.shape
    I2 = wgu.shape[1]
    kernel = functools.partial(_llama_layer_kernel, nh=N_HEADS, hd=HEAD_DIM,
                               inter=I2 // 2, eps=RMS_EPS, scale=scale)
    bsh = pl.BlockSpec((1, S, H), lambda b: (b, 0, 0))
    return pl.pallas_call(
        kernel,
        out_shape=jax.ShapeDtypeStruct((B, S, H), x.dtype),
        grid=(B,),
        in_specs=[bsh,                                              # x (residual stream)
                  bsh,                                              # cos
                  bsh,                                              # sin
                  pl.BlockSpec((H, H), lambda b: (0, 0)),           # rotate-half matrix
                  pl.BlockSpec((1, H), lambda b: (0, 0)),           # input_layernorm weight
                  pl.BlockSpec((1, H), lambda b: (0, 0)),           # post_attention_layernorm weight
                  pl.BlockSpec((H, 3 * H), lambda b: (0, 0)),       # Wqkv
                  pl.BlockSpec((H, H), lambda b: (0, 0)),           # Wo
                  pl.BlockSpec((H, I2), lambda b: (0, 0)),          # W gate_up
                  pl.BlockSpec((I2 // 2, H), lambda b: (0, 0))],    # W down
        out_specs=bsh,
        scratch_shapes=[pltpu.VMEM((S, H), jnp.float32)],           # per-head attention assembly
        compiler_params=pltpu.CompilerParams(
            dimension_semantics=("parallel",),                      # both TCs on v7x (B>=2)
            vmem_limit_bytes=32 * 1024 * 1024),
    )(x, cos_b, sin_b, rot_mat, in_norm.reshape(1, H), post_norm.reshape(1, H),
      wqkv, wo, wgu, wd)


# =====================================================================================
# Kernel 2: final model RMSNorm fused with pooler L2 normalize (pooled rows only)
# =====================================================================================
def _final_norm_l2_kernel(x_ref, nw_ref, o_ref, *, eps):
    x = x_ref[...].astype(jnp.float32)
    var = jnp.mean(x * x, axis=-1, keepdims=True)
    h = (x * lax.rsqrt(var + eps)) * nw_ref[...].astype(jnp.float32)
    sq = jnp.sum(h * h, axis=-1, keepdims=True)
    o_ref[...] = (h * lax.rsqrt(jnp.maximum(sq, 1e-24))).astype(o_ref.dtype)  # F.normalize eps guard


def final_norm_l2(x, norm_w):
    B, H = x.shape
    return pl.pallas_call(
        functools.partial(_final_norm_l2_kernel, eps=RMS_EPS),
        out_shape=jax.ShapeDtypeStruct((B, H), jnp.float32),
        grid=(1,),
        in_specs=[pl.BlockSpec((B, H), lambda i: (0, 0)),
                  pl.BlockSpec((1, H), lambda i: (0, 0))],
        out_specs=pl.BlockSpec((B, H), lambda i: (0, 0)),
    )(x, norm_w.reshape(1, H))


# ---------------- JAX glue: RoPE tables, rotate-half matrix, params, forward ----------------
def rope_cos_sin_full(positions, dim, theta, nh):
    inv_freq = 1.0 / (theta ** (jnp.arange(0, dim, 2, dtype=jnp.float32) / dim))
    freqs = positions.astype(jnp.float32)[:, None] * inv_freq[None, :]      # [T, dim/2]
    emb = jnp.concatenate([freqs, freqs], axis=-1)                          # [T, dim]
    cos = jnp.tile(jnp.cos(emb), (1, nh))                                   # [T, nh*dim] per-head tiled
    sin = jnp.tile(jnp.sin(emb), (1, nh))
    return cos, sin


def build_rotate_half_matrix(nh, hd, dtype):
    """Block-diagonal R with x @ R == rotate_half(x) per head (rotate_half([x1,x2]) = [-x2, x1])."""
    half = hd // 2
    idx = jnp.arange(half)
    r = jnp.zeros((hd, hd), jnp.float32)
    r = r.at[idx + half, idx].set(-1.0)   # out[:, j<half]  = -x[:, j+half]
    r = r.at[idx, idx + half].set(1.0)    # out[:, j>=half] =  x[:, j-half]
    return jnp.kron(jnp.eye(nh, dtype=jnp.float32), r).astype(dtype)


def init_params(key):
    # TODO(synk): real model loads checkpoint weights (load_weights); synthetic randoms, same shapes.
    keys = jax.random.split(key, 1 + N_LAYERS)
    scale = 0.02
    params = {
        "embed": (jax.random.normal(keys[0], (VOCAB, HIDDEN), jnp.float32) * scale).astype(DTYPE),
        "final_norm": jnp.ones((HIDDEN,), DTYPE),
        "rot_half": build_rotate_half_matrix(N_HEADS, HEAD_DIM, DTYPE),
        "layers": [],
    }
    for l in range(N_LAYERS):
        ks = jax.random.split(keys[1 + l], 4)
        params["layers"].append({
            "input_norm": jnp.ones((HIDDEN,), DTYPE),
            "post_norm": jnp.ones((HIDDEN,), DTYPE),
            "wqkv": (jax.random.normal(ks[0], (HIDDEN, 3 * HIDDEN), jnp.float32) * scale).astype(DTYPE),
            "wo": (jax.random.normal(ks[1], (HIDDEN, HIDDEN), jnp.float32) * scale).astype(DTYPE),
            "w_gate_up": (jax.random.normal(ks[2], (HIDDEN, 2 * INTERMEDIATE), jnp.float32) * scale).astype(DTYPE),
            "w_down": (jax.random.normal(ks[3], (INTERMEDIATE, HIDDEN), jnp.float32) * scale).astype(DTYPE),
        })
    return params


def llama_embedding_forward(params, input_ids, positions, seq_lens, B, S):
    # TODO(synk): attention assumes all packed sequences share length S (no ragged length mask).
    T = input_ids.shape[0]
    x = jnp.take(params["embed"], input_ids, axis=0)                        # [T, H] embedding gather
    cos, sin = rope_cos_sin_full(positions, HEAD_DIM, ROPE_THETA, N_HEADS)  # [T, H] f32
    cos_b = cos.reshape(B, S, HIDDEN)
    sin_b = sin.reshape(B, S, HIDDEN)
    attn_scale = 1.0 / math.sqrt(HEAD_DIM)

    x = x.reshape(B, S, HIDDEN)
    for lp in params["layers"]:
        x = llama_layer(x, cos_b, sin_b, params["rot_half"],
                        lp["input_norm"], lp["post_norm"],
                        lp["wqkv"], lp["wo"], lp["w_gate_up"], lp["w_down"],
                        scale=attn_scale)
    x = x.reshape(T, HIDDEN)

    # Pooler(LAST, normalize=True): final RMSNorm is row-wise, so apply it only to pooled rows.
    last_idx = jnp.cumsum(seq_lens) - 1                                     # [B]
    pooled = x[last_idx]                                                    # [B, H] row gather (glue)
    return final_norm_l2(pooled, params["final_norm"])                      # [B, H] f32, unit-norm rows


if __name__ == "__main__":
    B, S = 2, 8
    T = B * S
    key = jax.random.PRNGKey(0)
    k_param, k_ids = jax.random.split(key)
    params = init_params(k_param)

    input_ids = jax.random.randint(k_ids, (T,), 0, VOCAB, dtype=jnp.int32)
    positions = jnp.tile(jnp.arange(S, dtype=jnp.int32), B)                 # per-sequence positions
    seq_lens = jnp.full((B,), S, dtype=jnp.int32)

    fwd = jax.jit(functools.partial(llama_embedding_forward, B=B, S=S))
    out = fwd(params, input_ids, positions, seq_lens)
    out = jax.block_until_ready(out)

    assert out.shape == (B, HIDDEN)
    norms = jnp.linalg.norm(out.astype(jnp.float32), axis=-1)
    assert bool(jnp.all(jnp.isfinite(out)))
    assert bool(jnp.all(jnp.abs(norms - 1.0) < 1e-3))
    print("KERNEL_OK")
</pallas_src>

<mosaic_0001>
module attributes {stable_mosaic.version = 11 : i64} {
  func.func @_final_norm_l2_kernel(%arg0: i32, %arg1: memref<2x128xbf16, #tpu.memory_space<vmem>>, %arg2: memref<1x128xbf16, #tpu.memory_space<vmem>>, %arg3: memref<2x128xf32, #tpu.memory_space<vmem>>) attributes {dimension_semantics = [#tpu.dimension_semantics<arbitrary>], iteration_bounds = array<i64: 1>, scalar_prefetch = 0 : i64, scratch_operands = 0 : i64, tpu.core_type = #tpu.core_type<tc>, window_params = [{pipeline_mode = #tpu.pipeline_mode<synchronous>, transform_indices = @transform_0, window_bounds = array<i64: 2, 128>}, {pipeline_mode = #tpu.pipeline_mode<synchronous>, transform_indices = @transform_1, window_bounds = array<i64: 1, 128>}, {pipeline_mode = #tpu.pipeline_mode<synchronous>, transform_indices = @transform_2, window_bounds = array<i64: 2, 128>}]} {
    %c0 = arith.constant 0 : index
    %c0_0 = arith.constant 0 : index
    %0 = vector.load %arg1[%c0, %c0_0] : memref<2x128xbf16, #tpu.memory_space<vmem>>, vector<2x128xbf16>
    %1 = arith.extf %0 : vector<2x128xbf16> to vector<2x128xf32>
    %2 = arith.mulf %1, %1 : vector<2x128xf32>
    %cst = arith.constant dense<0.000000e+00> : vector<2xf32>
    %3 = vector.multi_reduction <add>, %2, %cst [1] : vector<2x128xf32> to vector<2xf32>
    %4 = vector.shape_cast %3 : vector<2xf32> to vector<2x1xf32>
    %cst_1 = arith.constant 1.280000e+02 : f32
    %5 = vector.broadcast %cst_1 : f32 to vector<2x1xf32>
    %6 = arith.divf %4, %5 : vector<2x1xf32>
    %cst_2 = arith.constant 9.99999997E-7 : f32
    %7 = vector.broadcast %cst_2 : f32 to vector<2x1xf32>
    %8 = arith.addf %6, %7 : vector<2x1xf32>
    %9 = math.rsqrt %8 : vector<2x1xf32>
    %10 = vector.broadcast %9 : vector<2x1xf32> to vector<2x128xf32>
    %11 = arith.mulf %1, %10 : vector<2x128xf32>
    %c0_3 = arith.constant 0 : index
    %c0_4 = arith.constant 0 : index
    %12 = vector.load %arg2[%c0_3, %c0_4] : memref<1x128xbf16, #tpu.memory_space<vmem>>, vector<1x128xbf16>
    %13 = arith.extf %12 : vector<1x128xbf16> to vector<1x128xf32>
    %14 = vector.broadcast %13 : vector<1x128xf32> to vector<2x128xf32>
    %15 = arith.mulf %11, %14 : vector<2x128xf32>
    %16 = arith.mulf %15, %15 : vector<2x128xf32>
    %cst_5 = arith.constant dense<0.000000e+00> : vector<2xf32>
    %17 = vector.multi_reduction <add>, %16, %cst_5 [1] : vector<2x128xf32> to vector<2xf32>
    %18 = vector.shape_cast %17 : vector<2xf32> to vector<2x1xf32>
    %cst_6 = arith.constant 1.000000e-24 : f32
    %19 = vector.broadcast %cst_6 : f32 to vector<2x1xf32>
    %20 = arith.maximumf %18, %19 : vector<2x1xf32>
    %21 = math.rsqrt %20 : vector<2x1xf32>
    %22 = vector.broadcast %21 : vector<2x1xf32> to vector<2x128xf32>
    %23 = arith.mulf %15, %22 : vector<2x128xf32>
    %c0_7 = arith.constant 0 : index
    %c0_8 = arith.constant 0 : index
    %24 = vector.load %arg3[%c0_7, %c0_8] : memref<2x128xf32, #tpu.memory_space<vmem>>, vector<2x128xf32>
    tpu.vector_store %arg3[%c0_7, %c0_8], %23 {strides = array<i32>} : memref<2x128xf32, #tpu.memory_space<vmem>>, vector<2x128xf32>,
    return
  }
  func.func @transform_0(%arg0: i32) -> (i32, i32) {
    %c0_i32 = arith.constant 0 : i32
    %c0_i32_0 = arith.constant 0 : i32
    %c0_i32_1 = arith.constant 0 : i32
    return %c0_i32, %c0_i32_0 : i32, i32
  }
  func.func @transform_1(%arg0: i32) -> (i32, i32) {
    %c0_i32 = arith.constant 0 : i32
    %c0_i32_0 = arith.constant 0 : i32
    %c0_i32_1 = arith.constant 0 : i32
    return %c0_i32, %c0_i32_0 : i32, i32
  }
  func.func @transform_2(%arg0: i32) -> (i32, i32) {
    %c0_i32 = arith.constant 0 : i32
    %c0_i32_0 = arith.constant 0 : i32
    %c0_i32_1 = arith.constant 0 : i32
    return %c0_i32, %c0_i32_0 : i32, i32
  }
}

module attributes {stable_mosaic.version = 11 : i64} {
  func.func @_llama_layer_kernel(%arg0: i32, %arg1: memref<1x8x128xbf16, #tpu.memory_space<vmem>>, %arg2: memref<1x8x128xf32, #tpu.memory_space<vmem>>, %arg3: memref<1x8x128xf32, #tpu.memory_space<vmem>>, %arg4: memref<128x128xbf16, #tpu.memory_space<vmem>>, %arg5: memref<1x128xbf16, #tpu.memory_space<vmem>>, %arg6: memref<1x128xbf16, #tpu.memory_space<vmem>>, %arg7: memref<128x384xbf16, #tpu.memory_space<vmem>>, %arg8: memref<128x128xbf16, #tpu.memory_space<vmem>>, %arg9: memref<128x512xbf16, #tpu.memory_space<vmem>>, %arg10: memref<256x128xbf16, #tpu.memory_space<vmem>>, %arg11: memref<1x8x128xbf16, #tpu.memory_space<vmem>>, %arg12: memref<8x128xf32, #tpu.memory_space<vmem>>) attributes {dimension_semantics = [#tpu.dimension_semantics<parallel>], iteration_bounds = array<i64: 2>, scalar_prefetch = 0 : i64, scratch_operands = 1 : i64, tpu.core_type = #tpu.core_type<tc>, window_params = [{transform_indices = @transform_0, window_bounds = array<i64: 1, 8, 128>}, {transform_indices = @transform_1, window_bounds = array<i64: 1, 8, 128>}, {transform_indices = @transform_2, window_bounds = array<i64: 1, 8, 128>}, {pipeline_mode = #tpu.pipeline_mode<synchronous>, transform_indices = @transform_3, window_bounds = array<i64: 128, 128>}, {pipeline_mode = #tpu.pipeline_mode<synchronous>, transform_indices = @transform_4, window_bounds = array<i64: 1, 128>}, {pipeline_mode = #tpu.pipeline_mode<synchronous>, transform_indices = @transform_5, window_bounds = array<i64: 1, 128>}, {pipeline_mode = #tpu.pipeline_mode<synchronous>, transform_indices = @transform_6, window_bounds = array<i64: 128, 384>}, {pipeline_mode = #tpu.pipeline_mode<synchronous>, transform_indices = @transform_7, window_bounds = array<i64: 128, 128>}, {pipeline_mode = #tpu.pipeline_mode<synchronous>, transform_indices = @transform_8, window_bounds = array<i64: 128, 512>}, {pipeline_mode = #tpu.pipeline_mode<synchronous>, transform_indices = @transform_9, window_bounds = array<i64: 256, 128>}, {transform_indices = @transform_10, window_bounds = array<i64: 1, 8, 128>}]} {
    %c0 = arith.constant 0 : index
    %c0_0 = arith.constant 0 : index
    %c0_1 = arith.constant 0 : index
    %0 = vector.load %arg1[%c0, %c0_0, %c0_1] : memref<1x8x128xbf16, #tpu.memory_space<vmem>>, vector<1x8x128xbf16>
    %1 = vector.shape_cast %0 : vector<1x8x128xbf16> to vector<8x128xbf16>
    %2 = arith.extf %1 : vector<8x128xbf16> to vector<8x128xf32>
    %3 = arith.mulf %2, %2 : vector<8x128xf32>
    %cst = arith.constant dense<0.000000e+00> : vector<8xf32>
    %4 = vector.multi_reduction <add>, %3, %cst [1] : vector<8x128xf32> to vector<8xf32>
    %5 = vector.shape_cast %4 : vector<8xf32> to vector<8x1xf32>
    %cst_2 = arith.constant 1.280000e+02 : f32
    %6 = vector.broadcast %cst_2 : f32 to vector<8x1xf32>
    %7 = arith.divf %5, %6 : vector<8x1xf32>
    %cst_3 = arith.constant 9.99999997E-7 : f32
    %8 = vector.broadcast %cst_3 : f32 to vector<8x1xf32>
    %9 = arith.addf %7, %8 : vector<8x1xf32>
    %10 = math.rsqrt %9 : vector<8x1xf32>
    %11 = vector.broadcast %10 : vector<8x1xf32> to vector<8x128xf32>
    %12 = arith.mulf %2, %11 : vector<8x128xf32>
    %c0_4 = arith.constant 0 : index
    %c0_5 = arith.constant 0 : index
    %13 = vector.load %arg5[%c0_4, %c0_5] : memref<1x128xbf16, #tpu.memory_space<vmem>>, vector<1x128xbf16>
    %14 = arith.extf %13 : vector<1x128xbf16> to vector<1x128xf32>
    %15 = vector.broadcast %14 : vector<1x128xf32> to vector<8x128xf32>
    %16 = arith.mulf %12, %15 : vector<8x128xf32>
    %17 = arith.truncf %16 : vector<8x128xf32> to vector<8x128xbf16>
    %c0_6 = arith.constant 0 : index
    %c0_7 = arith.constant 0 : index
    %18 = vector.load %arg7[%c0_6, %c0_7] : memref<128x384xbf16, #tpu.memory_space<vmem>>, vector<128x384xbf16>
    %cst_8 = arith.constant dense<0.000000e+00> : vector<8x384xf32>
    %19 = tpu.matmul %17, %18, %cst_8 {dimension_numbers = #tpu.dot_dimension_numbers<[1], [0], [0], [1], [0, 0, 1, 1], [], []>} : vector<8x128xbf16>, vector<128x384xbf16>, vector<8x384xf32> -> vector<8x384xf32>
    %20 = vector.extract_strided_slice %19 {offsets = [0, 0], sizes = [8, 128], strides = [1, 1]} : vector<8x384xf32> to vector<8x128xf32>
    %21 = vector.extract_strided_slice %19 {offsets = [0, 128], sizes = [8, 128], strides = [1, 1]} : vector<8x384xf32> to vector<8x128xf32>
    %22 = vector.extract_strided_slice %19 {offsets = [0, 256], sizes = [8, 128], strides = [1, 1]} : vector<8x384xf32> to vector<8x128xf32>
    %23 = arith.truncf %22 : vector<8x128xf32> to vector<8x128xbf16>
    %c0_9 = arith.constant 0 : index
    %c0_10 = arith.constant 0 : index
    %c0_11 = arith.constant 0 : index
    %24 = vector.load %arg2[%c0_9, %c0_10, %c0_11] : memref<1x8x128xf32, #tpu.memory_space<vmem>>, vector<1x8x128xf32>
    %25 = vector.shape_cast %24 : vector<1x8x128xf32> to vector<8x128xf32>
    %c0_12 = arith.constant 0 : index
    %c0_13 = arith.constant 0 : index
    %c0_14 = arith.constant 0 : index
    %26 = vector.load %arg3[%c0_12, %c0_13, %c0_14] : memref<1x8x128xf32, #tpu.memory_space<vmem>>, vector<1x8x128xf32>
    %27 = vector.shape_cast %26 : vector<1x8x128xf32> to vector<8x128xf32>
    %28 = arith.truncf %20 : vector<8x128xf32> to vector<8x128xbf16>
    %c0_15 = arith.constant 0 : index
    %c0_16 = arith.constant 0 : index
    %29 = vector.load %arg4[%c0_15, %c0_16] : memref<128x128xbf16, #tpu.memory_space<vmem>>, vector<128x128xbf16>
    %cst_17 = arith.constant dense<0.000000e+00> : vector<8x128xf32>
    %30 = tpu.matmul %28, %29, %cst_17 {dimension_numbers = #tpu.dot_dimension_numbers<[1], [0], [0], [1], [0, 0, 1, 1], [], []>} : vector<8x128xbf16>, vector<128x128xbf16>, vector<8x128xf32> -> vector<8x128xf32>
    %31 = arith.truncf %21 : vector<8x128xf32> to vector<8x128xbf16>
    %c0_18 = arith.constant 0 : index
    %c0_19 = arith.constant 0 : index
    %32 = vector.load %arg4[%c0_18, %c0_19] : memref<128x128xbf16, #tpu.memory_space<vmem>>, vector<128x128xbf16>
    %cst_20 = arith.constant dense<0.000000e+00> : vector<8x128xf32>
    %33 = tpu.matmul %31, %32, %cst_20 {dimension_numbers = #tpu.dot_dimension_numbers<[1], [0], [0], [1], [0, 0, 1, 1], [], []>} : vector<8x128xbf16>, vector<128x128xbf16>, vector<8x128xf32> -> vector<8x128xf32>
    %34 = arith.mulf %20, %25 : vector<8x128xf32>
    %35 = arith.mulf %30, %27 : vector<8x128xf32>
    %36 = arith.addf %34, %35 : vector<8x128xf32>
    %37 = arith.truncf %36 : vector<8x128xf32> to vector<8x128xbf16>
    %38 = arith.mulf %21, %25 : vector<8x128xf32>
    %39 = arith.mulf %33, %27 : vector<8x128xf32>
    %40 = arith.addf %38, %39 : vector<8x128xf32>
    %41 = arith.truncf %40 : vector<8x128xf32> to vector<8x128xbf16>
    %42 = tpu.iota {dimensions = array<i32: 0>} : vector<8x8xi32>
    %43 = tpu.iota {dimensions = array<i32: 1>} : vector<8x8xi32>
    %44 = arith.cmpi sle, %43, %42 : vector<8x8xi32>
    %45 = vector.extract_strided_slice %37 {offsets = [0, 0], sizes = [8, 32], strides = [1, 1]} : vector<8x128xbf16> to vector<8x32xbf16>
    %46 = vector.extract_strided_slice %41 {offsets = [0, 0], sizes = [8, 32], strides = [1, 1]} : vector<8x128xbf16> to vector<8x32xbf16>
    %cst_21 = arith.constant dense<0.000000e+00> : vector<8x8xf32>
    %47 = tpu.matmul %45, %46, %cst_21 {dimension_numbers = #tpu.dot_dimension_numbers<[1], [1], [0], [0], [0, 0, 1, 0], [], []>} : vector<8x32xbf16>, vector<8x32xbf16>, vector<8x8xf32> -> vector<8x8xf32>
    %cst_22 = arith.constant 0.176776692 : f32
    %48 = vector.broadcast %cst_22 : f32 to vector<8x8xf32>
    %49 = arith.mulf %47, %48 : vector<8x8xf32>
    %cst_23 = arith.constant -1.000000e+30 : f32
    %50 = vector.broadcast %cst_23 : f32 to vector<8x8xf32>
    %51 = arith.select %44, %49, %50 : vector<8x8xi1>, vector<8x8xf32>
    %cst_24 = arith.constant dense<0xFF800000> : vector<8xf32>
    %52 = vector.multi_reduction <maximumf>, %51, %cst_24 [1] : vector<8x8xf32> to vector<8xf32>
    %53 = vector.shape_cast %52 : vector<8xf32> to vector<8x1xf32>
    %54 = vector.broadcast %53 : vector<8x1xf32> to vector<8x8xf32>
    %55 = arith.subf %51, %54 : vector<8x8xf32>
    %56 = math.exp %55 : vector<8x8xf32>
    %cst_25 = arith.constant dense<0.000000e+00> : vector<8xf32>
    %57 = vector.multi_reduction <add>, %56, %cst_25 [1] : vector<8x8xf32> to vector<8xf32>
    %58 = vector.shape_cast %57 : vector<8xf32> to vector<8x1xf32>
    %59 = tpu.reciprocal %58 {approx = true} : vector<8x1xf32> -> vector<8x1xf32>
    %60 = vector.broadcast %59 : vector<8x1xf32> to vector<8x8xf32>
    %61 = arith.mulf %56, %60 : vector<8x8xf32>
    %62 = arith.truncf %61 : vector<8x8xf32> to vector<8x8xbf16>
    %63 = vector.extract_strided_slice %23 {offsets = [0, 0], sizes = [8, 32], strides = [1, 1]} : vector<8x128xbf16> to vector<8x32xbf16>
    %cst_26 = arith.constant dense<0.000000e+00> : vector<8x32xf32>
    %64 = tpu.matmul %62, %63, %cst_26 {dimension_numbers = #tpu.dot_dimension_numbers<[1], [0], [0], [1], [0, 0, 1, 1], [], []>} : vector<8x8xbf16>, vector<8x32xbf16>, vector<8x32xf32> -> vector<8x32xf32>
    %c0_27 = arith.constant 0 : index
    %c0_28 = arith.constant 0 : index
    %65 = vector.load %arg12[%c0_27, %c0_28] : memref<8x128xf32, #tpu.memory_space<vmem>>, vector<8x32xf32>
    tpu.vector_store %arg12[%c0_27, %c0_28], %64 {strides = array<i32>} : memref<8x128xf32, #tpu.memory_space<vmem>>, vector<8x32xf32>,
    %66 = vector.extract_strided_slice %37 {offsets = [0, 32], sizes = [8, 32], strides = [1, 1]} : vector<8x128xbf16> to vector<8x32xbf16>
    %67 = vector.extract_strided_slice %41 {offsets = [0, 32], sizes = [8, 32], strides = [1, 1]} : vector<8x128xbf16> to vector<8x32xbf16>
    %cst_29 = arith.constant dense<0.000000e+00> : vector<8x8xf32>
    %68 = tpu.matmul %66, %67, %cst_29 {dimension_numbers = #tpu.dot_dimension_numbers<[1], [1], [0], [0], [0, 0, 1, 0], [], []>} : vector<8x32xbf16>, vector<8x32xbf16>, vector<8x8xf32> -> vector<8x8xf32>
    %cst_30 = arith.constant 0.176776692 : f32
    %69 = vector.broadcast %cst_30 : f32 to vector<8x8xf32>
    %70 = arith.mulf %68, %69 : vector<8x8xf32>
    %cst_31 = arith.constant -1.000000e+30 : f32
    %71 = vector.broadcast %cst_31 : f32 to vector<8x8xf32>
    %72 = arith.select %44, %70, %71 : vector<8x8xi1>, vector<8x8xf32>
    %cst_32 = arith.constant dense<0xFF800000> : vector<8xf32>
    %73 = vector.multi_reduction <maximumf>, %72, %cst_32 [1] : vector<8x8xf32> to vector<8xf32>
    %74 = vector.shape_cast %73 : vector<8xf32> to vector<8x1xf32>
    %75 = vector.broadcast %74 : vector<8x1xf32> to vector<8x8xf32>
    %76 = arith.subf %72, %75 : vector<8x8xf32>
    %77 = math.exp %76 : vector<8x8xf32>
    %cst_33 = arith.constant dense<0.000000e+00> : vector<8xf32>
    %78 = vector.multi_reduction <add>, %77, %cst_33 [1] : vector<8x8xf32> to vector<8xf32>
    %79 = vector.shape_cast %78 : vector<8xf32> to vector<8x1xf32>
    %80 = tpu.reciprocal %79 {approx = true} : vector<8x1xf32> -> vector<8x1xf32>
    %81 = vector.broadcast %80 : vector<8x1xf32> to vector<8x8xf32>
    %82 = arith.mulf %77, %81 : vector<8x8xf32>
    %83 = arith.truncf %82 : vector<8x8xf32> to vector<8x8xbf16>
    %84 = vector.extract_strided_slice %23 {offsets = [0, 32], sizes = [8, 32], strides = [1, 1]} : vector<8x128xbf16> to vector<8x32xbf16>
    %cst_34 = arith.constant dense<0.000000e+00> : vector<8x32xf32>
    %85 = tpu.matmul %83, %84, %cst_34 {dimension_numbers = #tpu.dot_dimension_numbers<[1], [0], [0], [1], [0, 0, 1, 1], [], []>} : vector<8x8xbf16>, vector<8x32xbf16>, vector<8x32xf32> -> vector<8x32xf32>
    %c0_35 = arith.constant 0 : index
    %c32 = arith.constant 32 : index
    %86 = vector.load %arg12[%c0_35, %c32] : memref<8x128xf32, #tpu.memory_space<vmem>>, vector<8x32xf32>
    tpu.vector_store %arg12[%c0_35, %c32], %85 {strides = array<i32>} : memref<8x128xf32, #tpu.memory_space<vmem>>, vector<8x32xf32>,
    %87 = vector.extract_strided_slice %37 {offsets = [0, 64], sizes = [8, 32], strides = [1, 1]} : vector<8x128xbf16> to vector<8x32xbf16>
    %88 = vector.extract_strided_slice %41 {offsets = [0, 64], sizes = [8, 32], strides = [1, 1]} : vector<8x128xbf16> to vector<8x32xbf16>
    %cst_36 = arith.constant dense<0.000000e+00> : vector<8x8xf32>
    %89 = tpu.matmul %87, %88, %cst_36 {dimension_numbers = #tpu.dot_dimension_numbers<[1], [1], [0], [0], [0, 0, 1, 0], [], []>} : vector<8x32xbf16>, vector<8x32xbf16>, vector<8x8xf32> -> vector<8x8xf32>
    %cst_37 = arith.constant 0.176776692 : f32
    %90 = vector.broadcast %cst_37 : f32 to vector<8x8xf32>
    %91 = arith.mulf %89, %90 : vector<8x8xf32>
    %cst_38 = arith.constant -1.000000e+30 : f32
    %92 = vector.broadcast %cst_38 : f32 to vector<8x8xf32>
    %93 = arith.select %44, %91, %92 : vector<8x8xi1>, vector<8x8xf32>
    %cst_39 = arith.constant dense<0xFF800000> : vector<8xf32>
    %94 = vector.multi_reduction <maximumf>, %93, %cst_39 [1] : vector<8x8xf32> to vector<8xf32>
    %95 = vector.shape_cast %94 : vector<8xf32> to vector<8x1xf32>
    %96 = vector.broadcast %95 : vector<8x1xf32> to vector<8x8xf32>
    %97 = arith.subf %93, %96 : vector<8x8xf32>
    %98 = math.exp %97 : vector<8x8xf32>
    %cst_40 = arith.constant dense<0.000000e+00> : vector<8xf32>
    %99 = vector.multi_reduction <add>, %98, %cst_40 [1] : vector<8x8xf32> to vector<8xf32>
    %100 = vector.shape_cast %99 : vector<8xf32> to vector<8x1xf32>
    %101 = tpu.reciprocal %100 {approx = true} : vector<8x1xf32> -> vector<8x1xf32>
    %102 = vector.broadcast %101 : vector<8x1xf32> to vector<8x8xf32>
    %103 = arith.mulf %98, %102 : vector<8x8xf32>
    %104 = arith.truncf %103 : vector<8x8xf32> to vector<8x8xbf16>
    %105 = vector.extract_strided_slice %23 {offsets = [0, 64], sizes = [8, 32], strides = [1, 1]} : vector<8x128xbf16> to vector<8x32xbf16>
    %cst_41 = arith.constant dense<0.000000e+00> : vector<8x32xf32>
    %106 = tpu.matmul %104, %105, %cst_41 {dimension_numbers = #tpu.dot_dimension_numbers<[1], [0], [0], [1], [0, 0, 1, 1], [], []>} : vector<8x8xbf16>, vector<8x32xbf16>, vector<8x32xf32> -> vector<8x32xf32>
    %c0_42 = arith.constant 0 : index
    %c64 = arith.constant 64 : index
    %107 = vector.load %arg12[%c0_42, %c64] : memref<8x128xf32, #tpu.memory_space<vmem>>, vector<8x32xf32>
    tpu.vector_store %arg12[%c0_42, %c64], %106 {strides = array<i32>} : memref<8x128xf32, #tpu.memory_space<vmem>>, vector<8x32xf32>,
    %108 = vector.extract_strided_slice %37 {offsets = [0, 96], sizes = [8, 32], strides = [1, 1]} : vector<8x128xbf16> to vector<8x32xbf16>
    %109 = vector.extract_strided_slice %41 {offsets = [0, 96], sizes = [8, 32], strides = [1, 1]} : vector<8x128xbf16> to vector<8x32xbf16>
    %cst_43 = arith.constant dense<0.000000e+00> : vector<8x8xf32>
    %110 = tpu.matmul %108, %109, %cst_43 {dimension_numbers = #tpu.dot_dimension_numbers<[1], [1], [0], [0], [0, 0, 1, 0], [], []>} : vector<8x32xbf16>, vector<8x32xbf16>, vector<8x8xf32> -> vector<8x8xf32>
    %cst_44 = arith.constant 0.176776692 : f32
    %111 = vector.broadcast %cst_44 : f32 to vector<8x8xf32>
    %112 = arith.mulf %110, %111 : vector<8x8xf32>
    %cst_45 = arith.constant -1.000000e+30 : f32
    %113 = vector.broadcast %cst_45 : f32 to vector<8x8xf32>
    %114 = arith.select %44, %112, %113 : vector<8x8xi1>, vector<8x8xf32>
    %cst_46 = arith.constant dense<0xFF800000> : vector<8xf32>
    %115 = vector.multi_reduction <maximumf>, %114, %cst_46 [1] : vector<8x8xf32> to vector<8xf32>
    %116 = vector.shape_cast %115 : vector<8xf32> to vector<8x1xf32>
    %117 = vector.broadcast %116 : vector<8x1xf32> to vector<8x8xf32>
    %118 = arith.subf %114, %117 : vector<8x8xf32>
    %119 = math.exp %118 : vector<8x8xf32>
    %cst_47 = arith.constant dense<0.000000e+00> : vector<8xf32>
    %120 = vector.multi_reduction <add>, %119, %cst_47 [1] : vector<8x8xf32> to vector<8xf32>
    %121 = vector.shape_cast %120 : vector<8xf32> to vector<8x1xf32>
    %122 = tpu.reciprocal %121 {approx = true} : vector<8x1xf32> -> vector<8x1xf32>
    %123 = vector.broadcast %122 : vector<8x1xf32> to vector<8x8xf32>
    %124 = arith.mulf %119, %123 : vector<8x8xf32>
    %125 = arith.truncf %124 : vector<8x8xf32> to vector<8x8xbf16>
    %126 = vector.extract_strided_slice %23 {offsets = [0, 96], sizes = [8, 32], strides = [1, 1]} : vector<8x128xbf16> to vector<8x32xbf16>
    %cst_48 = arith.constant dense<0.000000e+00> : vector<8x32xf32>
    %127 = tpu.matmul %125, %126, %cst_48 {dimension_numbers = #tpu.dot_dimension_numbers<[1], [0], [0], [1], [0, 0, 1, 1], [], []>} : vector<8x8xbf16>, vector<8x32xbf16>, vector<8x32xf32> -> vector<8x32xf32>
    %c0_49 = arith.constant 0 : index
    %c96 = arith.constant 96 : index
    %128 = vector.load %arg12[%c0_49, %c96] : memref<8x128xf32, #tpu.memory_space<vmem>>, vector<8x32xf32>
    tpu.vector_store %arg12[%c0_49, %c96], %127 {strides = array<i32>} : memref<8x128xf32, #tpu.memory_space<vmem>>, vector<8x32xf32>,
    %c0_50 = arith.constant 0 : index
    %c0_51 = arith.constant 0 : index
    %129 = vector.load %arg12[%c0_50, %c0_51] : memref<8x128xf32, #tpu.memory_space<vmem>>, vector<8x128xf32>
    %130 = arith.truncf %129 : vector<8x128xf32> to vector<8x128xbf16>
    %c0_52 = arith.constant 0 : index
    %c0_53 = arith.constant 0 : index
    %131 = vector.load %arg8[%c0_52, %c0_53] : memref<128x128xbf16, #tpu.memory_space<vmem>>, vector<128x128xbf16>
    %cst_54 = arith.constant dense<0.000000e+00> : vector<8x128xf32>
    %132 = tpu.matmul %130, %131, %cst_54 {dimension_numbers = #tpu.dot_dimension_numbers<[1], [0], [0], [1], [0, 0, 1, 1], [], []>} : vector<8x128xbf16>, vector<128x128xbf16>, vector<8x128xf32> -> vector<8x128xf32>
    %133 = arith.addf %2, %132 : vector<8x128xf32>
    %134 = arith.mulf %133, %133 : vector<8x128xf32>
    %cst_55 = arith.constant dense<0.000000e+00> : vector<8xf32>
    %135 = vector.multi_reduction <add>, %134, %cst_55 [1] : vector<8x128xf32> to vector<8xf32>
    %136 = vector.shape_cast %135 : vector<8xf32> to vector<8x1xf32>
    %cst_56 = arith.constant 1.280000e+02 : f32
    %137 = vector.broadcast %cst_56 : f32 to vector<8x1xf32>
    %138 = arith.divf %136, %137 : vector<8x1xf32>
    %cst_57 = arith.constant 9.99999997E-7 : f32
    %139 = vector.broadcast %cst_57 : f32 to vector<8x1xf32>
    %140 = arith.addf %138, %139 : vector<8x1xf32>
    %141 = math.rsqrt %140 : vector<8x1xf32>
    %142 = vector.broadcast %141 : vector<8x1xf32> to vector<8x128xf32>
    %143 = arith.mulf %133, %142 : vector<8x128xf32>
    %c0_58 = arith.constant 0 : index
    %c0_59 = arith.constant 0 : index
    %144 = vector.load %arg6[%c0_58, %c0_59] : memref<1x128xbf16, #tpu.memory_space<vmem>>, vector<1x128xbf16>
    %145 = arith.extf %144 : vector<1x128xbf16> to vector<1x128xf32>
    %146 = vector.broadcast %145 : vector<1x128xf32> to vector<8x128xf32>
    %147 = arith.mulf %143, %146 : vector<8x128xf32>
    %148 = arith.truncf %147 : vector<8x128xf32> to vector<8x128xbf16>
    %c0_60 = arith.constant 0 : index
    %c0_61 = arith.constant 0 : index
    %149 = vector.load %arg9[%c0_60, %c0_61] : memref<128x512xbf16, #tpu.memory_space<vmem>>, vector<128x512xbf16>
    %cst_62 = arith.constant dense<0.000000e+00> : vector<8x512xf32>
    %150 = tpu.matmul %148, %149, %cst_62 {dimension_numbers = #tpu.dot_dimension_numbers<[1], [0], [0], [1], [0, 0, 1, 1], [], []>} : vector<8x128xbf16>, vector<128x512xbf16>, vector<8x512xf32> -> vector<8x512xf32>
    %151 = vector.extract_strided_slice %150 {offsets = [0, 0], sizes = [8, 256], strides = [1, 1]} : vector<8x512xf32> to vector<8x256xf32>
    %152 = vector.extract_strided_slice %150 {offsets = [0, 256], sizes = [8, 256], strides = [1, 1]} : vector<8x512xf32> to vector<8x256xf32>
    %153 = arith.negf %151 : vector<8x256xf32>
    %154 = math.exp %153 : vector<8x256xf32>
    %cst_63 = arith.constant 1.000000e+00 : f32
    %155 = vector.broadcast %cst_63 : f32 to vector<8x256xf32>
    %156 = arith.addf %155, %154 : vector<8x256xf32>
    %157 = arith.divf %155, %156 : vector<8x256xf32>
    %158 = arith.mulf %151, %157 : vector<8x256xf32>
    %159 = arith.mulf %158, %152 : vector<8x256xf32>
    %160 = arith.truncf %159 : vector<8x256xf32> to vector<8x256xbf16>
    %c0_64 = arith.constant 0 : index
    %c0_65 = arith.constant 0 : index
    %161 = vector.load %arg10[%c0_64, %c0_65] : memref<256x128xbf16, #tpu.memory_space<vmem>>, vector<256x128xbf16>
    %cst_66 = arith.constant dense<0.000000e+00> : vector<8x128xf32>
    %162 = tpu.matmul %160, %161, %cst_66 {dimension_numbers = #tpu.dot_dimension_numbers<[1], [0], [0], [1], [0, 0, 1, 1], [], []>} : vector<8x256xbf16>, vector<256x128xbf16>, vector<8x128xf32> -> vector<8x128xf32>
    %163 = arith.addf %133, %162 : vector<8x128xf32>
    %164 = arith.truncf %163 : vector<8x128xf32> to vector<8x128xbf16>
    %c0_67 = arith.constant 0 : index
    %c0_68 = arith.constant 0 : index
    %c0_69 = arith.constant 0 : index
    %165 = vector.load %arg11[%c0_67, %c0_68, %c0_69] : memref<1x8x128xbf16, #tpu.memory_space<vmem>>, vector<1x8x128xbf16>
    %166 = vector.shape_cast %165 : vector<1x8x128xbf16> to vector<8x128xbf16>
    %167 = vector.shape_cast %164 : vector<8x128xbf16> to vector<1x8x128xbf16>
    tpu.vector_store %arg11[%c0_67, %c0_68, %c0_69], %167 {strides = array<i32>} : memref<1x8x128xbf16, #tpu.memory_space<vmem>>, vector<1x8x128xbf16>,
    return
  }
  func.func @transform_0(%arg0: i32) -> (i32, i32, i32) {
    %c0_i32 = arith.constant 0 : i32
    %c0_i32_0 = arith.constant 0 : i32
    %c0_i32_1 = arith.constant 0 : i32
    return %arg0, %c0_i32, %c0_i32_0 : i32, i32, i32
  }
  func.func @transform_1(%arg0: i32) -> (i32, i32, i32) {
    %c0_i32 = arith.constant 0 : i32
    %c0_i32_0 = arith.constant 0 : i32
    %c0_i32_1 = arith.constant 0 : i32
    return %arg0, %c0_i32, %c0_i32_0 : i32, i32, i32
  }
  func.func @transform_2(%arg0: i32) -> (i32, i32, i32) {
    %c0_i32 = arith.constant 0 : i32
    %c0_i32_0 = arith.constant 0 : i32
    %c0_i32_1 = arith.constant 0 : i32
    return %arg0, %c0_i32, %c0_i32_0 : i32, i32, i32
  }
  func.func @transform_3(%arg0: i32) -> (i32, i32) {
    %c0_i32 = arith.constant 0 : i32
    %c0_i32_0 = arith.constant 0 : i32
    %c0_i32_1 = arith.constant 0 : i32
    return %c0_i32, %c0_i32_0 : i32, i32
  }
  func.func @transform_4(%arg0: i32) -> (i32, i32) {
    %c0_i32 = arith.constant 0 : i32
    %c0_i32_0 = arith.constant 0 : i32
    %c0_i32_1 = arith.constant 0 : i32
    return %c0_i32, %c0_i32_0 : i32, i32
  }
  func.func @transform_5(%arg0: i32) -> (i32, i32) {
    %c0_i32 = arith.constant 0 : i32
    %c0_i32_0 = arith.constant 0 : i32
    %c0_i32_1 = arith.constant 0 : i32
    return %c0_i32, %c0_i32_0 : i32, i32
  }
  func.func @transform_6(%arg0: i32) -> (i32, i32) {
    %c0_i32 = arith.constant 0 : i32
    %c0_i32_0 = arith.constant 0 : i32
    %c0_i32_1 = arith.constant 0 : i32
    return %c0_i32, %c0_i32_0 : i32, i32
  }
  func.func @transform_7(%arg0: i32) -> (i32, i32) {
    %c0_i32 = arith.constant 0 : i32
    %c0_i32_0 = arith.constant 0 : i32
    %c0_i32_1 = arith.constant 0 : i32
    return %c0_i32, %c0_i32_0 : i32, i32
  }
  func.func @transform_8(%arg0: i32) -> (i32, i32) {
    %c0_i32 = arith.constant 0 : i32
    %c0_i32_0 = arith.constant 0 : i32
    %c0_i32_1 = arith.constant 0 : i32
    return %c0_i32, %c0_i32_0 : i32, i32
  }
  func.func @transform_9(%arg0: i32) -> (i32, i32) {
    %c0_i32 = arith.constant 0 : i32
    %c0_i32_0 = arith.constant 0 : i32
    %c0_i32_1 = arith.constant 0 : i32
    return %c0_i32, %c0_i32_0 : i32, i32
  }
  func.func @transform_10(%arg0: i32) -> (i32, i32, i32) {
    %c0_i32 = arith.constant 0 : i32
    %c0_i32_0 = arith.constant 0 : i32
    %c0_i32_1 = arith.constant 0 : i32
    return %arg0, %c0_i32, %c0_i32_0 : i32, i32, i32
  }
}

module attributes {stable_mosaic.version = 11 : i64} {
  func.func @_llama_layer_kernel(%arg0: i32, %arg1: memref<1x8x128xbf16, #tpu.memory_space<vmem>>, %arg2: memref<1x8x128xf32, #tpu.memory_space<vmem>>, %arg3: memref<1x8x128xf32, #tpu.memory_space<vmem>>, %arg4: memref<128x128xbf16, #tpu.memory_space<vmem>>, %arg5: memref<1x128xbf16, #tpu.memory_space<vmem>>, %arg6: memref<1x128xbf16, #tpu.memory_space<vmem>>, %arg7: memref<128x384xbf16, #tpu.memory_space<vmem>>, %arg8: memref<128x128xbf16, #tpu.memory_space<vmem>>, %arg9: memref<128x512xbf16, #tpu.memory_space<vmem>>, %arg10: memref<256x128xbf16, #tpu.memory_space<vmem>>, %arg11: memref<1x8x128xbf16, #tpu.memory_space<vmem>>, %arg12: memref<8x128xf32, #tpu.memory_space<vmem>>) attributes {dimension_semantics = [#tpu.dimension_semantics<parallel>], iteration_bounds = array<i64: 2>, scalar_prefetch = 0 : i64, scratch_operands = 1 : i64, tpu.core_type = #tpu.core_type<tc>, window_params = [{transform_indices = @transform_0, window_bounds = array<i64: 1, 8, 128>}, {transform_indices = @transform_1, window_bounds = array<i64: 1, 8, 128>}, {transform_indices = @transform_2, window_bounds = array<i64: 1, 8, 128>}, {pipeline_mode = #tpu.pipeline_mode<synchronous>, transform_indices = @transform_3, window_bounds = array<i64: 128, 128>}, {pipeline_mode = #tpu.pipeline_mode<synchronous>, transform_indices = @transform_4, window_bounds = array<i64: 1, 128>}, {pipeline_mode = #tpu.pipeline_mode<synchronous>, transform_indices = @transform_5, window_bounds = array<i64: 1, 128>}, {pipeline_mode = #tpu.pipeline_mode<synchronous>, transform_indices = @transform_6, window_bounds = array<i64: 128, 384>}, {pipeline_mode = #tpu.pipeline_mode<synchronous>, transform_indices = @transform_7, window_bounds = array<i64: 128, 128>}, {pipeline_mode = #tpu.pipeline_mode<synchronous>, transform_indices = @transform_8, window_bounds = array<i64: 128, 512>}, {pipeline_mode = #tpu.pipeline_mode<synchronous>, transform_indices = @transform_9, window_bounds = array<i64: 256, 128>}, {transform_indices = @transform_10, window_bounds = array<i64: 1, 8, 128>}]} {
    %c0 = arith.constant 0 : index
    %c0_0 = arith.constant 0 : index
    %c0_1 = arith.constant 0 : index
    %0 = vector.load %arg1[%c0, %c0_0, %c0_1] : memref<1x8x128xbf16, #tpu.memory_space<vmem>>, vector<1x8x128xbf16>
    %1 = vector.shape_cast %0 : vector<1x8x128xbf16> to vector<8x128xbf16>
    %2 = arith.extf %1 : vector<8x128xbf16> to vector<8x128xf32>
    %3 = arith.mulf %2, %2 : vector<8x128xf32>
    %cst = arith.constant dense<0.000000e+00> : vector<8xf32>
    %4 = vector.multi_reduction <add>, %3, %cst [1] : vector<8x128xf32> to vector<8xf32>
    %5 = vector.shape_cast %4 : vector<8xf32> to vector<8x1xf32>
    %cst_2 = arith.constant 1.280000e+02 : f32
    %6 = vector.broadcast %cst_2 : f32 to vector<8x1xf32>
    %7 = arith.divf %5, %6 : vector<8x1xf32>
    %cst_3 = arith.constant 9.99999997E-7 : f32
    %8 = vector.broadcast %cst_3 : f32 to vector<8x1xf32>
    %9 = arith.addf %7, %8 : vector<8x1xf32>
    %10 = math.rsqrt %9 : vector<8x1xf32>
    %11 = vector.broadcast %10 : vector<8x1xf32> to vector<8x128xf32>
    %12 = arith.mulf %2, %11 : vector<8x128xf32>
    %c0_4 = arith.constant 0 : index
    %c0_5 = arith.constant 0 : index
    %13 = vector.load %arg5[%c0_4, %c0_5] : memref<1x128xbf16, #tpu.memory_space<vmem>>, vector<1x128xbf16>
    %14 = arith.extf %13 : vector<1x128xbf16> to vector<1x128xf32>
    %15 = vector.broadcast %14 : vector<1x128xf32> to vector<8x128xf32>
    %16 = arith.mulf %12, %15 : vector<8x128xf32>
    %17 = arith.truncf %16 : vector<8x128xf32> to vector<8x128xbf16>
    %c0_6 = arith.constant 0 : index
    %c0_7 = arith.constant 0 : index
    %18 = vector.load %arg7[%c0_6, %c0_7] : memref<128x384xbf16, #tpu.memory_space<vmem>>, vector<128x384xbf16>
    %cst_8 = arith.constant dense<0.000000e+00> : vector<8x384xf32>
    %19 = tpu.matmul %17, %18, %cst_8 {dimension_numbers = #tpu.dot_dimension_numbers<[1], [0], [0], [1], [0, 0, 1, 1], [], []>} : vector<8x128xbf16>, vector<128x384xbf16>, vector<8x384xf32> -> vector<8x384xf32>
    %20 = vector.extract_strided_slice %19 {offsets = [0, 0], sizes = [8, 128], strides = [1, 1]} : vector<8x384xf32> to vector<8x128xf32>
    %21 = vector.extract_strided_slice %19 {offsets = [0, 128], sizes = [8, 128], strides = [1, 1]} : vector<8x384xf32> to vector<8x128xf32>
    %22 = vector.extract_strided_slice %19 {offsets = [0, 256], sizes = [8, 128], strides = [1, 1]} : vector<8x384xf32> to vector<8x128xf32>
    %23 = arith.truncf %22 : vector<8x128xf32> to vector<8x128xbf16>
    %c0_9 = arith.constant 0 : index
    %c0_10 = arith.constant 0 : index
    %c0_11 = arith.constant 0 : index
    %24 = vector.load %arg2[%c0_9, %c0_10, %c0_11] : memref<1x8x128xf32, #tpu.memory_space<vmem>>, vector<1x8x128xf32>
    %25 = vector.shape_cast %24 : vector<1x8x128xf32> to vector<8x128xf32>
    %c0_12 = arith.constant 0 : index
    %c0_13 = arith.constant 0 : index
    %c0_14 = arith.constant 0 : index
    %26 = vector.load %arg3[%c0_12, %c0_13, %c0_14] : memref<1x8x128xf32, #tpu.memory_space<vmem>>, vector<1x8x128xf32>
    %27 = vector.shape_cast %26 : vector<1x8x128xf32> to vector<8x128xf32>
    %28 = arith.truncf %20 : vector<8x128xf32> to vector<8x128xbf16>
    %c0_15 = arith.constant 0 : index
    %c0_16 = arith.constant 0 : index
    %29 = vector.load %arg4[%c0_15, %c0_16] : memref<128x128xbf16, #tpu.memory_space<vmem>>, vector<128x128xbf16>
    %cst_17 = arith.constant dense<0.000000e+00> : vector<8x128xf32>
    %30 = tpu.matmul %28, %29, %cst_17 {dimension_numbers = #tpu.dot_dimension_numbers<[1], [0], [0], [1], [0, 0, 1, 1], [], []>} : vector<8x128xbf16>, vector<128x128xbf16>, vector<8x128xf32> -> vector<8x128xf32>
    %31 = arith.truncf %21 : vector<8x128xf32> to vector<8x128xbf16>
    %c0_18 = arith.constant 0 : index
    %c0_19 = arith.constant 0 : index
    %32 = vector.load %arg4[%c0_18, %c0_19] : memref<128x128xbf16, #tpu.memory_space<vmem>>, vector<128x128xbf16>
    %cst_20 = arith.constant dense<0.000000e+00> : vector<8x128xf32>
    %33 = tpu.matmul %31, %32, %cst_20 {dimension_numbers = #tpu.dot_dimension_numbers<[1], [0], [0], [1], [0, 0, 1, 1], [], []>} : vector<8x128xbf16>, vector<128x128xbf16>, vector<8x128xf32> -> vector<8x128xf32>
    %34 = arith.mulf %20, %25 : vector<8x128xf32>
    %35 = arith.mulf %30, %27 : vector<8x128xf32>
    %36 = arith.addf %34, %35 : vector<8x128xf32>
    %37 = arith.truncf %36 : vector<8x128xf32> to vector<8x128xbf16>
    %38 = arith.mulf %21, %25 : vector<8x128xf32>
    %39 = arith.mulf %33, %27 : vector<8x128xf32>
    %40 = arith.addf %38, %39 : vector<8x128xf32>
    %41 = arith.truncf %40 : vector<8x128xf32> to vector<8x128xbf16>
    %42 = tpu.iota {dimensions = array<i32: 0>} : vector<8x8xi32>
    %43 = tpu.iota {dimensions = array<i32: 1>} : vector<8x8xi32>
    %44 = arith.cmpi sle, %43, %42 : vector<8x8xi32>
    %45 = vector.extract_strided_slice %37 {offsets = [0, 0], sizes = [8, 32], strides = [1, 1]} : vector<8x128xbf16> to vector<8x32xbf16>
    %46 = vector.extract_strided_slice %41 {offsets = [0, 0], sizes = [8, 32], strides = [1, 1]} : vector<8x128xbf16> to vector<8x32xbf16>
    %cst_21 = arith.constant dense<0.000000e+00> : vector<8x8xf32>
    %47 = tpu.matmul %45, %46, %cst_21 {dimension_numbers = #tpu.dot_dimension_numbers<[1], [1], [0], [0], [0, 0, 1, 0], [], []>} : vector<8x32xbf16>, vector<8x32xbf16>, vector<8x8xf32> -> vector<8x8xf32>
    %cst_22 = arith.constant 0.176776692 : f32
    %48 = vector.broadcast %cst_22 : f32 to vector<8x8xf32>
    %49 = arith.mulf %47, %48 : vector<8x8xf32>
    %cst_23 = arith.constant -1.000000e+30 : f32
    %50 = vector.broadcast %cst_23 : f32 to vector<8x8xf32>
    %51 = arith.select %44, %49, %50 : vector<8x8xi1>, vector<8x8xf32>
    %cst_24 = arith.constant dense<0xFF800000> : vector<8xf32>
    %52 = vector.multi_reduction <maximumf>, %51, %cst_24 [1] : vector<8x8xf32> to vector<8xf32>
    %53 = vector.shape_cast %52 : vector<8xf32> to vector<8x1xf32>
    %54 = vector.broadcast %53 : vector<8x1xf32> to vector<8x8xf32>
    %55 = arith.subf %51, %54 : vector<8x8xf32>
    %56 = math.exp %55 : vector<8x8xf32>
    %cst_25 = arith.constant dense<0.000000e+00> : vector<8xf32>
    %57 = vector.multi_reduction <add>, %56, %cst_25 [1] : vector<8x8xf32> to vector<8xf32>
    %58 = vector.shape_cast %57 : vector<8xf32> to vector<8x1xf32>
    %59 = tpu.reciprocal %58 {approx = true} : vector<8x1xf32> -> vector<8x1xf32>
    %60 = vector.broadcast %59 : vector<8x1xf32> to vector<8x8xf32>
    %61 = arith.mulf %56, %60 : vector<8x8xf32>
    %62 = arith.truncf %61 : vector<8x8xf32> to vector<8x8xbf16>
    %63 = vector.extract_strided_slice %23 {offsets = [0, 0], sizes = [8, 32], strides = [1, 1]} : vector<8x128xbf16> to vector<8x32xbf16>
    %cst_26 = arith.constant dense<0.000000e+00> : vector<8x32xf32>
    %64 = tpu.matmul %62, %63, %cst_26 {dimension_numbers = #tpu.dot_dimension_numbers<[1], [0], [0], [1], [0, 0, 1, 1], [], []>} : vector<8x8xbf16>, vector<8x32xbf16>, vector<8x32xf32> -> vector<8x32xf32>
    %c0_27 = arith.constant 0 : index
    %c0_28 = arith.constant 0 : index
    %65 = vector.load %arg12[%c0_27, %c0_28] : memref<8x128xf32, #tpu.memory_space<vmem>>, vector<8x32xf32>
    tpu.vector_store %arg12[%c0_27, %c0_28], %64 {strides = array<i32>} : memref<8x128xf32, #tpu.memory_space<vmem>>, vector<8x32xf32>,
    %66 = vector.extract_strided_slice %37 {offsets = [0, 32], sizes = [8, 32], strides = [1, 1]} : vector<8x128xbf16> to vector<8x32xbf16>
    %67 = vector.extract_strided_slice %41 {offsets = [0, 32], sizes = [8, 32], strides = [1, 1]} : vector<8x128xbf16> to vector<8x32xbf16>
    %cst_29 = arith.constant dense<0.000000e+00> : vector<8x8xf32>
    %68 = tpu.matmul %66, %67, %cst_29 {dimension_numbers = #tpu.dot_dimension_numbers<[1], [1], [0], [0], [0, 0, 1, 0], [], []>} : vector<8x32xbf16>, vector<8x32xbf16>, vector<8x8xf32> -> vector<8x8xf32>
    %cst_30 = arith.constant 0.176776692 : f32
    %69 = vector.broadcast %cst_30 : f32 to vector<8x8xf32>
    %70 = arith.mulf %68, %69 : vector<8x8xf32>
    %cst_31 = arith.constant -1.000000e+30 : f32
    %71 = vector.broadcast %cst_31 : f32 to vector<8x8xf32>
    %72 = arith.select %44, %70, %71 : vector<8x8xi1>, vector<8x8xf32>
    %cst_32 = arith.constant dense<0xFF800000> : vector<8xf32>
    %73 = vector.multi_reduction <maximumf>, %72, %cst_32 [1] : vector<8x8xf32> to vector<8xf32>
    %74 = vector.shape_cast %73 : vector<8xf32> to vector<8x1xf32>
    %75 = vector.broadcast %74 : vector<8x1xf32> to vector<8x8xf32>
    %76 = arith.subf %72, %75 : vector<8x8xf32>
    %77 = math.exp %76 : vector<8x8xf32>
    %cst_33 = arith.constant dense<0.000000e+00> : vector<8xf32>
    %78 = vector.multi_reduction <add>, %77, %cst_33 [1] : vector<8x8xf32> to vector<8xf32>
    %79 = vector.shape_cast %78 : vector<8xf32> to vector<8x1xf32>
    %80 = tpu.reciprocal %79 {approx = true} : vector<8x1xf32> -> vector<8x1xf32>
    %81 = vector.broadcast %80 : vector<8x1xf32> to vector<8x8xf32>
    %82 = arith.mulf %77, %81 : vector<8x8xf32>
    %83 = arith.truncf %82 : vector<8x8xf32> to vector<8x8xbf16>
    %84 = vector.extract_strided_slice %23 {offsets = [0, 32], sizes = [8, 32], strides = [1, 1]} : vector<8x128xbf16> to vector<8x32xbf16>
    %cst_34 = arith.constant dense<0.000000e+00> : vector<8x32xf32>
    %85 = tpu.matmul %83, %84, %cst_34 {dimension_numbers = #tpu.dot_dimension_numbers<[1], [0], [0], [1], [0, 0, 1, 1], [], []>} : vector<8x8xbf16>, vector<8x32xbf16>, vector<8x32xf32> -> vector<8x32xf32>
    %c0_35 = arith.constant 0 : index
    %c32 = arith.constant 32 : index
    %86 = vector.load %arg12[%c0_35, %c32] : memref<8x128xf32, #tpu.memory_space<vmem>>, vector<8x32xf32>
    tpu.vector_store %arg12[%c0_35, %c32], %85 {strides = array<i32>} : memref<8x128xf32, #tpu.memory_space<vmem>>, vector<8x32xf32>,
    %87 = vector.extract_strided_slice %37 {offsets = [0, 64], sizes = [8, 32], strides = [1, 1]} : vector<8x128xbf16> to vector<8x32xbf16>
    %88 = vector.extract_strided_slice %41 {offsets = [0, 64], sizes = [8, 32], strides = [1, 1]} : vector<8x128xbf16> to vector<8x32xbf16>
    %cst_36 = arith.constant dense<0.000000e+00> : vector<8x8xf32>
    %89 = tpu.matmul %87, %88, %cst_36 {dimension_numbers = #tpu.dot_dimension_numbers<[1], [1], [0], [0], [0, 0, 1, 0], [], []>} : vector<8x32xbf16>, vector<8x32xbf16>, vector<8x8xf32> -> vector<8x8xf32>
    %cst_37 = arith.constant 0.176776692 : f32
    %90 = vector.broadcast %cst_37 : f32 to vector<8x8xf32>
    %91 = arith.mulf %89, %90 : vector<8x8xf32>
    %cst_38 = arith.constant -1.000000e+30 : f32
    %92 = vector.broadcast %cst_38 : f32 to vector<8x8xf32>
    %93 = arith.select %44, %91, %92 : vector<8x8xi1>, vector<8x8xf32>
    %cst_39 = arith.constant dense<0xFF800000> : vector<8xf32>
    %94 = vector.multi_reduction <maximumf>, %93, %cst_39 [1] : vector<8x8xf32> to vector<8xf32>
    %95 = vector.shape_cast %94 : vector<8xf32> to vector<8x1xf32>
    %96 = vector.broadcast %95 : vector<8x1xf32> to vector<8x8xf32>
    %97 = arith.subf %93, %96 : vector<8x8xf32>
    %98 = math.exp %97 : vector<8x8xf32>
    %cst_40 = arith.constant dense<0.000000e+00> : vector<8xf32>
    %99 = vector.multi_reduction <add>, %98, %cst_40 [1] : vector<8x8xf32> to vector<8xf32>
    %100 = vector.shape_cast %99 : vector<8xf32> to vector<8x1xf32>
    %101 = tpu.reciprocal %100 {approx = true} : vector<8x1xf32> -> vector<8x1xf32>
    %102 = vector.broadcast %101 : vector<8x1xf32> to vector<8x8xf32>
    %103 = arith.mulf %98, %102 : vector<8x8xf32>
    %104 = arith.truncf %103 : vector<8x8xf32> to vector<8x8xbf16>
    %105 = vector.extract_strided_slice %23 {offsets = [0, 64], sizes = [8, 32], strides = [1, 1]} : vector<8x128xbf16> to vector<8x32xbf16>
    %cst_41 = arith.constant dense<0.000000e+00> : vector<8x32xf32>
    %106 = tpu.matmul %104, %105, %cst_41 {dimension_numbers = #tpu.dot_dimension_numbers<[1], [0], [0], [1], [0, 0, 1, 1], [], []>} : vector<8x8xbf16>, vector<8x32xbf16>, vector<8x32xf32> -> vector<8x32xf32>
    %c0_42 = arith.constant 0 : index
    %c64 = arith.constant 64 : index
    %107 = vector.load %arg12[%c0_42, %c64] : memref<8x128xf32, #tpu.memory_space<vmem>>, vector<8x32xf32>
    tpu.vector_store %arg12[%c0_42, %c64], %106 {strides = array<i32>} : memref<8x128xf32, #tpu.memory_space<vmem>>, vector<8x32xf32>,
    %108 = vector.extract_strided_slice %37 {offsets = [0, 96], sizes = [8, 32], strides = [1, 1]} : vector<8x128xbf16> to vector<8x32xbf16>
    %109 = vector.extract_strided_slice %41 {offsets = [0, 96], sizes = [8, 32], strides = [1, 1]} : vector<8x128xbf16> to vector<8x32xbf16>
    %cst_43 = arith.constant dense<0.000000e+00> : vector<8x8xf32>
    %110 = tpu.matmul %108, %109, %cst_43 {dimension_numbers = #tpu.dot_dimension_numbers<[1], [1], [0], [0], [0, 0, 1, 0], [], []>} : vector<8x32xbf16>, vector<8x32xbf16>, vector<8x8xf32> -> vector<8x8xf32>
    %cst_44 = arith.constant 0.176776692 : f32
    %111 = vector.broadcast %cst_44 : f32 to vector<8x8xf32>
    %112 = arith.mulf %110, %111 : vector<8x8xf32>
    %cst_45 = arith.constant -1.000000e+30 : f32
    %113 = vector.broadcast %cst_45 : f32 to vector<8x8xf32>
    %114 = arith.select %44, %112, %113 : vector<8x8xi1>, vector<8x8xf32>
    %cst_46 = arith.constant dense<0xFF800000> : vector<8xf32>
    %115 = vector.multi_reduction <maximumf>, %114, %cst_46 [1] : vector<8x8xf32> to vector<8xf32>
    %116 = vector.shape_cast %115 : vector<8xf32> to vector<8x1xf32>
    %117 = vector.broadcast %116 : vector<8x1xf32> to vector<8x8xf32>
    %118 = arith.subf %114, %117 : vector<8x8xf32>
    %119 = math.exp %118 : vector<8x8xf32>
    %cst_47 = arith.constant dense<0.000000e+00> : vector<8xf32>
    %120 = vector.multi_reduction <add>, %119, %cst_47 [1] : vector<8x8xf32> to vector<8xf32>
    %121 = vector.shape_cast %120 : vector<8xf32> to vector<8x1xf32>
    %122 = tpu.reciprocal %121 {approx = true} : vector<8x1xf32> -> vector<8x1xf32>
    %123 = vector.broadcast %122 : vector<8x1xf32> to vector<8x8xf32>
    %124 = arith.mulf %119, %123 : vector<8x8xf32>
    %125 = arith.truncf %124 : vector<8x8xf32> to vector<8x8xbf16>
    %126 = vector.extract_strided_slice %23 {offsets = [0, 96], sizes = [8, 32], strides = [1, 1]} : vector<8x128xbf16> to vector<8x32xbf16>
    %cst_48 = arith.constant dense<0.000000e+00> : vector<8x32xf32>
    %127 = tpu.matmul %125, %126, %cst_48 {dimension_numbers = #tpu.dot_dimension_numbers<[1], [0], [0], [1], [0, 0, 1, 1], [], []>} : vector<8x8xbf16>, vector<8x32xbf16>, vector<8x32xf32> -> vector<8x32xf32>
    %c0_49 = arith.constant 0 : index
    %c96 = arith.constant 96 : index
    %128 = vector.load %arg12[%c0_49, %c96] : memref<8x128xf32, #tpu.memory_space<vmem>>, vector<8x32xf32>
    tpu.vector_store %arg12[%c0_49, %c96], %127 {strides = array<i32>} : memref<8x128xf32, #tpu.memory_space<vmem>>, vector<8x32xf32>,
    %c0_50 = arith.constant 0 : index
    %c0_51 = arith.constant 0 : index
    %129 = vector.load %arg12[%c0_50, %c0_51] : memref<8x128xf32, #tpu.memory_space<vmem>>, vector<8x128xf32>
    %130 = arith.truncf %129 : vector<8x128xf32> to vector<8x128xbf16>
    %c0_52 = arith.constant 0 : index
    %c0_53 = arith.constant 0 : index
    %131 = vector.load %arg8[%c0_52, %c0_53] : memref<128x128xbf16, #tpu.memory_space<vmem>>, vector<128x128xbf16>
    %cst_54 = arith.constant dense<0.000000e+00> : vector<8x128xf32>
    %132 = tpu.matmul %130, %131, %cst_54 {dimension_numbers = #tpu.dot_dimension_numbers<[1], [0], [0], [1], [0, 0, 1, 1], [], []>} : vector<8x128xbf16>, vector<128x128xbf16>, vector<8x128xf32> -> vector<8x128xf32>
    %133 = arith.addf %2, %132 : vector<8x128xf32>
    %134 = arith.mulf %133, %133 : vector<8x128xf32>
    %cst_55 = arith.constant dense<0.000000e+00> : vector<8xf32>
    %135 = vector.multi_reduction <add>, %134, %cst_55 [1] : vector<8x128xf32> to vector<8xf32>
    %136 = vector.shape_cast %135 : vector<8xf32> to vector<8x1xf32>
    %cst_56 = arith.constant 1.280000e+02 : f32
    %137 = vector.broadcast %cst_56 : f32 to vector<8x1xf32>
    %138 = arith.divf %136, %137 : vector<8x1xf32>
    %cst_57 = arith.constant 9.99999997E-7 : f32
    %139 = vector.broadcast %cst_57 : f32 to vector<8x1xf32>
    %140 = arith.addf %138, %139 : vector<8x1xf32>
    %141 = math.rsqrt %140 : vector<8x1xf32>
    %142 = vector.broadcast %141 : vector<8x1xf32> to vector<8x128xf32>
    %143 = arith.mulf %133, %142 : vector<8x128xf32>
    %c0_58 = arith.constant 0 : index
    %c0_59 = arith.constant 0 : index
    %144 = vector.load %arg6[%c0_58, %c0_59] : memref<1x128xbf16, #tpu.memory_space<vmem>>, vector<1x128xbf16>
    %145 = arith.extf %144 : vector<1x128xbf16> to vector<1x128xf32>
    %146 = vector.broadcast %145 : vector<1x128xf32> to vector<8x128xf32>
    %147 = arith.mulf %143, %146 : vector<8x128xf32>
    %148 = arith.truncf %147 : vector<8x128xf32> to vector<8x128xbf16>
    %c0_60 = arith.constant 0 : index
    %c0_61 = arith.constant 0 : index
    %149 = vector.load %arg9[%c0_60, %c0_61] : memref<128x512xbf16, #tpu.memory_space<vmem>>, vector<128x512xbf16>
    %cst_62 = arith.constant dense<0.000000e+00> : vector<8x512xf32>
    %150 = tpu.matmul %148, %149, %cst_62 {dimension_numbers = #tpu.dot_dimension_numbers<[1], [0], [0], [1], [0, 0, 1, 1], [], []>} : vector<8x128xbf16>, vector<128x512xbf16>, vector<8x512xf32> -> vector<8x512xf32>
    %151 = vector.extract_strided_slice %150 {offsets = [0, 0], sizes = [8, 256], strides = [1, 1]} : vector<8x512xf32> to vector<8x256xf32>
    %152 = vector.extract_strided_slice %150 {offsets = [0, 256], sizes = [8, 256], strides = [1, 1]} : vector<8x512xf32> to vector<8x256xf32>
    %153 = arith.negf %151 : vector<8x256xf32>
    %154 = math.exp %153 : vector<8x256xf32>
    %cst_63 = arith.constant 1.000000e+00 : f32
    %155 = vector.broadcast %cst_63 : f32 to vector<8x256xf32>
    %156 = arith.addf %155, %154 : vector<8x256xf32>
    %157 = arith.divf %155, %156 : vector<8x256xf32>
    %158 = arith.mulf %151, %157 : vector<8x256xf32>
    %159 = arith.mulf %158, %152 : vector<8x256xf32>
    %160 = arith.truncf %159 : vector<8x256xf32> to vector<8x256xbf16>
    %c0_64 = arith.constant 0 : index
    %c0_65 = arith.constant 0 : index
    %161 = vector.load %arg10[%c0_64, %c0_65] : memref<256x128xbf16, #tpu.memory_space<vmem>>, vector<256x128xbf16>
    %cst_66 = arith.constant dense<0.000000e+00> : vector<8x128xf32>
    %162 = tpu.matmul %160, %161, %cst_66 {dimension_numbers = #tpu.dot_dimension_numbers<[1], [0], [0], [1], [0, 0, 1, 1], [], []>} : vector<8x256xbf16>, vector<256x128xbf16>, vector<8x128xf32> -> vector<8x128xf32>
    %163 = arith.addf %133, %162 : vector<8x128xf32>
    %164 = arith.truncf %163 : vector<8x128xf32> to vector<8x128xbf16>
    %c0_67 = arith.constant 0 : index
    %c0_68 = arith.constant 0 : index
    %c0_69 = arith.constant 0 : index
    %165 = vector.load %arg11[%c0_67, %c0_68, %c0_69] : memref<1x8x128xbf16, #tpu.memory_space<vmem>>, vector<1x8x128xbf16>
    %166 = vector.shape_cast %165 : vector<1x8x128xbf16> to vector<8x128xbf16>
    %167 = vector.shape_cast %164 : vector<8x128xbf16> to vector<1x8x128xbf16>
    tpu.vector_store %arg11[%c0_67, %c0_68, %c0_69], %167 {strides = array<i32>} : memref<1x8x128xbf16, #tpu.memory_space<vmem>>, vector<1x8x128xbf16>,
    return
  }
  func.func @transform_0(%arg0: i32) -> (i32, i32, i32) {
    %c0_i32 = arith.constant 0 : i32
    %c0_i32_0 = arith.constant 0 : i32
    %c0_i32_1 = arith.constant 0 : i32
    return %arg0, %c0_i32, %c0_i32_0 : i32, i32, i32
  }
  func.func @transform_1(%arg0: i32) -> (i32, i32, i32) {
    %c0_i32 = arith.constant 0 : i32
    %c0_i32_0 = arith.constant 0 : i32
    %c0_i32_1 = arith.constant 0 : i32
    return %arg0, %c0_i32, %c0_i32_0 : i32, i32, i32
  }
  func.func @transform_2(%arg0: i32) -> (i32, i32, i32) {
    %c0_i32 = arith.constant 0 : i32
    %c0_i32_0 = arith.constant 0 : i32
    %c0_i32_1 = arith.constant 0 : i32
    return %arg0, %c0_i32, %c0_i32_0 : i32, i32, i32
  }
  func.func @transform_3(%arg0: i32) -> (i32, i32) {
    %c0_i32 = arith.constant 0 : i32
    %c0_i32_0 = arith.constant 0 : i32
    %c0_i32_1 = arith.constant 0 : i32
    return %c0_i32, %c0_i32_0 : i32, i32
  }
  func.func @transform_4(%arg0: i32) -> (i32, i32) {
    %c0_i32 = arith.constant 0 : i32
    %c0_i32_0 = arith.constant 0 : i32
    %c0_i32_1 = arith.constant 0 : i32
    return %c0_i32, %c0_i32_0 : i32, i32
  }
  func.func @transform_5(%arg0: i32) -> (i32, i32) {
    %c0_i32 = arith.constant 0 : i32
    %c0_i32_0 = arith.constant 0 : i32
    %c0_i32_1 = arith.constant 0 : i32
    return %c0_i32, %c0_i32_0 : i32, i32
  }
  func.func @transform_6(%arg0: i32) -> (i32, i32) {
    %c0_i32 = arith.constant 0 : i32
    %c0_i32_0 = arith.constant 0 : i32
    %c0_i32_1 = arith.constant 0 : i32
    return %c0_i32, %c0_i32_0 : i32, i32
  }
  func.func @transform_7(%arg0: i32) -> (i32, i32) {
    %c0_i32 = arith.constant 0 : i32
    %c0_i32_0 = arith.constant 0 : i32
    %c0_i32_1 = arith.constant 0 : i32
    return %c0_i32, %c0_i32_0 : i32, i32
  }
  func.func @transform_8(%arg0: i32) -> (i32, i32) {
    %c0_i32 = arith.constant 0 : i32
    %c0_i32_0 = arith.constant 0 : i32
    %c0_i32_1 = arith.constant 0 : i32
    return %c0_i32, %c0_i32_0 : i32, i32
  }
  func.func @transform_9(%arg0: i32) -> (i32, i32) {
    %c0_i32 = arith.constant 0 : i32
    %c0_i32_0 = arith.constant 0 : i32
    %c0_i32_1 = arith.constant 0 : i32
    return %c0_i32, %c0_i32_0 : i32, i32
  }
  func.func @transform_10(%arg0: i32) -> (i32, i32, i32) {
    %c0_i32 = arith.constant 0 : i32
    %c0_i32_0 = arith.constant 0 : i32
    %c0_i32_1 = arith.constant 0 : i32
    return %arg0, %c0_i32, %c0_i32_0 : i32, i32, i32
  }
}

</mosaic_0001>

<llo_original>
// kernel: tile.18
$region0: #{tile.18}
  %s0 = inlined_call_operand.vmem [shape: f32[16,4,32], index: 0, kind: input, shape index: {}]
  %s1 = inlined_call_operand.vmem [shape: f32[2,8,128], index: 1, kind: output, shape index: {}]
  $region1: #{tile.18} parent=0
    #allocation0 [shape = 'u8[65536]{0}', space=vmem, size = 0x10000, scoped, tag = 'scoped mem for input reshape']
    %s3 = sshllo.u32 0, 4
    %s4 = smul.addr 4, 15
    %s5 = scalar_lea.vmem %s0, %s4
    %v6 = vld [vmem:[%s5] sm:%s3]
    %s7 = scalar_lea.vmem [#allocation0], 120
    %8 = vst [vmem:[%s7] sm:%s3] %v6
    %s9 = smul.addr 4, 14
    %s10 = scalar_lea.vmem %s0, %s9
    %v11 = vld [vmem:[%s10] sm:%s3]
    %s12 = scalar_lea.vmem [#allocation0], 112
    %13 = vst [vmem:[%s12] sm:%s3] %v11
    %s14 = smul.addr 4, 13
    %s15 = scalar_lea.vmem %s0, %s14
    %v16 = vld [vmem:[%s15] sm:%s3]
    %s17 = scalar_lea.vmem [#allocation0], 104
    %18 = vst [vmem:[%s17] sm:%s3] %v16
    %s19 = smul.addr 4, 12
    %s20 = scalar_lea.vmem %s0, %s19
    %v21 = vld [vmem:[%s20] sm:%s3]
    %s22 = scalar_lea.vmem [#allocation0], 96
    %23 = vst [vmem:[%s22] sm:%s3] %v21
    %s24 = smul.addr 4, 11
    %s25 = scalar_lea.vmem %s0, %s24
    %v26 = vld [vmem:[%s25] sm:%s3]
    %s27 = scalar_lea.vmem [#allocation0], 88
    %28 = vst [vmem:[%s27] sm:%s3] %v26
    %s29 = smul.addr 4, 10
    %s30 = scalar_lea.vmem %s0, %s29
    %v31 = vld [vmem:[%s30] sm:%s3]
    %s32 = scalar_lea.vmem [#allocation0], 80
    %33 = vst [vmem:[%s32] sm:%s3] %v31
    %s34 = smul.addr 4, 9
    %s35 = scalar_lea.vmem %s0, %s34
    %v36 = vld [vmem:[%s35] sm:%s3]
    %s37 = scalar_lea.vmem [#allocation0], 72
    %38 = vst [vmem:[%s37] sm:%s3] %v36
    %s39 = smul.addr 4, 8
    %s40 = scalar_lea.vmem %s0, %s39
    %v41 = vld [vmem:[%s40] sm:%s3]
    %s42 = scalar_lea.vmem [#allocation0], 64
    %43 = vst [vmem:[%s42] sm:%s3] %v41
    %s44 = smul.addr 4, 7
    %s45 = scalar_lea.vmem %s0, %s44
    %v46 = vld [vmem:[%s45] sm:%s3]
    %s47 = scalar_lea.vmem [#allocation0], 56
    %48 = vst [vmem:[%s47] sm:%s3] %v46
    %s49 = smul.addr 4, 6
    %s50 = scalar_lea.vmem %s0, %s49
    %v51 = vld [vmem:[%s50] sm:%s3]
    %s52 = scalar_lea.vmem [#allocation0], 48
    %53 = vst [vmem:[%s52] sm:%s3] %v51
    %s54 = smul.addr 4, 5
    %s55 = scalar_lea.vmem %s0, %s54
    %v56 = vld [vmem:[%s55] sm:%s3]
    %s57 = scalar_lea.vmem [#allocation0], 40
    %58 = vst [vmem:[%s57] sm:%s3] %v56
    %s59 = smul.addr 4, 4
    %s60 = scalar_lea.vmem %s0, %s59
    %v61 = vld [vmem:[%s60] sm:%s3]
    %s62 = scalar_lea.vmem [#allocation0], 32
    %63 = vst [vmem:[%s62] sm:%s3] %v61
    %s64 = smul.addr 4, 3
    %s65 = scalar_lea.vmem %s0, %s64
    %v66 = vld [vmem:[%s65] sm:%s3]
    %s67 = scalar_lea.vmem [#allocation0], 24
    %68 = vst [vmem:[%s67] sm:%s3] %v66
    %s69 = smul.addr 4, 2
    %s70 = scalar_lea.vmem %s0, %s69
    %v71 = vld [vmem:[%s70] sm:%s3]
    %s72 = scalar_lea.vmem [#allocation0], 16
    %73 = vst [vmem:[%s72] sm:%s3] %v71
    %s74 = scalar_lea.vmem %s0, 4
    %v75 = vld [vmem:[%s74] sm:%s3]
    %s76 = scalar_lea.vmem [#allocation0], 8
    %77 = vst [vmem:[%s76] sm:%s3] %v75
    %v78 = vld [vmem:[%s0] sm:%s3]
    %79 = vst [vmem:[#allocation0] sm:%s3] %v78
    %v80 = vld [vmem:[#allocation0] ss:$8 sm:$0xf]
    %v81 = vld [vmem:[#allocation0] ss:$8 sm:$0xf0]
    %vm82 = vcmask 1047556
    %v83 = vsel %vm82, %v81, %v80
    %vm84 = vcmask 261120
    %85 = vst.msk [vmem:[%s1] sm:$0xff] %vm84, %v83
    %s86 = scalar_lea.vmem [#allocation0], 64
    %v87 = vld [vmem:[%s86] ss:$8 sm:$0xf]
    %s88 = scalar_lea.vmem [#allocation0], 64
    %v89 = vld [vmem:[%s88] ss:$8 sm:$0xf0]
    %vm90 = vcmask 1047556
    %v91 = vsel %vm90, %v89, %v87
    %vm92 = vcmask 261120
    %s93 = scalar_lea.vmem %s1, 8
    %94 = vst.msk [vmem:[%s93] sm:$0xff] %vm92, %v91
    %s95 = scalar_lea.vmem [#allocation0], 3
    %v96 = vld [vmem:[%s95] ss:$8 sm:$0xf]
    %s97 = scalar_lea.vmem [#allocation0], 3
    %v98 = vld [vmem:[%s97] ss:$8 sm:$0xf0]
    %vm99 = vcmask 1047556
    %v100 = vsel %vm99, %v98, %v96
    %101 = vrot.lane.b32.xlu0 %v100, 96
    %v102 = vpop.permute.xlu0 %101
    %vm103 = vcmask 1048320
    %104 = vst.msk [vmem:[%s1] sm:$0xff] %vm103, %v102
    %s105 = scalar_lea.vmem [#allocation0], 67
    %v106 = vld [vmem:[%s105] ss:$8 sm:$0xf]
    %s107 = scalar_lea.vmem [#allocation0], 67
    %v108 = vld [vmem:[%s107] ss:$8 sm:$0xf0]
    %vm109 = vcmask 1047556
    %v110 = vsel %vm109, %v108, %v106
    %111 = vrot.lane.b32.xlu0 %v110, 96
    %v112 = vpop.permute.xlu0 %111
    %vm113 = vcmask 1048320
    %s114 = scalar_lea.vmem %s1, 8
    %115 = vst.msk [vmem:[%s114] sm:$0xff] %vm113, %v112
    %s116 = scalar_lea.vmem [#allocation0], 2
    %v117 = vld [vmem:[%s116] ss:$8 sm:$0xf]
    %s118 = scalar_lea.vmem [#allocation0], 2
    %v119 = vld [vmem:[%s118] ss:$8 sm:$0xf0]
    %vm120 = vcmask 1047556
    %v121 = vsel %vm120, %v119, %v117
    %122 = vrot.lane.b32.xlu0 %v121, 64
    %v123 = vpop.permute.xlu0 %122
    %vm124 = vcmask 785920
    %125 = vst.msk [vmem:[%s1] sm:$0xff] %vm124, %v123
    %s126 = scalar_lea.vmem [#allocation0], 66
    %v127 = vld [vmem:[%s126] ss:$8 sm:$0xf]
    %s128 = scalar_lea.vmem [#allocation0], 66
    %v129 = vld [vmem:[%s128] ss:$8 sm:$0xf0]
    %vm130 = vcmask 1047556
    %v131 = vsel %vm130, %v129, %v127
    %132 = vrot.lane.b32.xlu0 %v131, 64
    %v133 = vpop.permute.xlu0 %132
    %vm134 = vcmask 785920
    %s135 = scalar_lea.vmem %s1, 8
    %136 = vst.msk [vmem:[%s135] sm:$0xff] %vm134, %v133
    %s137 = scalar_lea.vmem [#allocation0], 1
    %v138 = vld [vmem:[%s137] ss:$8 sm:$0xf]
    %s139 = scalar_lea.vmem [#allocation0], 1
    %v140 = vld [vmem:[%s139] ss:$8 sm:$0xf0]
    %vm141 = vcmask 1047556
    %v142 = vsel %vm141, %v140, %v138
    %143 = vrot.lane.b32.xlu0 %v142, 32
    %v144 = vpop.permute.xlu0 %143
    %vm145 = vcmask 523520
    %146 = vst.msk [vmem:[%s1] sm:$0xff] %vm145, %v144
    %s147 = scalar_lea.vmem [#allocation0], 65
    %v148 = vld [vmem:[%s147] ss:$8 sm:$0xf]
    %s149 = scalar_lea.vmem [#allocation0], 65
    %v150 = vld [vmem:[%s149] ss:$8 sm:$0xf0]
    %vm151 = vcmask 1047556
    %v152 = vsel %vm151, %v150, %v148
    %153 = vrot.lane.b32.xlu0 %v152, 32
    %v154 = vpop.permute.xlu0 %153
    %vm155 = vcmask 523520
    %s156 = scalar_lea.vmem %s1, 8
    %157 = vst.msk [vmem:[%s156] sm:$0xff] %vm155, %v154

// kernel: llama_embedding_forward.5
$region0: #{llama_embedding_forward.5}
  #allocation0 [shape = 'u32[]', space=smem, size = 0x4, offset = 0x4, fixed_abs, tag = 'smem constant byte address 0x4 - core index']
  #allocation1 [shape = 'u32[144,128]{1,0:T(1,128)}', space=vmem, size = 0x12000, scoped, tag = 'internal scratch']
  %s0 = inlined_call_operand.vmem [shape: bf16[2,128], index: 0, kind: input, shape index: {}]
  %s1 = inlined_call_operand.vmem [shape: bf16[1,128], index: 1, kind: input, shape index: {}]
  %s2 = inlined_call_operand.hbm [shape: f32[2,128], index: 2, kind: output, shape index: {}]
  %s3 = sld [smem:[#allocation0]]
  $region18: #{llama_embedding_forward.5} parent=0
    _
  %s5 = ssub.s32 1, %s3
  %s6 = scalar_select 0, %s5, %s3
  $region1: #{llama_embedding_forward.5} parent=0
    #allocation2 [shape = 'u8[1024]{0}', space=vmem, size = 0x400, scoped, tag = 'output window, operand 0, single buffered']
    #allocation3 [shape = 's32[1]{0}', space=sflag, size = 0x4, scoped, tag = 'scoped memory for llama_embedding_forward.5']
    %7 = vsyncpa [#allocation3], 0
    // Predicated region
    $region2: #{llama_embedding_forward.5} parent=1 // pred_check
      _
    $region3: #{llama_embedding_forward.5} parent=1 // pred_check_branch
      %9 = sbr.rel (0) target = $region5
    $region4: #{llama_embedding_forward.5} parent=1 // pred_region
      _
    $region5: #{llama_embedding_forward.5} parent=1 // pred_fallthru
      _
    // Predicated region
    $region6: #{llama_embedding_forward.5} parent=1 // pred_check
      _
    $region7: #{llama_embedding_forward.5} parent=1 // pred_check_branch
      %11 = sbr.rel (0) target = $region9
    $region8: #{llama_embedding_forward.5} parent=1 // pred_region
      _
    $region9: #{llama_embedding_forward.5} parent=1 // pred_fallthru
      _
    %v12 = vld [vmem:[%s0] sm:$0x1]
    %v13 = vunpack.c.l.bf16 %v12
    %v14 = vmul.f32 %v13, %v13
    %vm15 = vcmask 1041408
    %v16 = vsel %vm15, %v14, 0.0
    %17 = vadd.xlane.f32.xlu0 %v16
    %v18 = vpop.xlane.xlu0 %17
    %v19 = vrcp.pop 128.0
    %v20 = vmul.f32 %v18, %v19
    %v21 = vadd.f32 %v20, 1e-06
    %v22 = vrsqrt.pop %v21
    %v23 = vmul.f32 %v13, %v22
    %v24 = vld [vmem:[%s1] sm:$0x1]
    %v25 = vunpack.c.l.bf16 %v24
    %v26 = vlaneseq
    %v27 = vshrl.u32 %v26, 7
    %v28 = vsub.s32 0, %v27
    %v29 = vrot.slane %v25, %v28
    %v30 = vmul.f32 %v23, %v29
    %v31 = vmul.f32 %v30, %v30
    %v32 = vsel %vm15, %v31, 0.0
    %33 = vadd.xlane.f32.xlu0 %v32
    %v34 = vpop.xlane.xlu0 %33
    %v35 = vmax.f32 %v34, 1e-24
    %v36 = vrsqrt.pop %v35
    %v37 = vmul.f32 %v30, %v36
    %38 = vst [vmem:[#allocation2] sm:$0x3] %v37
    // Predicated region
    $region10: #{llama_embedding_forward.5} parent=1 // pred_check
      _
    $region11: #{llama_embedding_forward.5} parent=1 // pred_check_branch
      %40 = sbr.rel (0) target = $region13
    $region12: #{llama_embedding_forward.5} parent=1 // pred_region
      %s42 = ssub.s32 32, 32
      %43 = vsyncadd [#allocation3], %s42
      %s45 = sshll.u32 [#allocation2], 4
      %s46 = int_to_ptr.vmem [resolvable:$true] %s45
      %48 = dma.vmem_to_hbm [thread:$0]  %s46, 32, %s2, [#allocation3]
    $region13: #{llama_embedding_forward.5} parent=1 // pred_fallthru
      _
    // Predicated region
    $region14: #{llama_embedding_forward.5} parent=1 // pred_check
      _
    $region15: #{llama_embedding_forward.5} parent=1 // pred_check_branch
      %50 = sbr.rel (0) target = $region17
    $region16: #{llama_embedding_forward.5} parent=1 // pred_region
      %51 = dma.done [#allocation3], 32
    $region17: #{llama_embedding_forward.5} parent=1 // pred_fallthru
      _
    %52 = vsyncpa [#allocation3], 1

// kernel: llama_embedding_forward.3
$region0: #{llama_embedding_forward.3}
  #allocation0 [shape = 'u32[]', space=smem, size = 0x4, offset = 0x4, fixed_abs, tag = 'smem constant byte address 0x4 - core index']
  #allocation1 [shape = 'u32[144,128]{1,0:T(1,128)}', space=vmem, size = 0x12000, scoped, tag = 'internal scratch']
  #allocation2 [shape = 'f32[8,128]{1,0:T(8,128)}', space=vmem, size = 0x1000, scoped, tag = 'scratch operand']
  %s0 = inlined_call_operand.vmem [shape: bf16[2,8,128], index: 0, kind: input, shape index: {}]
  %s1 = inlined_call_operand.vmem [shape: f32[2,8,128], index: 1, kind: input, shape index: {}]
  %s2 = inlined_call_operand.vmem [shape: f32[2,8,128], index: 2, kind: input, shape index: {}]
  %s3 = inlined_call_operand.vmem [shape: bf16[128,128], index: 3, kind: input, shape index: {}]
  %s4 = inlined_call_operand.vmem [shape: bf16[1,128], index: 4, kind: input, shape index: {}]
  %s5 = inlined_call_operand.vmem [shape: bf16[1,128], index: 5, kind: input, shape index: {}]
  %s6 = inlined_call_operand.vmem [shape: bf16[128,384], index: 6, kind: input, shape index: {}]
  %s7 = inlined_call_operand.hbm [shape: bf16[128,128], index: 7, kind: input, shape index: {}]
  %s8 = inlined_call_operand.vmem [shape: bf16[128,512], index: 8, kind: input, shape index: {}]
  %s9 = inlined_call_operand.hbm [shape: bf16[256,128], index: 9, kind: input, shape index: {}]
  %s10 = inlined_call_operand.vmem [shape: bf16[2,8,128], index: 10, kind: output, shape index: {}]
  %s11 = sld [smem:[#allocation0]]
  $region81: #{llama_embedding_forward.3} parent=0
    _
  %s13 = ssub.s32 1, %s11
  %s14 = scalar_select 0, %s13, %s11
  $region1: #{llama_embedding_forward.3} parent=0
    #allocation3 [shape = 'u8[32768]{0}', space=vmem, size = 0x8000, scoped, tag = 'input window, operand 7, single buffered']
    #allocation4 [shape = 's32[2]{0}', space=sflag, size = 0x8, scoped, tag = 'scoped memory for llama_embedding_forward.3']
    #allocation5 [shape = 'u8[65536]{0}', space=vmem, size = 0x10000, scoped, tag = 'input window, operand 9, single buffered']
    #allocation6 [shape = 's32[1]{0}', space=sflag, size = 0x4, scoped, tag = 'scoped memory for llama_embedding_forward.3']
    %15 = vsyncpa [#allocation4], 0
    %16 = vsyncpa [#allocation6], 0
    loop: start=0, step=1, limit=4
    $region2: #{llama_embedding_forward.3} parent=1 // loop_pre_header
      _
    $region3: #{llama_embedding_forward.3} parent=1 // loop_header
      %s18 = sphi 0, %s22
      %p19 = scmp.ge.s32.totalorder %s18, 4
      %s28 = sphi 0, %s30
      %s31 = sphi 0, %s28
      %s32 = sphi 0, %s31
      %s48 = sphi 0, %s32
      %s54 = sphi 0, %s56
      %s57 = sphi 0, %s54
      %s58 = sphi 0, %s57
      %s74 = sphi 0, %s58
      %s80 = sphi 0, %s82
      %s83 = sphi 0, %s80
      %s84 = sphi 0, %s83
      %s100 = sphi 0, %s84
      %s104 = sphi 0, %s104
      %s106 = sphi 0, %s104
      %s107 = sphi 0, %s106
      %s121 = sphi 0, %s107
      %s125 = sphi 0, %s125
      %s127 = sphi 0, %s125
      %s128 = sphi 0, %s127
      %s142 = sphi 0, %s128
      %s146 = sphi 0, %s146
      %s148 = sphi 0, %s146
      %s149 = sphi 0, %s148
      %s163 = sphi 0, %s149
      %s167 = sphi 0, %s167
      %s169 = sphi 0, %s167
      %s170 = sphi 0, %s169
      %s184 = sphi 0, %s170
      %s188 = sphi 0, %s188
      %s190 = sphi 0, %s188
      %s191 = sphi 0, %s190
      %s205 = sphi 0, %s191
      %s209 = sphi 0, %s209
      %s211 = sphi 0, %s209
      %s212 = sphi 0, %s211
      %s226 = sphi 0, %s212
      %s230 = sphi 0, %s230
      %s232 = sphi 0, %s230
      %s233 = sphi 0, %s232
      %s247 = sphi 0, %s233
      %s253 = sphi 0, %s255
      %s256 = sphi 0, %s253
      %s257 = sphi 0, %s256
      %s273 = sphi 0, %s257
    $region4: #{llama_embedding_forward.3} parent=1 // loop_header_branch
      %21 = sbr.rel (%p19) target = $region8
    $region5: #{llama_embedding_forward.3} parent=1 // loop_body
      %s23 = ssub.s32 %s18, 1
      %s24 = ssub.s32 %s18, 2
      %s25 = sadd.s32 %s18, 1
      %s26 = ssub.s32 %s18, %s25
      %p27 = scmp.eq.s32.totalorder %s26, 0
      %s29 = sadd.s32 %s28, 1
      %s30 = scalar_select %p27, %s28, %s29
      %p33 = pneg %p27
      %p34 = scmp.eq.s32.totalorder %s18, 1
      %p35 = por %p33, %p34
      %p36 = scmp.ne.s32.totalorder %s28, %s31
      %p37 = scmp.eq.s32.totalorder %s18, 0
      %p38 = por %p36, %p37
      %p39 = scmp.ne.s32.totalorder %s28, %s31
      %p40 = scmp.eq.s32.totalorder %s23, 1
      %p41 = por %p39, %p40
      %p42 = scmp.ne.s32.totalorder %s31, %s32
      %p43 = scmp.eq.s32.totalorder %s23, 0
      %p44 = por %p42, %p43
      %p45 = scmp.ne.s32.totalorder %s31, %s32
      %p46 = scmp.eq.s32.totalorder %s24, 1
      %p47 = por %p45, %p46
      %p49 = scmp.ne.s32.totalorder %s32, %s48
      %p50 = scmp.eq.s32.totalorder %s24, 0
      %p51 = por %p49, %p50
      %s52 = ssub.s32 %s18, %s25
      %p53 = scmp.eq.s32.totalorder %s52, 0
      %s55 = sadd.s32 %s54, 1
      %s56 = scalar_select %p53, %s54, %s55
      %p59 = pneg %p53
      %p60 = scmp.eq.s32.totalorder %s18, 1
      %p61 = por %p59, %p60
      %p62 = scmp.ne.s32.totalorder %s54, %s57
      %p63 = scmp.eq.s32.totalorder %s18, 0
      %p64 = por %p62, %p63
      %p65 = scmp.ne.s32.totalorder %s54, %s57
      %p66 = scmp.eq.s32.totalorder %s23, 1
      %p67 = por %p65, %p66
      %p68 = scmp.ne.s32.totalorder %s57, %s58
      %p69 = scmp.eq.s32.totalorder %s23, 0
      %p70 = por %p68, %p69
      %p71 = scmp.ne.s32.totalorder %s57, %s58
      %p72 = scmp.eq.s32.totalorder %s24, 1
      %p73 = por %p71, %p72
      %p75 = scmp.ne.s32.totalorder %s58, %s74
      %p76 = scmp.eq.s32.totalorder %s24, 0
      %p77 = por %p75, %p76
      %s78 = ssub.s32 %s18, %s25
      %p79 = scmp.eq.s32.totalorder %s78, 0
      %s81 = sadd.s32 %s80, 1
      %s82 = scalar_select %p79, %s80, %s81
      %p85 = pneg %p79
      %p86 = scmp.eq.s32.totalorder %s18, 1
      %p87 = por %p85, %p86
      %p88 = scmp.ne.s32.totalorder %s80, %s83
      %p89 = scmp.eq.s32.totalorder %s18, 0
      %p90 = por %p88, %p89
      %p91 = scmp.ne.s32.totalorder %s80, %s83
      %p92 = scmp.eq.s32.totalorder %s23, 1
      %p93 = por %p91, %p92
      %p94 = scmp.ne.s32.totalorder %s83, %s84
      %p95 = scmp.eq.s32.totalorder %s23, 0
      %p96 = por %p94, %p95
      %p97 = scmp.ne.s32.totalorder %s83, %s84
      %p98 = scmp.eq.s32.totalorder %s24, 1
      %p99 = por %p97, %p98
      %p101 = scmp.ne.s32.totalorder %s84, %s100
      %p102 = scmp.eq.s32.totalorder %s24, 0
      %p103 = por %p101, %p102
      %s105 = sadd.s32 %s104, 1
      %p108 = scmp.eq.s32.totalorder %s18, 1
      %p109 = scmp.ne.s32.totalorder %s104, %s106
      %p110 = scmp.eq.s32.totalorder %s18, 0
      %p111 = por %p109, %p110
      %p112 = scmp.ne.s32.totalorder %s104, %s106
      %p113 = scmp.eq.s32.totalorder %s23, 1
      %p114 = por %p112, %p113
      %p115 = scmp.ne.s32.totalorder %s106, %s107
      %p116 = scmp.eq.s32.totalorder %s23, 0
      %p117 = por %p115, %p116
      %p118 = scmp.ne.s32.totalorder %s106, %s107
      %p119 = scmp.eq.s32.totalorder %s24, 1
      %p120 = por %p118, %p119
      %p122 = scmp.ne.s32.totalorder %s107, %s121
      %p123 = scmp.eq.s32.totalorder %s24, 0
      %p124 = por %p122, %p123
      %s126 = sadd.s32 %s125, 1
      %p129 = scmp.eq.s32.totalorder %s18, 1
      %p130 = scmp.ne.s32.totalorder %s125, %s127
      %p131 = scmp.eq.s32.totalorder %s18, 0
      %p132 = por %p130, %p131
      %p133 = scmp.ne.s32.totalorder %s125, %s127
      %p134 = scmp.eq.s32.totalorder %s23, 1
      %p135 = por %p133, %p134
      %p136 = scmp.ne.s32.totalorder %s127, %s128
      %p137 = scmp.eq.s32.totalorder %s23, 0
      %p138 = por %p136, %p137
      %p139 = scmp.ne.s32.totalorder %s127, %s128
      %p140 = scmp.eq.s32.totalorder %s24, 1
      %p141 = por %p139, %p140
      %p143 = scmp.ne.s32.totalorder %s128, %s142
      %p144 = scmp.eq.s32.totalorder %s24, 0
      %p145 = por %p143, %p144
      %s147 = sadd.s32 %s146, 1
      %p150 = scmp.eq.s32.totalorder %s18, 1
      %p151 = scmp.ne.s32.totalorder %s146, %s148
      %p152 = scmp.eq.s32.totalorder %s18, 0
      %p153 = por %p151, %p152
      %p154 = scmp.ne.s32.totalorder %s146, %s148
      %p155 = scmp.eq.s32.totalorder %s23, 1
      %p156 = por %p154, %p155
      %p157 = scmp.ne.s32.totalorder %s148, %s149
      %p158 = scmp.eq.s32.totalorder %s23, 0
      %p159 = por %p157, %p158
      %p160 = scmp.ne.s32.totalorder %s148, %s149
      %p161 = scmp.eq.s32.totalorder %s24, 1
      %p162 = por %p160, %p161
      %p164 = scmp.ne.s32.totalorder %s149, %s163
      %p165 = scmp.eq.s32.totalorder %s24, 0
      %p166 = por %p164, %p165
      %s168 = sadd.s32 %s167, 1
      %p171 = scmp.eq.s32.totalorder %s18, 1
      %p172 = scmp.ne.s32.totalorder %s167, %s169
      %p173 = scmp.eq.s32.totalorder %s18, 0
      %p174 = por %p172, %p173
      %p175 = scmp.ne.s32.totalorder %s167, %s169
      %p176 = scmp.eq.s32.totalorder %s23, 1
      %p177 = por %p175, %p176
      %p178 = scmp.ne.s32.totalorder %s169, %s170
      %p179 = scmp.eq.s32.totalorder %s23, 0
      %p180 = por %p178, %p179
      %p181 = scmp.ne.s32.totalorder %s169, %s170
      %p182 = scmp.eq.s32.totalorder %s24, 1
      %p183 = por %p181, %p182
      %p185 = scmp.ne.s32.totalorder %s170, %s184
      %p186 = scmp.eq.s32.totalorder %s24, 0
      %p187 = por %p185, %p186
      %s189 = sadd.s32 %s188, 1
      %p192 = scmp.eq.s32.totalorder %s18, 1
      %p193 = scmp.ne.s32.totalorder %s188, %s190
      %p194 = scmp.eq.s32.totalorder %s18, 0
      %p195 = por %p193, %p194
      %p196 = scmp.ne.s32.totalorder %s188, %s190
      %p197 = scmp.eq.s32.totalorder %s23, 1
      %p198 = por %p196, %p197
      %p199 = scmp.ne.s32.totalorder %s190, %s191
      %p200 = scmp.eq.s32.totalorder %s23, 0
      %p201 = por %p199, %p200
      %p202 = scmp.ne.s32.totalorder %s190, %s191
      %p203 = scmp.eq.s32.totalorder %s24, 1
      %p204 = por %p202, %p203
      %p206 = scmp.ne.s32.totalorder %s191, %s205
      %p207 = scmp.eq.s32.totalorder %s24, 0
      %p208 = por %p206, %p207
      %s210 = sadd.s32 %s209, 1
      %p213 = scmp.eq.s32.totalorder %s18, 1
      %p214 = scmp.ne.s32.totalorder %s209, %s211
      %p215 = scmp.eq.s32.totalorder %s18, 0
      %p216 = por %p214, %p215
      %p217 = scmp.ne.s32.totalorder %s209, %s211
      %p218 = scmp.eq.s32.totalorder %s23, 1
      %p219 = por %p217, %p218
      %p220 = scmp.ne.s32.totalorder %s211, %s212
      %p221 = scmp.eq.s32.totalorder %s23, 0
      %p222 = por %p220, %p221
      %p223 = scmp.ne.s32.totalorder %s211, %s212
      %p224 = scmp.eq.s32.totalorder %s24, 1
      %p225 = por %p223, %p224
      %p227 = scmp.ne.s32.totalorder %s212, %s226
      %p228 = scmp.eq.s32.totalorder %s24, 0
      %p229 = por %p227, %p228
      %s231 = sadd.s32 %s230, 1
      %p234 = scmp.eq.s32.totalorder %s18, 1
      %p235 = scmp.ne.s32.totalorder %s230, %s232
      %p236 = scmp.eq.s32.totalorder %s18, 0
      %p237 = por %p235, %p236
      %p238 = scmp.ne.s32.totalorder %s230, %s232
      %p239 = scmp.eq.s32.totalorder %s23, 1
      %p240 = por %p238, %p239
      %p241 = scmp.ne.s32.totalorder %s232, %s233
      %p242 = scmp.eq.s32.totalorder %s23, 0
      %p243 = por %p241, %p242
      %p244 = scmp.ne.s32.totalorder %s232, %s233
      %p245 = scmp.eq.s32.totalorder %s24, 1
      %p246 = por %p244, %p245
      %p248 = scmp.ne.s32.totalorder %s233, %s247
      %p249 = scmp.eq.s32.totalorder %s24, 0
      %p250 = por %p248, %p249
      %s251 = ssub.s32 %s18, %s25
      %p252 = scmp.eq.s32.totalorder %s251, 0
      %s254 = sadd.s32 %s253, 1
      %s255 = scalar_select %p252, %s253, %s254
      %p258 = pneg %p252
      %p259 = scmp.eq.s32.totalorder %s18, 1
      %p260 = por %p258, %p259
      %p261 = scmp.ne.s32.totalorder %s253, %s256
      %p262 = scmp.eq.s32.totalorder %s18, 0
      %p263 = por %p261, %p262
      %p264 = scmp.ne.s32.totalorder %s253, %s256
      %p265 = scmp.eq.s32.totalorder %s23, 1
      %p266 = por %p264, %p265
      %p267 = scmp.ne.s32.totalorder %s256, %s257
      %p268 = scmp.eq.s32.totalorder %s23, 0
      %p269 = por %p267, %p268
      %p270 = scmp.ne.s32.totalorder %s256, %s257
      %p271 = scmp.eq.s32.totalorder %s24, 1
      %p272 = por %p270, %p271
      %p274 = scmp.ne.s32.totalorder %s257, %s273
      %p275 = scmp.eq.s32.totalorder %s24, 0
      %p276 = por %p274, %p275
      %p277 = scmp.le.s32.totalorder 1, %s18
      %p278 = scmp.lt.s32.totalorder %s18, 3
      %p279 = pnand %p277, %p278
      %p280 = pneg %p279
      // Predicated region
      $region9: #{llama_embedding_forward.3} parent=5 // pred_check
        _
      $region10: #{llama_embedding_forward.3} parent=5 // pred_check_branch
        %282 = sbr.rel (%p279) target = $region12
      $region11: #{llama_embedding_forward.3} parent=5 // pred_region
        %s283 = ssub.s32 %s18, 1
        // Predicated region
        $region13: #{llama_embedding_forward.3} parent=11 // pred_check
          %p284 = pneg %p117
        $region14: #{llama_embedding_forward.3} parent=11 // pred_check_branch
          %286 = sbr.rel (%p284) target = $region16
        $region15: #{llama_embedding_forward.3} parent=11 // pred_region
          _
        $region16: #{llama_embedding_forward.3} parent=11 // pred_fallthru
          _
        // Predicated region
        $region17: #{llama_embedding_forward.3} parent=11 // pred_check
          %p287 = pneg %p138
        $region18: #{llama_embedding_forward.3} parent=11 // pred_check_branch
          %289 = sbr.rel (%p287) target = $region20
        $region19: #{llama_embedding_forward.3} parent=11 // pred_region
          _
        $region20: #{llama_embedding_forward.3} parent=11 // pred_fallthru
          _
        // Predicated region
        $region21: #{llama_embedding_forward.3} parent=11 // pred_check
          %p290 = pneg %p159
        $region22: #{llama_embedding_forward.3} parent=11 // pred_check_branch
          %292 = sbr.rel (%p290) target = $region24
        $region23: #{llama_embedding_forward.3} parent=11 // pred_region
          _
        $region24: #{llama_embedding_forward.3} parent=11 // pred_fallthru
          _
        // Predicated region
        $region25: #{llama_embedding_forward.3} parent=11 // pred_check
          %p293 = pneg %p180
        $region26: #{llama_embedding_forward.3} parent=11 // pred_check_branch
          %295 = sbr.rel (%p293) target = $region28
        $region27: #{llama_embedding_forward.3} parent=11 // pred_region
          _
        $region28: #{llama_embedding_forward.3} parent=11 // pred_fallthru
          _
        // Predicated region
        $region29: #{llama_embedding_forward.3} parent=11 // pred_check
          %p296 = pneg %p201
        $region30: #{llama_embedding_forward.3} parent=11 // pred_check_branch
          %298 = sbr.rel (%p296) target = $region32
        $region31: #{llama_embedding_forward.3} parent=11 // pred_region
          %s300 = ssub.s32 1024, 1024
          %301 = vsyncadd [#allocation4], %s300
          %s302 = sshll.u32 [#allocation3], 4
          %s303 = int_to_ptr.vmem [resolvable:$true] %s302
          %308 = dma.hbm_to_vmem [thread:$0]  %s7, 1024, %s303, [#allocation4], 64, 64, 4
        $region32: #{llama_embedding_forward.3} parent=11 // pred_fallthru
          _
        // Predicated region
        $region33: #{llama_embedding_forward.3} parent=11 // pred_check
          %p309 = pneg %p222
        $region34: #{llama_embedding_forward.3} parent=11 // pred_check_branch
          %311 = sbr.rel (%p309) target = $region36
        $region35: #{llama_embedding_forward.3} parent=11 // pred_region
          _
        $region36: #{llama_embedding_forward.3} parent=11 // pred_fallthru
          _
        // Predicated region
        $region37: #{llama_embedding_forward.3} parent=11 // pred_check
          %p312 = pneg %p243
        $region38: #{llama_embedding_forward.3} parent=11 // pred_check_branch
          %314 = sbr.rel (%p312) target = $region40
        $region39: #{llama_embedding_forward.3} parent=11 // pred_region
          %s316 = ssub.s32 2048, 2048
          %317 = vsyncadd [#allocation6], %s316
          %s318 = sshll.u32 [#allocation5], 4
          %s319 = int_to_ptr.vmem [resolvable:$true] %s318
          %324 = dma.hbm_to_vmem [thread:$0]  %s9, 2048, %s319, [#allocation6], 64, 64, 4
        $region40: #{llama_embedding_forward.3} parent=11 // pred_fallthru
          _
      $region12: #{llama_embedding_forward.3} parent=5 // pred_fallthru
        _
      %p325 = scmp.lt.s32.totalorder %s18, 2
      // Predicated region
      $region41: #{llama_embedding_forward.3} parent=5 // pred_check
        %p326 = pneg %p325
      $region42: #{llama_embedding_forward.3} parent=5 // pred_check_branch
        %328 = sbr.rel (%p326) target = $region44
      $region43: #{llama_embedding_forward.3} parent=5 // pred_region
        // Predicated region
        $region45: #{llama_embedding_forward.3} parent=43 // pred_check
          %p329 = pneg %p38
        $region46: #{llama_embedding_forward.3} parent=43 // pred_check_branch
          %331 = sbr.rel (%p329) target = $region48
        $region47: #{llama_embedding_forward.3} parent=43 // pred_region
          %p332 = scmp.lt.s32.totalorder %s18, 1
          %s333 = scalar_select %p332, %s18, 1
          %s334 = smul.addr %s333, 4
          %s335 = scalar_lea.vmem %s0, %s334
        $region48: #{llama_embedding_forward.3} parent=43 // pred_fallthru
          _
        // Predicated region
        $region49: #{llama_embedding_forward.3} parent=43 // pred_check
          %p336 = pneg %p64
        $region50: #{llama_embedding_forward.3} parent=43 // pred_check_branch
          %338 = sbr.rel (%p336) target = $region52
        $region51: #{llama_embedding_forward.3} parent=43 // pred_region
          %p339 = scmp.lt.s32.totalorder %s18, 1
          %s340 = scalar_select %p339, %s18, 1
          %s341 = smul.addr %s340, 8
          %s342 = scalar_lea.vmem %s1, %s341
        $region52: #{llama_embedding_forward.3} parent=43 // pred_fallthru
          _
        // Predicated region
        $region53: #{llama_embedding_forward.3} parent=43 // pred_check
          %p343 = pneg %p90
        $region54: #{llama_embedding_forward.3} parent=43 // pred_check_branch
          %345 = sbr.rel (%p343) target = $region56
        $region55: #{llama_embedding_forward.3} parent=43 // pred_region
          %p346 = scmp.lt.s32.totalorder %s18, 1
          %s347 = scalar_select %p346, %s18, 1
          %s348 = smul.addr %s347, 8
          %s349 = scalar_lea.vmem %s2, %s348
        $region56: #{llama_embedding_forward.3} parent=43 // pred_fallthru
          _
      $region44: #{llama_embedding_forward.3} parent=5 // pred_fallthru
        _
      %p350 = scmp.le.s32.totalorder 1, %s18
      %p351 = scmp.lt.s32.totalorder %s18, 3
      %p352 = pnand %p350, %p351
      %p353 = pneg %p352
      // Predicated region
      $region57: #{llama_embedding_forward.3} parent=5 // pred_check
        _
      $region58: #{llama_embedding_forward.3} parent=5 // pred_check_branch
        %355 = sbr.rel (%p352) target = $region60
      $region59: #{llama_embedding_forward.3} parent=5 // pred_region
        %s356 = ssub.s32 %s18, 1
        // Predicated region
        $region61: #{llama_embedding_forward.3} parent=59 // pred_check
          %p357 = pneg %p201
        $region62: #{llama_embedding_forward.3} parent=59 // pred_check_branch
          %359 = sbr.rel (%p357) target = $region64
        $region63: #{llama_embedding_forward.3} parent=59 // pred_region
          %360 = dma.done [#allocation4], 1024
        $region64: #{llama_embedding_forward.3} parent=59 // pred_fallthru
          _
        // Predicated region
        $region65: #{llama_embedding_forward.3} parent=59 // pred_check
          %p361 = pneg %p243
        $region66: #{llama_embedding_forward.3} parent=59 // pred_check_branch
          %363 = sbr.rel (%p361) target = $region68
        $region67: #{llama_embedding_forward.3} parent=59 // pred_region
          %364 = dma.done [#allocation6], 2048
        $region68: #{llama_embedding_forward.3} parent=59 // pred_fallthru
          _
        %p365 = scmp.lt.s32.totalorder %s23, 1
        %s366 = scalar_select %p365, %s23, 1
        %s367 = smul.addr %s366, 4
        %s368 = scalar_lea.vmem %s0, %s367
        %p369 = pneg %p44
        %p370 = pneg %p41
        %p371 = scmp.lt.s32.totalorder %s23, 1
        %s372 = scalar_select %p371, %s23, 1
        %s373 = smul.addr %s372, 8
        %s374 = scalar_lea.vmem %s1, %s373
        %p375 = pneg %p70
        %p376 = pneg %p67
        %p377 = scmp.lt.s32.totalorder %s23, 1
        %s378 = scalar_select %p377, %s23, 1
        %s379 = smul.addr %s378, 8
        %s380 = scalar_lea.vmem %s2, %s379
        %p381 = pneg %p96
        %p382 = pneg %p93
        %p383 = pneg %p117
        %p384 = pneg %p114
        %p385 = pneg %p138
        %p386 = pneg %p135
        %p387 = pneg %p159
        %p388 = pneg %p156
        %p389 = pneg %p180
        %p390 = pneg %p177
        %p391 = pneg %p201
        %p392 = pneg %p198
        %p393 = pneg %p222
        %p394 = pneg %p219
        %p395 = pneg %p243
        %p396 = pneg %p240
        %p397 = pneg %p269
        %p398 = pneg %p266
        %p399 = scmp.lt.s32.totalorder %s23, 1
        %s400 = scalar_select %p399, %s23, 1
        %s401 = smul.addr %s400, 4
        %s402 = scalar_lea.vmem %s10, %s401
        %p403 = scmp.lt.s32.totalorder %s23, 1
        %s404 = scalar_select %p403, %s23, 1
        %s405 = smul.addr %s404, 4
        %s406 = scalar_lea.vmem %s0, %s405
        %p407 = scmp.lt.s32.totalorder %s23, 1
        %s408 = scalar_select %p407, %s23, 1
        %s409 = smul.addr %s408, 8
        %s410 = scalar_lea.vmem %s1, %s409
        %p411 = scmp.lt.s32.totalorder %s23, 1
        %s412 = scalar_select %p411, %s23, 1
        %s413 = smul.addr %s412, 8
        %s414 = scalar_lea.vmem %s2, %s413
        %p415 = scmp.lt.s32.totalorder %s23, 1
        %s416 = scalar_select %p415, %s23, 1
        %s417 = smul.addr %s416, 4
        %s418 = scalar_lea.vmem %s10, %s417
        %v420 = vld [vmem:[%s406] sm:$0xf]
        %v421 = vunpack.c.l.bf16 %v420
        %v422 = vmul.f32 %v421, %v421
        %423 = vadd.xlane.f32.xlu0 %v422
        %v424 = vpop.xlane.xlu0 %423
        %v425 = vrcp.pop 128.0
        %v426 = vmul.f32 %v424, %v425
        %v427 = vadd.f32 %v426, 1e-06
        %v428 = vrsqrt.pop %v427
        %v429 = vmul.f32 %v421, %v428
        %v430 = vld [vmem:[%s4] sm:$0x1]
        %v431 = vunpack.c.l.bf16 %v430
        %v432 = vlaneseq
        %v433 = vshrl.u32 %v432, 7
        %v434 = vsub.s32 0, %v433
        %v435 = vrot.slane %v431, %v434
        %v436 = vmul.f32 %v429, %v435
        %v437 = vpack.c.bf16 %v436, %v436
        %v438 = vld [vmem:[%s6] sm:$0xff]
        %v439 = vld [vmem:[%s6 + $0x8] sm:$0xf]
        %v440 = vld [vmem:[%s6 + $0xc] sm:$0xff]
        %v441 = vld [vmem:[%s6 + $0x14] sm:$0xf]
        %v442 = vld [vmem:[%s6 + $0x18] sm:$0xff]
        %v443 = vld [vmem:[%s6 + $0x20] sm:$0xf]
        %v444 = vld [vmem:[%s6 + $0x24] sm:$0xff]
        %v445 = vld [vmem:[%s6 + $0x2c] sm:$0xf]
        %v446 = vld [vmem:[%s6 + $0x30] sm:$0xff]
        %v447 = vld [vmem:[%s6 + $0x38] sm:$0xf]
        %v448 = vld [vmem:[%s6 + $0x3c] sm:$0xff]
        %v449 = vld [vmem:[%s6 + $0x44] sm:$0xf]
        %v450 = vld [vmem:[%s6 + $0x48] sm:$0xff]
        %v451 = vld [vmem:[%s6 + $0x50] sm:$0xf]
        %v452 = vld [vmem:[%s6 + $0x54] sm:$0xff]
        %v453 = vld [vmem:[%s6 + $0x5c] sm:$0xf]
        %v454 = vld [vmem:[%s6 + $0x60] sm:$0xff]
        %v455 = vld [vmem:[%s6 + $0x68] sm:$0xf]
        %v456 = vld [vmem:[%s6 + $0x6c] sm:$0xff]
        %v457 = vld [vmem:[%s6 + $0x74] sm:$0xf]
        %v458 = vld [vmem:[%s6 + $0x78] sm:$0xff]
        %v459 = vld [vmem:[%s6 + $0x80] sm:$0xf]
        %v460 = vld [vmem:[%s6 + $0x84] sm:$0xff]
        %v461 = vld [vmem:[%s6 + $0x8c] sm:$0xf]
        %v462 = vld [vmem:[%s6 + $0x90] sm:$0xff]
        %v463 = vld [vmem:[%s6 + $0x98] sm:$0xf]
        %v464 = vld [vmem:[%s6 + $0x9c] sm:$0xff]
        %v465 = vld [vmem:[%s6 + $0xa4] sm:$0xf]
        %v466 = vld [vmem:[%s6 + $0xa8] sm:$0xff]
        %v467 = vld [vmem:[%s6 + $0xb0] sm:$0xf]
        %v468 = vld [vmem:[%s6 + $0xb4] sm:$0xff]
        %v469 = vld [vmem:[%s6 + $0xbc] sm:$0xf]
        %v502 = vunpack.c.l.b16 %v438
        %v503 = vunpack.c.h.b16 %v438
        %v504 = vunpack.c.l.b16 %v439
        %v505 = vunpack.c.l.b16 %v440
        %v506 = vunpack.c.h.b16 %v440
        %v507 = vunpack.c.l.b16 %v441
        %v508 = vunpack.c.l.b16 %v442
        %v509 = vunpack.c.h.b16 %v442
        %v510 = vunpack.c.l.b16 %v443
        %v511 = vunpack.c.l.b16 %v444
        %v512 = vunpack.c.h.b16 %v444
        %v513 = vunpack.c.l.b16 %v445
        %v514 = vunpack.c.l.b16 %v446
        %v515 = vunpack.c.h.b16 %v446
        %v516 = vunpack.c.l.b16 %v447
        %v517 = vunpack.c.l.b16 %v448
        %v518 = vunpack.c.h.b16 %v448
        %v519 = vunpack.c.l.b16 %v449
        %v520 = vunpack.c.l.b16 %v450
        %v521 = vunpack.c.h.b16 %v450
        %v522 = vunpack.c.l.b16 %v451
        %v523 = vunpack.c.l.b16 %v452
        %v524 = vunpack.c.h.b16 %v452
        %v525 = vunpack.c.l.b16 %v453
        %v526 = vunpack.c.l.b16 %v454
        %v527 = vunpack.c.h.b16 %v454
        %v528 = vunpack.c.l.b16 %v455
        %v529 = vunpack.c.l.b16 %v456
        %v530 = vunpack.c.h.b16 %v456
        %v531 = vunpack.c.l.b16 %v457
        %v532 = vunpack.c.l.b16 %v458
        %v533 = vunpack.c.h.b16 %v458
        %v534 = vunpack.c.l.b16 %v459
        %v535 = vunpack.c.l.b16 %v460
        %v536 = vunpack.c.h.b16 %v460
        %v537 = vunpack.c.l.b16 %v461
        %v538 = vunpack.c.l.b16 %v462
        %v539 = vunpack.c.h.b16 %v462
        %v540 = vunpack.c.l.b16 %v463
        %v541 = vunpack.c.l.b16 %v464
        %v542 = vunpack.c.h.b16 %v464
        %v543 = vunpack.c.l.b16 %v465
        %v544 = vunpack.c.l.b16 %v466
        %v545 = vunpack.c.h.b16 %v466
        %v546 = vunpack.c.l.b16 %v467
        %v547 = vunpack.c.l.b16 %v468
        %v548 = vunpack.c.h.b16 %v468
        %v549 = vunpack.c.l.b16 %v469
        %v550 = vpack.c.b16 %v505, %v502
        %v551 = vpack.c.b16 %v506, %v503
        %v552 = vpack.c.b16 %v507, %v504
        %v553 = vpack.c.b16 %v511, %v508
        %v554 = vpack.c.b16 %v512, %v509
        %v555 = vpack.c.b16 %v513, %v510
        %v556 = vpack.c.b16 %v517, %v514
        %v557 = vpack.c.b16 %v518, %v515
        %v558 = vpack.c.b16 %v519, %v516
        %v559 = vpack.c.b16 %v523, %v520
        %v560 = vpack.c.b16 %v524, %v521
        %v561 = vpack.c.b16 %v525, %v522
        %v562 = vpack.c.b16 %v529, %v526
        %v563 = vpack.c.b16 %v530, %v527
        %v564 = vpack.c.b16 %v531, %v528
        %v565 = vpack.c.b16 %v535, %v532
        %v566 = vpack.c.b16 %v536, %v533
        %v567 = vpack.c.b16 %v537, %v534
        %v568 = vpack.c.b16 %v541, %v538
        %v569 = vpack.c.b16 %v542, %v539
        %v570 = vpack.c.b16 %v543, %v540
        %v571 = vpack.c.b16 %v547, %v544
        %v572 = vpack.c.b16 %v548, %v545
        %v573 = vpack.c.b16 %v549, %v546
        %598 = vmatprep.subr.bf16.mxu0 %v551
        %599 = vmatpush1.bf16.msra.mxu0 %v550
        %600 = vmatprep.subr.bf16.mxu0 %v554
        %601 = vmatpush1.bf16.msra.mxu0 %v553
        %602 = vmatprep.subr.bf16.mxu0 %v557
        %603 = vmatpush1.bf16.msra.mxu0 %v556
        %604 = vmatprep.subr.bf16.mxu0 %v560
        %605 = vmatpush1.bf16.msra.mxu0 %v559
        %606 = vmatprep.subr.bf16.mxu0 %v563
        %607 = vmatpush1.bf16.msra.mxu0 %v562
        %608 = vmatprep.subr.bf16.mxu0 %v566
        %609 = vmatpush1.bf16.msra.mxu0 %v565
        %610 = vmatprep.subr.bf16.mxu0 %v569
        %611 = vmatpush1.bf16.msra.mxu0 %v568
        %612 = vmatprep.subr.bf16.mxu0 %v572
        %613 = vmatpush1.bf16.msra.mxu0 %v571
        %614 = vmatprep.subr.bf16.mxu0 0
        %615 = vmatpush1.bf16.msra.mxu0 0
        %616 = vmatprep.subr.bf16.mxu0 0
        %617 = vmatpush1.bf16.msra.mxu0 0
        %618 = vmatprep.subr.bf16.mxu0 0
        %619 = vmatpush1.bf16.msra.mxu0 0
        %620 = vmatprep.subr.bf16.mxu0 0
        %621 = vmatpush1.bf16.msra.mxu0 0
        %622 = vmatprep.subr.bf16.mxu0 0
        %623 = vmatpush1.bf16.msra.mxu0 0
        %624 = vmatprep.subr.bf16.mxu0 0
        %625 = vmatpush1.bf16.msra.mxu0 0
        %626 = vmatprep.subr.bf16.mxu0 0
        %627 = vmatpush1.bf16.msra.mxu0 0
        %628 = vmatprep.subr.bf16.mxu0 0
        %629 = vmatpush1.bf16.msra.mxu0 0
        %630 = vmatprep.mubr.bf16.mxu0 0
        %631 = vmatmul.mubr.bf16.gmra.mrb[0].mxu0 %v437
        %v632 = vpop.f32.mrb[0].mxu0
        %v633 = vadd.f32 0.0, %v632
        %v634 = vpop.f32.mrb[0].mxu0
        %v635 = vadd.f32 0.0, %v634
        %v636 = vpop.f32.mrb[0].mxu0
        %v637 = vpop.f32.mrb[0].mxu0
        %638 = vdwg.mxu0
        %639 = vmatprep.subr.bf16.mxu0 0
        %640 = vmatpush1.bf16.msra.mxu0 %v552
        %641 = vmatprep.subr.bf16.mxu0 0
        %642 = vmatpush1.bf16.msra.mxu0 %v555
        %643 = vmatprep.subr.bf16.mxu0 0
        %644 = vmatpush1.bf16.msra.mxu0 %v558
        %645 = vmatprep.subr.bf16.mxu0 0
        %646 = vmatpush1.bf16.msra.mxu0 %v561
        %647 = vmatprep.subr.bf16.mxu0 0
        %648 = vmatpush1.bf16.msra.mxu0 %v564
        %649 = vmatprep.subr.bf16.mxu0 0
        %650 = vmatpush1.bf16.msra.mxu0 %v567
        %651 = vmatprep.subr.bf16.mxu0 0
        %652 = vmatpush1.bf16.msra.mxu0 %v570
        %653 = vmatprep.subr.bf16.mxu0 0
        %654 = vmatpush1.bf16.msra.mxu0 %v573
        %655 = vmatprep.subr.bf16.mxu0 0
        %656 = vmatpush1.bf16.msra.mxu0 0
        %657 = vmatprep.subr.bf16.mxu0 0
        %658 = vmatpush1.bf16.msra.mxu0 0
        %659 = vmatprep.subr.bf16.mxu0 0
        %660 = vmatpush1.bf16.msra.mxu0 0
        %661 = vmatprep.subr.bf16.mxu0 0
        %662 = vmatpush1.bf16.msra.mxu0 0
        %663 = vmatprep.subr.bf16.mxu0 0
        %664 = vmatpush1.bf16.msra.mxu0 0
        %665 = vmatprep.subr.bf16.mxu0 0
        %666 = vmatpush1.bf16.msra.mxu0 0
        %667 = vmatprep.subr.bf16.mxu0 0
        %668 = vmatpush1.bf16.msra.mxu0 0
        %669 = vmatprep.subr.bf16.mxu0 0
        %670 = vmatpush1.bf16.msra.mxu0 0
        %671 = vmatprep.mubr.bf16.mxu0 0
        %672 = vmatmul.mubr.bf16.gmra.mrb[0].mxu0 %v437
        %v673 = vpop.f32.mrb[0].mxu0
        %v674 = vadd.f32 0.0, %v673
        %v675 = vpop.f32.mrb[0].mxu0
        %v676 = vpop.f32.mrb[0].mxu0
        %v677 = vpop.f32.mrb[0].mxu0
        %678 = vdwg.mxu0
        %v679 = vpack.c.bf16 %v674, %v674
        %v680 = vld [vmem:[%s410] sm:$0xff]
        %v681 = vld [vmem:[%s414] sm:$0xff]
        %v682 = vpack.c.bf16 %v633, %v633
        %v683 = vld [vmem:[%s3] sm:$0xf]
        %v684 = vld [vmem:[%s3 + $0x4] sm:$0xf]
        %v685 = vld [vmem:[%s3 + $0x8] sm:$0xf]
        %v686 = vld [vmem:[%s3 + $0xc] sm:$0xf]
        %v687 = vld [vmem:[%s3 + $0x10] sm:$0xf]
        %v688 = vld [vmem:[%s3 + $0x14] sm:$0xf]
        %v689 = vld [vmem:[%s3 + $0x18] sm:$0xf]
        %v690 = vld [vmem:[%s3 + $0x1c] sm:$0xf]
        %v691 = vld [vmem:[%s3 + $0x20] sm:$0xf]
        %v692 = vld [vmem:[%s3 + $0x24] sm:$0xf]
        %v693 = vld [vmem:[%s3 + $0x28] sm:$0xf]
        %v694 = vld [vmem:[%s3 + $0x2c] sm:$0xf]
        %v695 = vld [vmem:[%s3 + $0x30] sm:$0xf]
        %v696 = vld [vmem:[%s3 + $0x34] sm:$0xf]
        %v697 = vld [vmem:[%s3 + $0x38] sm:$0xf]
        %v698 = vld [vmem:[%s3 + $0x3c] sm:$0xf]
        %v715 = vunpack.c.l.b16 %v683
        %v716 = vunpack.c.l.b16 %v684
        %v717 = vunpack.c.l.b16 %v685
        %v718 = vunpack.c.l.b16 %v686
        %v719 = vunpack.c.l.b16 %v687
        %v720 = vunpack.c.l.b16 %v688
        %v721 = vunpack.c.l.b16 %v689
        %v722 = vunpack.c.l.b16 %v690
        %v723 = vunpack.c.l.b16 %v691
        %v724 = vunpack.c.l.b16 %v692
        %v725 = vunpack.c.l.b16 %v693
        %v726 = vunpack.c.l.b16 %v694
        %v727 = vunpack.c.l.b16 %v695
        %v728 = vunpack.c.l.b16 %v696
        %v729 = vunpack.c.l.b16 %v697
        %v730 = vunpack.c.l.b16 %v698
        %v731 = vpack.c.b16 %v716, %v715
        %v732 = vpack.c.b16 %v718, %v717
        %v733 = vpack.c.b16 %v720, %v719
        %v734 = vpack.c.b16 %v722, %v721
        %v735 = vpack.c.b16 %v724, %v723
        %v736 = vpack.c.b16 %v726, %v725
        %v737 = vpack.c.b16 %v728, %v727
        %v738 = vpack.c.b16 %v730, %v729
        %747 = vmatprep.subr.bf16.mxu0 0
        %748 = vmatpush1.bf16.msra.mxu0 %v731
        %749 = vmatprep.subr.bf16.mxu0 0
        %750 = vmatpush1.bf16.msra.mxu0 %v732
        %751 = vmatprep.subr.bf16.mxu0 0
        %752 = vmatpush1.bf16.msra.mxu0 %v733
        %753 = vmatprep.subr.bf16.mxu0 0
        %754 = vmatpush1.bf16.msra.mxu0 %v734
        %755 = vmatprep.subr.bf16.mxu0 0
        %756 = vmatpush1.bf16.msra.mxu0 %v735
        %757 = vmatprep.subr.bf16.mxu0 0
        %758 = vmatpush1.bf16.msra.mxu0 %v736
        %759 = vmatprep.subr.bf16.mxu0 0
        %760 = vmatpush1.bf16.msra.mxu0 %v737
        %761 = vmatprep.subr.bf16.mxu0 0
        %762 = vmatpush1.bf16.msra.mxu0 %v738
        %763 = vmatprep.subr.bf16.mxu0 0
        %764 = vmatpush1.bf16.msra.mxu0 0
        %765 = vmatprep.subr.bf16.mxu0 0
        %766 = vmatpush1.bf16.msra.mxu0 0
        %767 = vmatprep.subr.bf16.mxu0 0
        %768 = vmatpush1.bf16.msra.mxu0 0
        %769 = vmatprep.subr.bf16.mxu0 0
        %770 = vmatpush1.bf16.msra.mxu0 0
        %771 = vmatprep.subr.bf16.mxu0 0
        %772 = vmatpush1.bf16.msra.mxu0 0
        %773 = vmatprep.subr.bf16.mxu0 0
        %774 = vmatpush1.bf16.msra.mxu0 0
        %775 = vmatprep.subr.bf16.mxu0 0
        %776 = vmatpush1.bf16.msra.mxu0 0
        %777 = vmatprep.subr.bf16.mxu0 0
        %778 = vmatpush1.bf16.msra.mxu0 0
        %779 = vmatprep.mubr.bf16.mxu0 0
        %780 = vmatmul.mubr.bf16.gmra.mrb[0].mxu0 %v682
        %v781 = vpop.f32.mrb[0].mxu0
        %v782 = vadd.f32 0.0, %v781
        %v783 = vpop.f32.mrb[0].mxu0
        %v784 = vpop.f32.mrb[0].mxu0
        %v785 = vpop.f32.mrb[0].mxu0
        %786 = vdwg.mxu0
        %v787 = vpack.c.bf16 %v635, %v635
        %788 = vmatprep.subr.bf16.mxu0 0
        %789 = vmatpush1.bf16.msra.mxu0 %v731
        %790 = vmatprep.subr.bf16.mxu0 0
        %791 = vmatpush1.bf16.msra.mxu0 %v732
        %792 = vmatprep.subr.bf16.mxu0 0
        %793 = vmatpush1.bf16.msra.mxu0 %v733
        %794 = vmatprep.subr.bf16.mxu0 0
        %795 = vmatpush1.bf16.msra.mxu0 %v734
        %796 = vmatprep.subr.bf16.mxu0 0
        %797 = vmatpush1.bf16.msra.mxu0 %v735
        %798 = vmatprep.subr.bf16.mxu0 0
        %799 = vmatpush1.bf16.msra.mxu0 %v736
        %800 = vmatprep.subr.bf16.mxu0 0
        %801 = vmatpush1.bf16.msra.mxu0 %v737
        %802 = vmatprep.subr.bf16.mxu0 0
        %803 = vmatpush1.bf16.msra.mxu0 %v738
        %804 = vmatprep.subr.bf16.mxu0 0
        %805 = vmatpush1.bf16.msra.mxu0 0
        %806 = vmatprep.subr.bf16.mxu0 0
        %807 = vmatpush1.bf16.msra.mxu0 0
        %808 = vmatprep.subr.bf16.mxu0 0
        %809 = vmatpush1.bf16.msra.mxu0 0
        %810 = vmatprep.subr.bf16.mxu0 0
        %811 = vmatpush1.bf16.msra.mxu0 0
        %812 = vmatprep.subr.bf16.mxu0 0
        %813 = vmatpush1.bf16.msra.mxu0 0
        %814 = vmatprep.subr.bf16.mxu0 0
        %815 = vmatpush1.bf16.msra.mxu0 0
        %816 = vmatprep.subr.bf16.mxu0 0
        %817 = vmatpush1.bf16.msra.mxu0 0
        %818 = vmatprep.subr.bf16.mxu0 0
        %819 = vmatpush1.bf16.msra.mxu0 0
        %820 = vmatprep.mubr.bf16.mxu0 0
        %821 = vmatmul.mubr.bf16.gmra.mrb[0].mxu0 %v787
        %v822 = vpop.f32.mrb[0].mxu0
        %v823 = vadd.f32 0.0, %v822
        %v824 = vpop.f32.mrb[0].mxu0
        %v825 = vpop.f32.mrb[0].mxu0
        %v826 = vpop.f32.mrb[0].mxu0
        %827 = vdwg.mxu0
        %v828 = vmul.f32 %v633, %v680
        %v829 = vmul.f32 %v782, %v681
        %v830 = vadd.f32 %v828, %v829
        %v831 = vpack.c.bf16 %v830, %v830
        %v832 = vmul.f32 %v635, %v680
        %v833 = vmul.f32 %v823, %v681
        %v834 = vadd.f32 %v832, %v833
        %v835 = vpack.c.bf16 %v834, %v834
        %v836 = vlaneseq
        %v837 = vshrl.u32 %v836, 7
        %v838 = vlaneseq
        %v839 = vand.u32 %v838, 127
        %vm840 = vcmp.le.s32.totalorder %v839, %v837
        %vm841 = vcmask 261120
        %v843 = vsel %vm841, %v831, 0
        %v846 = vsel %vm841, %v835, 0
        %848 = vmatprep.subr.bf16.mxu0 0
        %849 = vmatpush1.bf16.xpose.msra.mxu0 %v846
        %850 = vmatprep.subr.bf16.mxu0 0
        %851 = vmatpush1.bf16.xpose.msra.mxu0 0
        %852 = vmatprep.subr.bf16.mxu0 0
        %853 = vmatpush1.bf16.xpose.msra.mxu0 0
        %854 = vmatprep.subr.bf16.mxu0 0
        %855 = vmatpush1.bf16.xpose.msra.mxu0 0
        %856 = vmatprep.subr.bf16.mxu0 0
        %857 = vmatpush1.bf16.xpose.msra.mxu0 0
        %858 = vmatprep.subr.bf16.mxu0 0
        %859 = vmatpush1.bf16.xpose.msra.mxu0 0
        %860 = vmatprep.subr.bf16.mxu0 0
        %861 = vmatpush1.bf16.xpose.msra.mxu0 0
        %862 = vmatprep.subr.bf16.mxu0 0
        %863 = vmatpush1.bf16.xpose.msra.mxu0 0
        %864 = vmatprep.subr.bf16.mxu0 0
        %865 = vmatpush1.bf16.xpose.msra.mxu0 0
        %866 = vmatprep.subr.bf16.mxu0 0
        %867 = vmatpush1.bf16.xpose.msra.mxu0 0
        %868 = vmatprep.subr.bf16.mxu0 0
        %869 = vmatpush1.bf16.xpose.msra.mxu0 0
        %870 = vmatprep.subr.bf16.mxu0 0
        %871 = vmatpush1.bf16.xpose.msra.mxu0 0
        %872 = vmatprep.subr.bf16.mxu0 0
        %873 = vmatpush1.bf16.xpose.msra.mxu0 0
        %874 = vmatprep.subr.bf16.mxu0 0
        %875 = vmatpush1.bf16.xpose.msra.mxu0 0
        %876 = vmatprep.subr.bf16.mxu0 0
        %877 = vmatpush1.bf16.xpose.msra.mxu0 0
        %878 = vmatprep.subr.bf16.mxu0 0
        %879 = vmatpush1.bf16.xpose.msra.mxu0 0
        %880 = vmatprep.mubr.bf16.mxu0 0
        %881 = vmatmul.mubr.bf16.gmra.mrb[0].mxu0 %v843
        %v882 = vpop.f32.mrb[0].mxu0
        %v883 = vadd.f32 0.0, %v882
        %v884 = vpop.f32.mrb[0].mxu0
        %v885 = vpop.f32.mrb[0].mxu0
        %v886 = vpop.f32.mrb[0].mxu0
        %887 = vdwg.mxu0
        %v888 = vmul.f32 %v883, 0.17677669
        %v889 = vsel %vm840, %v888, -1e+30
        %vm890 = vcmask 64512
        %v891 = vsel %vm890, %v889, -inf
        %892 = vmax.xlane.f32.xlu0 %v891
        %v893 = vpop.xlane.xlu0 %892
        %v894 = vsub.f32 %v889, %v893
        %v895 = vmul.f32 %v894, 1.442695
        %v896 = vpow.pop %v895
        %v897 = vsel %vm890, %v896, 0.0
        %898 = vadd.xlane.f32.xlu0 %v897
        %v899 = vpop.xlane.xlu0 %898
        %v900 = vrcp.pop %v899
        %v901 = vmul.f32 %v896, %v900
        %v902 = vpack.c.bf16 %v901, %v901
        %v904 = vsel %vm890, %v902, 0
        %vm906 = vcmask 1043456
        %v908 = vsel %vm906, %v679, 0
        %910 = vmatprep.subr.bf16.mxu0 0
        %911 = vmatpush1.bf16.msra.mxu0 %v908
        %912 = vmatprep.subr.bf16.mxu0 0
        %913 = vmatpush1.bf16.msra.mxu0 0
        %914 = vmatprep.subr.bf16.mxu0 0
        %915 = vmatpush1.bf16.msra.mxu0 0
        %916 = vmatprep.subr.bf16.mxu0 0
        %917 = vmatpush1.bf16.msra.mxu0 0
        %918 = vmatprep.subr.bf16.mxu0 0
        %919 = vmatpush1.bf16.msra.mxu0 0
        %920 = vmatprep.subr.bf16.mxu0 0
        %921 = vmatpush1.bf16.msra.mxu0 0
        %922 = vmatprep.subr.bf16.mxu0 0
        %923 = vmatpush1.bf16.msra.mxu0 0
        %924 = vmatprep.subr.bf16.mxu0 0
        %925 = vmatpush1.bf16.msra.mxu0 0
        %926 = vmatprep.subr.bf16.mxu0 0
        %927 = vmatpush1.bf16.msra.mxu0 0
        %928 = vmatprep.subr.bf16.mxu0 0
        %929 = vmatpush1.bf16.msra.mxu0 0
        %930 = vmatprep.subr.bf16.mxu0 0
        %931 = vmatpush1.bf16.msra.mxu0 0
        %932 = vmatprep.subr.bf16.mxu0 0
        %933 = vmatpush1.bf16.msra.mxu0 0
        %934 = vmatprep.subr.bf16.mxu0 0
        %935 = vmatpush1.bf16.msra.mxu0 0
        %936 = vmatprep.subr.bf16.mxu0 0
        %937 = vmatpush1.bf16.msra.mxu0 0
        %938 = vmatprep.subr.bf16.mxu0 0
        %939 = vmatpush1.bf16.msra.mxu0 0
        %940 = vmatprep.subr.bf16.mxu0 0
        %941 = vmatpush1.bf16.msra.mxu0 0
        %942 = vmatprep.mubr.bf16.mxu0 0
        %943 = vmatmul.mubr.bf16.gmra.mrb[0].mxu0 %v904
        %v944 = vpop.f32.mrb[0].mxu0
        %v945 = vadd.f32 0.0, %v944
        %v946 = vpop.f32.mrb[0].mxu0
        %v947 = vpop.f32.mrb[0].mxu0
        %v948 = vpop.f32.mrb[0].mxu0
        %949 = vdwg.mxu0
        %950 = vst.msk [vmem:[#allocation2] sm:$0xff] %vm841, %v945
        %952 = vrot.lane.b32.xlu0 %v831, 96
        %v953 = vpop.permute.xlu0 %952
        %955 = vrot.lane.b32.xlu0 %v835, 96
        %v956 = vpop.permute.xlu0 %955
        %v958 = vsel %vm841, %v953, 0
        %v961 = vsel %vm841, %v956, 0
        %963 = vmatprep.subr.bf16.mxu0 0
        %964 = vmatpush1.bf16.xpose.msra.mxu0 %v961
        %965 = vmatprep.subr.bf16.mxu0 0
        %966 = vmatpush1.bf16.xpose.msra.mxu0 0
        %967 = vmatprep.subr.bf16.mxu0 0
        %968 = vmatpush1.bf16.xpose.msra.mxu0 0
        %969 = vmatprep.subr.bf16.mxu0 0
        %970 = vmatpush1.bf16.xpose.msra.mxu0 0
        %971 = vmatprep.subr.bf16.mxu0 0
        %972 = vmatpush1.bf16.xpose.msra.mxu0 0
        %973 = vmatprep.subr.bf16.mxu0 0
        %974 = vmatpush1.bf16.xpose.msra.mxu0 0
        %975 = vmatprep.subr.bf16.mxu0 0
        %976 = vmatpush1.bf16.xpose.msra.mxu0 0
        %977 = vmatprep.subr.bf16.mxu0 0
        %978 = vmatpush1.bf16.xpose.msra.mxu0 0
        %979 = vmatprep.subr.bf16.mxu0 0
        %980 = vmatpush1.bf16.xpose.msra.mxu0 0
        %981 = vmatprep.subr.bf16.mxu0 0
        %982 = vmatpush1.bf16.xpose.msra.mxu0 0
        %983 = vmatprep.subr.bf16.mxu0 0
        %984 = vmatpush1.bf16.xpose.msra.mxu0 0
        %985 = vmatprep.subr.bf16.mxu0 0
        %986 = vmatpush1.bf16.xpose.msra.mxu0 0
        %987 = vmatprep.subr.bf16.mxu0 0
        %988 = vmatpush1.bf16.xpose.msra.mxu0 0
        %989 = vmatprep.subr.bf16.mxu0 0
        %990 = vmatpush1.bf16.xpose.msra.mxu0 0
        %991 = vmatprep.subr.bf16.mxu0 0
        %992 = vmatpush1.bf16.xpose.msra.mxu0 0
        %993 = vmatprep.subr.bf16.mxu0 0
        %994 = vmatpush1.bf16.xpose.msra.mxu0 0
        %995 = vmatprep.mubr.bf16.mxu0 0
        %996 = vmatmul.mubr.bf16.gmra.mrb[0].mxu0 %v958
        %v997 = vpop.f32.mrb[0].mxu0
        %v998 = vadd.f32 0.0, %v997
        %v999 = vpop.f32.mrb[0].mxu0
        %v1000 = vpop.f32.mrb[0].mxu0
        %v1001 = vpop.f32.mrb[0].mxu0
        %1002 = vdwg.mxu0
        %v1003 = vmul.f32 %v998, 0.17677669
        %v1004 = vsel %vm840, %v1003, -1e+30
        %v1005 = vsel %vm890, %v1004, -inf
        %1006 = vmax.xlane.f32.xlu0 %v1005
        %v1007 = vpop.xlane.xlu0 %1006
        %v1008 = vsub.f32 %v1004, %v1007
        %v1009 = vmul.f32 %v1008, 1.442695
        %v1010 = vpow.pop %v1009
        %v1011 = vsel %vm890, %v1010, 0.0
        %1012 = vadd.xlane.f32.xlu0 %v1011
        %v1013 = vpop.xlane.xlu0 %1012
        %v1014 = vrcp.pop %v1013
        %v1015 = vmul.f32 %v1010, %v1014
        %v1016 = vpack.c.bf16 %v1015, %v1015
        %1018 = vrot.lane.b32.xlu0 %v679, 96
        %v1019 = vpop.permute.xlu0 %1018
        %v1021 = vsel %vm890, %v1016, 0
        %v1024 = vsel %vm906, %v1019, 0
        %1026 = vmatprep.subr.bf16.mxu0 0
        %1027 = vmatpush1.bf16.msra.mxu0 %v1024
        %1028 = vmatprep.subr.bf16.mxu0 0
        %1029 = vmatpush1.bf16.msra.mxu0 0
        %1030 = vmatprep.subr.bf16.mxu0 0
        %1031 = vmatpush1.bf16.msra.mxu0 0
        %1032 = vmatprep.subr.bf16.mxu0 0
        %1033 = vmatpush1.bf16.msra.mxu0 0
        %1034 = vmatprep.subr.bf16.mxu0 0
        %1035 = vmatpush1.bf16.msra.mxu0 0
        %1036 = vmatprep.subr.bf16.mxu0 0
        %1037 = vmatpush1.bf16.msra.mxu0 0
        %1038 = vmatprep.subr.bf16.mxu0 0
        %1039 = vmatpush1.bf16.msra.mxu0 0
        %1040 = vmatprep.subr.bf16.mxu0 0
        %1041 = vmatpush1.bf16.msra.mxu0 0
        %1042 = vmatprep.subr.bf16.mxu0 0
        %1043 = vmatpush1.bf16.msra.mxu0 0
        %1044 = vmatprep.subr.bf16.mxu0 0
        %1045 = vmatpush1.bf16.msra.mxu0 0
        %1046 = vmatprep.subr.bf16.mxu0 0
        %1047 = vmatpush1.bf16.msra.mxu0 0
        %1048 = vmatprep.subr.bf16.mxu0 0
        %1049 = vmatpush1.bf16.msra.mxu0 0
        %1050 = vmatprep.subr.bf16.mxu0 0
        %1051 = vmatpush1.bf16.msra.mxu0 0
        %1052 = vmatprep.subr.bf16.mxu0 0
        %1053 = vmatpush1.bf16.msra.mxu0 0
        %1054 = vmatprep.subr.bf16.mxu0 0
        %1055 = vmatpush1.bf16.msra.mxu0 0
        %1056 = vmatprep.subr.bf16.mxu0 0
        %1057 = vmatpush1.bf16.msra.mxu0 0
        %1058 = vmatprep.mubr.bf16.mxu0 0
        %1059 = vmatmul.mubr.bf16.gmra.mrb[0].mxu0 %v1021
        %v1060 = vpop.f32.mrb[0].mxu0
        %v1061 = vadd.f32 0.0, %v1060
        %v1062 = vpop.f32.mrb[0].mxu0
        %v1063 = vpop.f32.mrb[0].mxu0
        %v1064 = vpop.f32.mrb[0].mxu0
        %1065 = vdwg.mxu0
        %1067 = vrot.lane.b32.xlu0 %v1061, 32
        %v1068 = vpop.permute.xlu0 %1067
        %vm1070 = vcmask 523520
        %1071 = vst.msk [vmem:[#allocation2] sm:$0xff] %vm1070, %v1068
        %1072 = vrot.lane.b32.xlu0 %v831, 64
        %v1073 = vpop.permute.xlu0 %1072
        %1074 = vrot.lane.b32.xlu0 %v835, 64
        %v1075 = vpop.permute.xlu0 %1074
        %v1077 = vsel %vm841, %v1073, 0
        %v1080 = vsel %vm841, %v1075, 0
        %1082 = vmatprep.subr.bf16.mxu0 0
        %1083 = vmatpush1.bf16.xpose.msra.mxu0 %v1080
        %1084 = vmatprep.subr.bf16.mxu0 0
        %1085 = vmatpush1.bf16.xpose.msra.mxu0 0
        %1086 = vmatprep.subr.bf16.mxu0 0
        %1087 = vmatpush1.bf16.xpose.msra.mxu0 0
        %1088 = vmatprep.subr.bf16.mxu0 0
        %1089 = vmatpush1.bf16.xpose.msra.mxu0 0
        %1090 = vmatprep.subr.bf16.mxu0 0
        %1091 = vmatpush1.bf16.xpose.msra.mxu0 0
        %1092 = vmatprep.subr.bf16.mxu0 0
        %1093 = vmatpush1.bf16.xpose.msra.mxu0 0
        %1094 = vmatprep.subr.bf16.mxu0 0
        %1095 = vmatpush1.bf16.xpose.msra.mxu0 0
        %1096 = vmatprep.subr.bf16.mxu0 0
        %1097 = vmatpush1.bf16.xpose.msra.mxu0 0
        %1098 = vmatprep.subr.bf16.mxu0 0
        %1099 = vmatpush1.bf16.xpose.msra.mxu0 0
        %1100 = vmatprep.subr.bf16.mxu0 0
        %1101 = vmatpush1.bf16.xpose.msra.mxu0 0
        %1102 = vmatprep.subr.bf16.mxu0 0
        %1103 = vmatpush1.bf16.xpose.msra.mxu0 0
        %1104 = vmatprep.subr.bf16.mxu0 0
        %1105 = vmatpush1.bf16.xpose.msra.mxu0 0
        %1106 = vmatprep.subr.bf16.mxu0 0
        %1107 = vmatpush1.bf16.xpose.msra.mxu0 0
        %1108 = vmatprep.subr.bf16.mxu0 0
        %1109 = vmatpush1.bf16.xpose.msra.mxu0 0
        %1110 = vmatprep.subr.bf16.mxu0 0
        %1111 = vmatpush1.bf16.xpose.msra.mxu0 0
        %1112 = vmatprep.subr.bf16.mxu0 0
        %1113 = vmatpush1.bf16.xpose.msra.mxu0 0
        %1114 = vmatprep.mubr.bf16.mxu0 0
        %1115 = vmatmul.mubr.bf16.gmra.mrb[0].mxu0 %v1077
        %v1116 = vpop.f32.mrb[0].mxu0
        %v1117 = vadd.f32 0.0, %v1116
        %v1118 = vpop.f32.mrb[0].mxu0
        %v1119 = vpop.f32.mrb[0].mxu0
        %v1120 = vpop.f32.mrb[0].mxu0
        %1121 = vdwg.mxu0
        %v1122 = vmul.f32 %v1117, 0.17677669
        %v1123 = vsel %vm840, %v1122, -1e+30
        %v1124 = vsel %vm890, %v1123, -inf
        %1125 = vmax.xlane.f32.xlu0 %v1124
        %v1126 = vpop.xlane.xlu0 %1125
        %v1127 = vsub.f32 %v1123, %v1126
        %v1128 = vmul.f32 %v1127, 1.442695
        %v1129 = vpow.pop %v1128
        %v1130 = vsel %vm890, %v1129, 0.0
        %1131 = vadd.xlane.f32.xlu0 %v1130
        %v1132 = vpop.xlane.xlu0 %1131
        %v1133 = vrcp.pop %v1132
        %v1134 = vmul.f32 %v1129, %v1133
        %v1135 = vpack.c.bf16 %v1134, %v1134
        %1136 = vrot.lane.b32.xlu0 %v679, 64
        %v1137 = vpop.permute.xlu0 %1136
        %v1139 = vsel %vm890, %v1135, 0
        %v1142 = vsel %vm906, %v1137, 0
        %1144 = vmatprep.subr.bf16.mxu0 0
        %1145 = vmatpush1.bf16.msra.mxu0 %v1142
        %1146 = vmatprep.subr.bf16.mxu0 0
        %1147 = vmatpush1.bf16.msra.mxu0 0
        %1148 = vmatprep.subr.bf16.mxu0 0
        %1149 = vmatpush1.bf16.msra.mxu0 0
        %1150 = vmatprep.subr.bf16.mxu0 0
        %1151 = vmatpush1.bf16.msra.mxu0 0
        %1152 = vmatprep.subr.bf16.mxu0 0
        %1153 = vmatpush1.bf16.msra.mxu0 0
        %1154 = vmatprep.subr.bf16.mxu0 0
        %1155 = vmatpush1.bf16.msra.mxu0 0
        %1156 = vmatprep.subr.bf16.mxu0 0
        %1157 = vmatpush1.bf16.msra.mxu0 0
        %1158 = vmatprep.subr.bf16.mxu0 0
        %1159 = vmatpush1.bf16.msra.mxu0 0
        %1160 = vmatprep.subr.bf16.mxu0 0
        %1161 = vmatpush1.bf16.msra.mxu0 0
        %1162 = vmatprep.subr.bf16.mxu0 0
        %1163 = vmatpush1.bf16.msra.mxu0 0
        %1164 = vmatprep.subr.bf16.mxu0 0
        %1165 = vmatpush1.bf16.msra.mxu0 0
        %1166 = vmatprep.subr.bf16.mxu0 0
        %1167 = vmatpush1.bf16.msra.mxu0 0
        %1168 = vmatprep.subr.bf16.mxu0 0
        %1169 = vmatpush1.bf16.msra.mxu0 0
        %1170 = vmatprep.subr.bf16.mxu0 0
        %1171 = vmatpush1.bf16.msra.mxu0 0
        %1172 = vmatprep.subr.bf16.mxu0 0
        %1173 = vmatpush1.bf16.msra.mxu0 0
        %1174 = vmatprep.subr.bf16.mxu0 0
        %1175 = vmatpush1.bf16.msra.mxu0 0
        %1176 = vmatprep.mubr.bf16.mxu0 0
        %1177 = vmatmul.mubr.bf16.gmra.mrb[0].mxu0 %v1139
        %v1178 = vpop.f32.mrb[0].mxu0
        %v1179 = vadd.f32 0.0, %v1178
        %v1180 = vpop.f32.mrb[0].mxu0
        %v1181 = vpop.f32.mrb[0].mxu0
        %v1182 = vpop.f32.mrb[0].mxu0
        %1183 = vdwg.mxu0
        %1185 = vrot.lane.b32.xlu0 %v1179, 64
        %v1186 = vpop.permute.xlu0 %1185
        %vm1188 = vcmask 785920
        %1189 = vst.msk [vmem:[#allocation2] sm:$0xff] %vm1188, %v1186
        %1190 = vrot.lane.b32.xlu0 %v831, 32
        %v1191 = vpop.permute.xlu0 %1190
        %1192 = vrot.lane.b32.xlu0 %v835, 32
        %v1193 = vpop.permute.xlu0 %1192
        %v1195 = vsel %vm841, %v1191, 0
        %v1198 = vsel %vm841, %v1193, 0
        %1200 = vmatprep.subr.bf16.mxu0 0
        %1201 = vmatpush1.bf16.xpose.msra.mxu0 %v1198
        %1202 = vmatprep.subr.bf16.mxu0 0
        %1203 = vmatpush1.bf16.xpose.msra.mxu0 0
        %1204 = vmatprep.subr.bf16.mxu0 0
        %1205 = vmatpush1.bf16.xpose.msra.mxu0 0
        %1206 = vmatprep.subr.bf16.mxu0 0
        %1207 = vmatpush1.bf16.xpose.msra.mxu0 0
        %1208 = vmatprep.subr.bf16.mxu0 0
        %1209 = vmatpush1.bf16.xpose.msra.mxu0 0
        %1210 = vmatprep.subr.bf16.mxu0 0
        %1211 = vmatpush1.bf16.xpose.msra.mxu0 0
        %1212 = vmatprep.subr.bf16.mxu0 0
        %1213 = vmatpush1.bf16.xpose.msra.mxu0 0
        %1214 = vmatprep.subr.bf16.mxu0 0
        %1215 = vmatpush1.bf16.xpose.msra.mxu0 0
        %1216 = vmatprep.subr.bf16.mxu0 0
        %1217 = vmatpush1.bf16.xpose.msra.mxu0 0
        %1218 = vmatprep.subr.bf16.mxu0 0
        %1219 = vmatpush1.bf16.xpose.msra.mxu0 0
        %1220 = vmatprep.subr.bf16.mxu0 0
        %1221 = vmatpush1.bf16.xpose.msra.mxu0 0
        %1222 = vmatprep.subr.bf16.mxu0 0
        %1223 = vmatpush1.bf16.xpose.msra.mxu0 0
        %1224 = vmatprep.subr.bf16.mxu0 0
        %1225 = vmatpush1.bf16.xpose.msra.mxu0 0
        %1226 = vmatprep.subr.bf16.mxu0 0
        %1227 = vmatpush1.bf16.xpose.msra.mxu0 0
        %1228 = vmatprep.subr.bf16.mxu0 0
        %1229 = vmatpush1.bf16.xpose.msra.mxu0 0
        %1230 = vmatprep.subr.bf16.mxu0 0
        %1231 = vmatpush1.bf16.xpose.msra.mxu0 0
        %1232 = vmatprep.mubr.bf16.mxu0 0
        %1233 = vmatmul.mubr.bf16.gmra.mrb[0].mxu0 %v1195
        %v1234 = vpop.f32.mrb[0].mxu0
        %v1235 = vadd.f32 0.0, %v1234
        %v1236 = vpop.f32.mrb[0].mxu0
        %v1237 = vpop.f32.mrb[0].mxu0
        %v1238 = vpop.f32.mrb[0].mxu0
        %1239 = vdwg.mxu0
        %v1240 = vmul.f32 %v1235, 0.17677669
        %v1241 = vsel %vm840, %v1240, -1e+30
        %v1242 = vsel %vm890, %v1241, -inf
        %1243 = vmax.xlane.f32.xlu0 %v1242
        %v1244 = vpop.xlane.xlu0 %1243
        %v1245 = vsub.f32 %v1241, %v1244
        %v1246 = vmul.f32 %v1245, 1.442695
        %v1247 = vpow.pop %v1246
        %v1248 = vsel %vm890, %v1247, 0.0
        %1249 = vadd.xlane.f32.xlu0 %v1248
        %v1250 = vpop.xlane.xlu0 %1249
        %v1251 = vrcp.pop %v1250
        %v1252 = vmul.f32 %v1247, %v1251
        %v1253 = vpack.c.bf16 %v1252, %v1252
        %1254 = vrot.lane.b32.xlu0 %v679, 32
        %v1255 = vpop.permute.xlu0 %1254
        %v1257 = vsel %vm890, %v1253, 0
        %v1260 = vsel %vm906, %v1255, 0
        %1262 = vmatprep.subr.bf16.mxu0 0
        %1263 = vmatpush1.bf16.msra.mxu0 %v1260
        %1264 = vmatprep.subr.bf16.mxu0 0
        %1265 = vmatpush1.bf16.msra.mxu0 0
        %1266 = vmatprep.subr.bf16.mxu0 0
        %1267 = vmatpush1.bf16.msra.mxu0 0
        %1268 = vmatprep.subr.bf16.mxu0 0
        %1269 = vmatpush1.bf16.msra.mxu0 0
        %1270 = vmatprep.subr.bf16.mxu0 0
        %1271 = vmatpush1.bf16.msra.mxu0 0
        %1272 = vmatprep.subr.bf16.mxu0 0
        %1273 = vmatpush1.bf16.msra.mxu0 0
        %1274 = vmatprep.subr.bf16.mxu0 0
        %1275 = vmatpush1.bf16.msra.mxu0 0
        %1276 = vmatprep.subr.bf16.mxu0 0
        %1277 = vmatpush1.bf16.msra.mxu0 0
        %1278 = vmatprep.subr.bf16.mxu0 0
        %1279 = vmatpush1.bf16.msra.mxu0 0
        %1280 = vmatprep.subr.bf16.mxu0 0
        %1281 = vmatpush1.bf16.msra.mxu0 0
        %1282 = vmatprep.subr.bf16.mxu0 0
        %1283 = vmatpush1.bf16.msra.mxu0 0
        %1284 = vmatprep.subr.bf16.mxu0 0
        %1285 = vmatpush1.bf16.msra.mxu0 0
        %1286 = vmatprep.subr.bf16.mxu0 0
        %1287 = vmatpush1.bf16.msra.mxu0 0
        %1288 = vmatprep.subr.bf16.mxu0 0
        %1289 = vmatpush1.bf16.msra.mxu0 0
        %1290 = vmatprep.subr.bf16.mxu0 0
        %1291 = vmatpush1.bf16.msra.mxu0 0
        %1292 = vmatprep.subr.bf16.mxu0 0
        %1293 = vmatpush1.bf16.msra.mxu0 0
        %1294 = vmatprep.mubr.bf16.mxu0 0
        %1295 = vmatmul.mubr.bf16.gmra.mrb[0].mxu0 %v1257
        %v1296 = vpop.f32.mrb[0].mxu0
        %v1297 = vadd.f32 0.0, %v1296
        %v1298 = vpop.f32.mrb[0].mxu0
        %v1299 = vpop.f32.mrb[0].mxu0
        %v1300 = vpop.f32.mrb[0].mxu0
        %1301 = vdwg.mxu0
        %1303 = vrot.lane.b32.xlu0 %v1297, 96
        %v1304 = vpop.permute.xlu0 %1303
        %vm1306 = vcmask 1048320
        %1307 = vst.msk [vmem:[#allocation2] sm:$0xff] %vm1306, %v1304
        %v1308 = vld [vmem:[#allocation2] sm:$0xff]
        %v1309 = vpack.c.bf16 %v1308, %v1308
        %v1310 = vld [vmem:[#allocation3] sm:$0xf]
        %v1311 = vld [vmem:[#allocation3 + $0x4] sm:$0xf]
        %v1312 = vld [vmem:[#allocation3 + $0x8] sm:$0xf]
        %v1313 = vld [vmem:[#allocation3 + $0xc] sm:$0xf]
        %v1314 = vld [vmem:[#allocation3 + $0x10] sm:$0xf]
        %v1315 = vld [vmem:[#allocation3 + $0x14] sm:$0xf]
        %v1316 = vld [vmem:[#allocation3 + $0x18] sm:$0xf]
        %v1317 = vld [vmem:[#allocation3 + $0x1c] sm:$0xf]
        %v1318 = vld [vmem:[#allocation3 + $0x20] sm:$0xf]
        %v1319 = vld [vmem:[#allocation3 + $0x24] sm:$0xf]
        %v1320 = vld [vmem:[#allocation3 + $0x28] sm:$0xf]
        %v1321 = vld [vmem:[#allocation3 + $0x2c] sm:$0xf]
        %v1322 = vld [vmem:[#allocation3 + $0x30] sm:$0xf]
        %v1323 = vld [vmem:[#allocation3 + $0x34] sm:$0xf]
        %v1324 = vld [vmem:[#allocation3 + $0x38] sm:$0xf]
        %v1325 = vld [vmem:[#allocation3 + $0x3c] sm:$0xf]
        %v1342 = vunpack.c.l.b16 %v1310
        %v1343 = vunpack.c.l.b16 %v1311
        %v1344 = vunpack.c.l.b16 %v1312
        %v1345 = vunpack.c.l.b16 %v1313
        %v1346 = vunpack.c.l.b16 %v1314
        %v1347 = vunpack.c.l.b16 %v1315
        %v1348 = vunpack.c.l.b16 %v1316
        %v1349 = vunpack.c.l.b16 %v1317
        %v1350 = vunpack.c.l.b16 %v1318
        %v1351 = vunpack.c.l.b16 %v1319
        %v1352 = vunpack.c.l.b16 %v1320
        %v1353 = vunpack.c.l.b16 %v1321
        %v1354 = vunpack.c.l.b16 %v1322
        %v1355 = vunpack.c.l.b16 %v1323
        %v1356 = vunpack.c.l.b16 %v1324
        %v1357 = vunpack.c.l.b16 %v1325
        %v1358 = vpack.c.b16 %v1343, %v1342
        %v1359 = vpack.c.b16 %v1345, %v1344
        %v1360 = vpack.c.b16 %v1347, %v1346
        %v1361 = vpack.c.b16 %v1349, %v1348
        %v1362 = vpack.c.b16 %v1351, %v1350
        %v1363 = vpack.c.b16 %v1353, %v1352
        %v1364 = vpack.c.b16 %v1355, %v1354
        %v1365 = vpack.c.b16 %v1357, %v1356
        %1374 = vmatprep.subr.bf16.mxu0 0
        %1375 = vmatpush1.bf16.msra.mxu0 %v1358
        %1376 = vmatprep.subr.bf16.mxu0 0
        %1377 = vmatpush1.bf16.msra.mxu0 %v1359
        %1378 = vmatprep.subr.bf16.mxu0 0
        %1379 = vmatpush1.bf16.msra.mxu0 %v1360
        %1380 = vmatprep.subr.bf16.mxu0 0
        %1381 = vmatpush1.bf16.msra.mxu0 %v1361
        %1382 = vmatprep.subr.bf16.mxu0 0
        %1383 = vmatpush1.bf16.msra.mxu0 %v1362
        %1384 = vmatprep.subr.bf16.mxu0 0
        %1385 = vmatpush1.bf16.msra.mxu0 %v1363
        %1386 = vmatprep.subr.bf16.mxu0 0
        %1387 = vmatpush1.bf16.msra.mxu0 %v1364
        %1388 = vmatprep.subr.bf16.mxu0 0
        %1389 = vmatpush1.bf16.msra.mxu0 %v1365
        %1390 = vmatprep.subr.bf16.mxu0 0
        %1391 = vmatpush1.bf16.msra.mxu0 0
        %1392 = vmatprep.subr.bf16.mxu0 0
        %1393 = vmatpush1.bf16.msra.mxu0 0
        %1394 = vmatprep.subr.bf16.mxu0 0
        %1395 = vmatpush1.bf16.msra.mxu0 0
        %1396 = vmatprep.subr.bf16.mxu0 0
        %1397 = vmatpush1.bf16.msra.mxu0 0
        %1398 = vmatprep.subr.bf16.mxu0 0
        %1399 = vmatpush1.bf16.msra.mxu0 0
        %1400 = vmatprep.subr.bf16.mxu0 0
        %1401 = vmatpush1.bf16.msra.mxu0 0
        %1402 = vmatprep.subr.bf16.mxu0 0
        %1403 = vmatpush1.bf16.msra.mxu0 0
        %1404 = vmatprep.subr.bf16.mxu0 0
        %1405 = vmatpush1.bf16.msra.mxu0 0
        %1406 = vmatprep.mubr.bf16.mxu0 0
        %1407 = vmatmul.mubr.bf16.gmra.mrb[0].mxu0 %v1309
        %v1408 = vpop.f32.mrb[0].mxu0
        %v1409 = vadd.f32 0.0, %v1408
        %v1410 = vpop.f32.mrb[0].mxu0
        %v1411 = vpop.f32.mrb[0].mxu0
        %v1412 = vpop.f32.mrb[0].mxu0
        %1413 = vdwg.mxu0
        %v1414 = vadd.f32 %v421, %v1409
        %v1415 = vmul.f32 %v1414, %v1414
        %1416 = vadd.xlane.f32.xlu0 %v1415
        %v1417 = vpop.xlane.xlu0 %1416
        %v1418 = vmul.f32 %v1417, %v425
        %v1419 = vadd.f32 %v1418, 1e-06
        %v1420 = vrsqrt.pop %v1419
        %v1421 = vmul.f32 %v1414, %v1420
        %v1422 = vld [vmem:[%s5] sm:$0x1]
        %v1423 = vunpack.c.l.bf16 %v1422
        %v1424 = vlaneseq
        %v1425 = vshrl.u32 %v1424, 7
        %v1426 = vsub.s32 0, %v1425
        %v1427 = vrot.slane %v1423, %v1426
        %v1428 = vmul.f32 %v1421, %v1427
        %v1429 = vpack.c.bf16 %v1428, %v1428
        %v1430 = vld [vmem:[%s8] sm:$0xff]
        %v1431 = vld [vmem:[%s8 + $0x8] sm:$0xff]
        %v1432 = vld [vmem:[%s8 + $0x10] sm:$0xff]
        %v1433 = vld [vmem:[%s8 + $0x18] sm:$0xff]
        %v1434 = vld [vmem:[%s8 + $0x20] sm:$0xff]
        %v1435 = vld [vmem:[%s8 + $0x28] sm:$0xff]
        %v1436 = vld [vmem:[%s8 + $0x30] sm:$0xff]
        %v1437 = vld [vmem:[%s8 + $0x38] sm:$0xff]
        %v1438 = vld [vmem:[%s8 + $0x40] sm:$0xff]
        %v1439 = vld [vmem:[%s8 + $0x48] sm:$0xff]
        %v1440 = vld [vmem:[%s8 + $0x50] sm:$0xff]
        %v1441 = vld [vmem:[%s8 + $0x58] sm:$0xff]
        %v1442 = vld [vmem:[%s8 + $0x60] sm:$0xff]
        %v1443 = vld [vmem:[%s8 + $0x68] sm:$0xff]
        %v1444 = vld [vmem:[%s8 + $0x70] sm:$0xff]
        %v1445 = vld [vmem:[%s8 + $0x78] sm:$0xff]
        %v1446 = vld [vmem:[%s8 + $0x80] sm:$0xff]
        %v1447 = vld [vmem:[%s8 + $0x88] sm:$0xff]
        %v1448 = vld [vmem:[%s8 + $0x90] sm:$0xff]
        %v1449 = vld [vmem:[%s8 + $0x98] sm:$0xff]
        %v1450 = vld [vmem:[%s8 + $0xa0] sm:$0xff]
        %v1451 = vld [vmem:[%s8 + $0xa8] sm:$0xff]
        %v1452 = vld [vmem:[%s8 + $0xb0] sm:$0xff]
        %v1453 = vld [vmem:[%s8 + $0xb8] sm:$0xff]
        %v1454 = vld [vmem:[%s8 + $0xc0] sm:$0xff]
        %v1455 = vld [vmem:[%s8 + $0xc8] sm:$0xff]
        %v1456 = vld [vmem:[%s8 + $0xd0] sm:$0xff]
        %v1457 = vld [vmem:[%s8 + $0xd8] sm:$0xff]
        %v1458 = vld [vmem:[%s8 + $0xe0] sm:$0xff]
        %v1459 = vld [vmem:[%s8 + $0xe8] sm:$0xff]
        %v1460 = vld [vmem:[%s8 + $0xf0] sm:$0xff]
        %v1461 = vld [vmem:[%s8 + $0xf8] sm:$0xff]
        %v1494 = vunpack.c.l.b16 %v1430
        %v1495 = vunpack.c.h.b16 %v1430
        %v1496 = vunpack.c.l.b16 %v1431
        %v1497 = vunpack.c.h.b16 %v1431
        %v1498 = vunpack.c.l.b16 %v1432
        %v1499 = vunpack.c.h.b16 %v1432
        %v1500 = vunpack.c.l.b16 %v1433
        %v1501 = vunpack.c.h.b16 %v1433
        %v1502 = vunpack.c.l.b16 %v1434
        %v1503 = vunpack.c.h.b16 %v1434
        %v1504 = vunpack.c.l.b16 %v1435
        %v1505 = vunpack.c.h.b16 %v1435
        %v1506 = vunpack.c.l.b16 %v1436
        %v1507 = vunpack.c.h.b16 %v1436
        %v1508 = vunpack.c.l.b16 %v1437
        %v1509 = vunpack.c.h.b16 %v1437
        %v1510 = vunpack.c.l.b16 %v1438
        %v1511 = vunpack.c.h.b16 %v1438
        %v1512 = vunpack.c.l.b16 %v1439
        %v1513 = vunpack.c.h.b16 %v1439
        %v1514 = vunpack.c.l.b16 %v1440
        %v1515 = vunpack.c.h.b16 %v1440
        %v1516 = vunpack.c.l.b16 %v1441
        %v1517 = vunpack.c.h.b16 %v1441
        %v1518 = vunpack.c.l.b16 %v1442
        %v1519 = vunpack.c.h.b16 %v1442
        %v1520 = vunpack.c.l.b16 %v1443
        %v1521 = vunpack.c.h.b16 %v1443
        %v1522 = vunpack.c.l.b16 %v1444
        %v1523 = vunpack.c.h.b16 %v1444
        %v1524 = vunpack.c.l.b16 %v1445
        %v1525 = vunpack.c.h.b16 %v1445
        %v1526 = vunpack.c.l.b16 %v1446
        %v1527 = vunpack.c.h.b16 %v1446
        %v1528 = vunpack.c.l.b16 %v1447
        %v1529 = vunpack.c.h.b16 %v1447
        %v1530 = vunpack.c.l.b16 %v1448
        %v1531 = vunpack.c.h.b16 %v1448
        %v1532 = vunpack.c.l.b16 %v1449
        %v1533 = vunpack.c.h.b16 %v1449
        %v1534 = vunpack.c.l.b16 %v1450
        %v1535 = vunpack.c.h.b16 %v1450
        %v1536 = vunpack.c.l.b16 %v1451
        %v1537 = vunpack.c.h.b16 %v1451
        %v1538 = vunpack.c.l.b16 %v1452
        %v1539 = vunpack.c.h.b16 %v1452
        %v1540 = vunpack.c.l.b16 %v1453
        %v1541 = vunpack.c.h.b16 %v1453
        %v1542 = vunpack.c.l.b16 %v1454
        %v1543 = vunpack.c.h.b16 %v1454
        %v1544 = vunpack.c.l.b16 %v1455
        %v1545 = vunpack.c.h.b16 %v1455
        %v1546 = vunpack.c.l.b16 %v1456
        %v1547 = vunpack.c.h.b16 %v1456
        %v1548 = vunpack.c.l.b16 %v1457
        %v1549 = vunpack.c.h.b16 %v1457
        %v1550 = vunpack.c.l.b16 %v1458
        %v1551 = vunpack.c.h.b16 %v1458
        %v1552 = vunpack.c.l.b16 %v1459
        %v1553 = vunpack.c.h.b16 %v1459
        %v1554 = vunpack.c.l.b16 %v1460
        %v1555 = vunpack.c.h.b16 %v1460
        %v1556 = vunpack.c.l.b16 %v1461
        %v1557 = vunpack.c.h.b16 %v1461
        %v1558 = vpack.c.b16 %v1498, %v1494
        %v1559 = vpack.c.b16 %v1499, %v1495
        %v1560 = vpack.c.b16 %v1500, %v1496
        %v1561 = vpack.c.b16 %v1501, %v1497
        %v1562 = vpack.c.b16 %v1506, %v1502
        %v1563 = vpack.c.b16 %v1507, %v1503
        %v1564 = vpack.c.b16 %v1508, %v1504
        %v1565 = vpack.c.b16 %v1509, %v1505
        %v1566 = vpack.c.b16 %v1514, %v1510
        %v1567 = vpack.c.b16 %v1515, %v1511
        %v1568 = vpack.c.b16 %v1516, %v1512
        %v1569 = vpack.c.b16 %v1517, %v1513
        %v1570 = vpack.c.b16 %v1522, %v1518
        %v1571 = vpack.c.b16 %v1523, %v1519
        %v1572 = vpack.c.b16 %v1524, %v1520
        %v1573 = vpack.c.b16 %v1525, %v1521
        %v1574 = vpack.c.b16 %v1530, %v1526
        %v1575 = vpack.c.b16 %v1531, %v1527
        %v1576 = vpack.c.b16 %v1532, %v1528
        %v1577 = vpack.c.b16 %v1533, %v1529
        %v1578 = vpack.c.b16 %v1538, %v1534
        %v1579 = vpack.c.b16 %v1539, %v1535
        %v1580 = vpack.c.b16 %v1540, %v1536
        %v1581 = vpack.c.b16 %v1541, %v1537
        %v1582 = vpack.c.b16 %v1546, %v1542
        %v1583 = vpack.c.b16 %v1547, %v1543
        %v1584 = vpack.c.b16 %v1548, %v1544
        %v1585 = vpack.c.b16 %v1549, %v1545
        %v1586 = vpack.c.b16 %v1554, %v1550
        %v1587 = vpack.c.b16 %v1555, %v1551
        %v1588 = vpack.c.b16 %v1556, %v1552
        %v1589 = vpack.c.b16 %v1557, %v1553
        %1622 = vmatprep.subr.bf16.mxu0 %v1559
        %1623 = vmatpush1.bf16.msra.mxu0 %v1558
        %1624 = vmatprep.subr.bf16.mxu0 %v1563
        %1625 = vmatpush1.bf16.msra.mxu0 %v1562
        %1626 = vmatprep.subr.bf16.mxu0 %v1567
        %1627 = vmatpush1.bf16.msra.mxu0 %v1566
        %1628 = vmatprep.subr.bf16.mxu0 %v1571
        %1629 = vmatpush1.bf16.msra.mxu0 %v1570
        %1630 = vmatprep.subr.bf16.mxu0 %v1575
        %1631 = vmatpush1.bf16.msra.mxu0 %v1574
        %1632 = vmatprep.subr.bf16.mxu0 %v1579
        %1633 = vmatpush1.bf16.msra.mxu0 %v1578
        %1634 = vmatprep.subr.bf16.mxu0 %v1583
        %1635 = vmatpush1.bf16.msra.mxu0 %v1582
        %1636 = vmatprep.subr.bf16.mxu0 %v1587
        %1637 = vmatpush1.bf16.msra.mxu0 %v1586
        %1638 = vmatprep.subr.bf16.mxu0 0
        %1639 = vmatpush1.bf16.msra.mxu0 0
        %1640 = vmatprep.subr.bf16.mxu0 0
        %1641 = vmatpush1.bf16.msra.mxu0 0
        %1642 = vmatprep.subr.bf16.mxu0 0
        %1643 = vmatpush1.bf16.msra.mxu0 0
        %1644 = vmatprep.subr.bf16.mxu0 0
        %1645 = vmatpush1.bf16.msra.mxu0 0
        %1646 = vmatprep.subr.bf16.mxu0 0
        %1647 = vmatpush1.bf16.msra.mxu0 0
        %1648 = vmatprep.subr.bf16.mxu0 0
        %1649 = vmatpush1.bf16.msra.mxu0 0
        %1650 = vmatprep.subr.bf16.mxu0 0
        %1651 = vmatpush1.bf16.msra.mxu0 0
        %1652 = vmatprep.subr.bf16.mxu0 0
        %1653 = vmatpush1.bf16.msra.mxu0 0
        %1654 = vmatprep.mubr.bf16.mxu0 0
        %1655 = vmatmul.mubr.bf16.gmra.mrb[0].mxu0 %v1429
        %v1656 = vpop.f32.mrb[0].mxu0
        %v1657 = vadd.f32 0.0, %v1656
        %v1658 = vpop.f32.mrb[0].mxu0
        %v1659 = vadd.f32 0.0, %v1658
        %v1660 = vpop.f32.mrb[0].mxu0
        %v1661 = vpop.f32.mrb[0].mxu0
        %1662 = vdwg.mxu0
        %1663 = vmatprep.subr.bf16.mxu0 %v1561
        %1664 = vmatpush1.bf16.msra.mxu0 %v1560
        %1665 = vmatprep.subr.bf16.mxu0 %v1565
        %1666 = vmatpush1.bf16.msra.mxu0 %v1564
        %1667 = vmatprep.subr.bf16.mxu0 %v1569
        %1668 = vmatpush1.bf16.msra.mxu0 %v1568
        %1669 = vmatprep.subr.bf16.mxu0 %v1573
        %1670 = vmatpush1.bf16.msra.mxu0 %v1572
        %1671 = vmatprep.subr.bf16.mxu0 %v1577
        %1672 = vmatpush1.bf16.msra.mxu0 %v1576
        %1673 = vmatprep.subr.bf16.mxu0 %v1581
        %1674 = vmatpush1.bf16.msra.mxu0 %v1580
        %1675 = vmatprep.subr.bf16.mxu0 %v1585
        %1676 = vmatpush1.bf16.msra.mxu0 %v1584
        %1677 = vmatprep.subr.bf16.mxu0 %v1589
        %1678 = vmatpush1.bf16.msra.mxu0 %v1588
        %1679 = vmatprep.subr.bf16.mxu0 0
        %1680 = vmatpush1.bf16.msra.mxu0 0
        %1681 = vmatprep.subr.bf16.mxu0 0
        %1682 = vmatpush1.bf16.msra.mxu0 0
        %1683 = vmatprep.subr.bf16.mxu0 0
        %1684 = vmatpush1.bf16.msra.mxu0 0
        %1685 = vmatprep.subr.bf16.mxu0 0
        %1686 = vmatpush1.bf16.msra.mxu0 0
        %1687 = vmatprep.subr.bf16.mxu0 0
        %1688 = vmatpush1.bf16.msra.mxu0 0
        %1689 = vmatprep.subr.bf16.mxu0 0
        %1690 = vmatpush1.bf16.msra.mxu0 0
        %1691 = vmatprep.subr.bf16.mxu0 0
        %1692 = vmatpush1.bf16.msra.mxu0 0
        %1693 = vmatprep.subr.bf16.mxu0 0
        %1694 = vmatpush1.bf16.msra.mxu0 0
        %1695 = vmatprep.mubr.bf16.mxu0 0
        %1696 = vmatmul.mubr.bf16.gmra.mrb[0].mxu0 %v1429
        %v1697 = vpop.f32.mrb[0].mxu0
        %v1698 = vadd.f32 0.0, %v1697
        %v1699 = vpop.f32.mrb[0].mxu0
        %v1700 = vadd.f32 0.0, %v1699
        %v1701 = vpop.f32.mrb[0].mxu0
        %v1702 = vpop.f32.mrb[0].mxu0
        %1703 = vdwg.mxu0
        %v1704 = vxor.u32 %v1657, 2147483648
        %v1705 = vxor.u32 %v1659, 2147483648
        %v1706 = vmul.f32 %v1704, 1.442695
        %v1707 = vpow.pop %v1706
        %v1708 = vmul.f32 %v1705, 1.442695
        %v1709 = vpow.pop %v1708
        %v1710 = vadd.f32 %v1707, 1.0
        %v1711 = vadd.f32 %v1709, 1.0
        %v1712 = vrcp.pop %v1710
        %v1713 = vmul.f32 1.0, %v1712
        %v1714 = vrcp.pop %v1711
        %v1715 = vmul.f32 1.0, %v1714
        %v1716 = vmul.f32 %v1657, %v1713
        %v1717 = vmul.f32 %v1659, %v1715
        %v1718 = vmul.f32 %v1716, %v1698
        %v1719 = vmul.f32 %v1717, %v1700
        %v1720 = vpack.c.bf16 %v1718, %v1718
        %v1721 = vpack.c.bf16 %v1719, %v1719
        %v1722 = vld [vmem:[#allocation5] sm:$0xf]
        %v1723 = vld [vmem:[#allocation5 + $0x4] sm:$0xf]
        %v1724 = vld [vmem:[#allocation5 + $0x8] sm:$0xf]
        %v1725 = vld [vmem:[#allocation5 + $0xc] sm:$0xf]
        %v1726 = vld [vmem:[#allocation5 + $0x10] sm:$0xf]
        %v1727 = vld [vmem:[#allocation5 + $0x14] sm:$0xf]
        %v1728 = vld [vmem:[#allocation5 + $0x18] sm:$0xf]
        %v1729 = vld [vmem:[#allocation5 + $0x1c] sm:$0xf]
        %v1730 = vld [vmem:[#allocation5 + $0x20] sm:$0xf]
        %v1731 = vld [vmem:[#allocation5 + $0x24] sm:$0xf]
        %v1732 = vld [vmem:[#allocation5 + $0x28] sm:$0xf]
        %v1733 = vld [vmem:[#allocation5 + $0x2c] sm:$0xf]
        %v1734 = vld [vmem:[#allocation5 + $0x30] sm:$0xf]
        %v1735 = vld [vmem:[#allocation5 + $0x34] sm:$0xf]
        %v1736 = vld [vmem:[#allocation5 + $0x38] sm:$0xf]
        %v1737 = vld [vmem:[#allocation5 + $0x3c] sm:$0xf]
        %v1738 = vld [vmem:[#allocation5 + $0x40] sm:$0xf]
        %v1739 = vld [vmem:[#allocation5 + $0x44] sm:$0xf]
        %v1740 = vld [vmem:[#allocation5 + $0x48] sm:$0xf]
        %v1741 = vld [vmem:[#allocation5 + $0x4c] sm:$0xf]
        %v1742 = vld [vmem:[#allocation5 + $0x50] sm:$0xf]
        %v1743 = vld [vmem:[#allocation5 + $0x54] sm:$0xf]
        %v1744 = vld [vmem:[#allocation5 + $0x58] sm:$0xf]
        %v1745 = vld [vmem:[#allocation5 + $0x5c] sm:$0xf]
        %v1746 = vld [vmem:[#allocation5 + $0x60] sm:$0xf]
        %v1747 = vld [vmem:[#allocation5 + $0x64] sm:$0xf]
        %v1748 = vld [vmem:[#allocation5 + $0x68] sm:$0xf]
        %v1749 = vld [vmem:[#allocation5 + $0x6c] sm:$0xf]
        %v1750 = vld [vmem:[#allocation5 + $0x70] sm:$0xf]
        %v1751 = vld [vmem:[#allocation5 + $0x74] sm:$0xf]
        %v1752 = vld [vmem:[#allocation5 + $0x78] sm:$0xf]
        %v1753 = vld [vmem:[#allocation5 + $0x7c] sm:$0xf]
        %v1786 = vunpack.c.l.b16 %v1722
        %v1787 = vunpack.c.l.b16 %v1723
        %v1788 = vunpack.c.l.b16 %v1724
        %v1789 = vunpack.c.l.b16 %v1725
        %v1790 = vunpack.c.l.b16 %v1726
        %v1791 = vunpack.c.l.b16 %v1727
        %v1792 = vunpack.c.l.b16 %v1728
        %v1793 = vunpack.c.l.b16 %v1729
        %v1794 = vunpack.c.l.b16 %v1730
        %v1795 = vunpack.c.l.b16 %v1731
        %v1796 = vunpack.c.l.b16 %v1732
        %v1797 = vunpack.c.l.b16 %v1733
        %v1798 = vunpack.c.l.b16 %v1734
        %v1799 = vunpack.c.l.b16 %v1735
        %v1800 = vunpack.c.l.b16 %v1736
        %v1801 = vunpack.c.l.b16 %v1737
        %v1802 = vunpack.c.l.b16 %v1738
        %v1803 = vunpack.c.l.b16 %v1739
        %v1804 = vunpack.c.l.b16 %v1740
        %v1805 = vunpack.c.l.b16 %v1741
        %v1806 = vunpack.c.l.b16 %v1742
        %v1807 = vunpack.c.l.b16 %v1743
        %v1808 = vunpack.c.l.b16 %v1744
        %v1809 = vunpack.c.l.b16 %v1745
        %v1810 = vunpack.c.l.b16 %v1746
        %v1811 = vunpack.c.l.b16 %v1747
        %v1812 = vunpack.c.l.b16 %v1748
        %v1813 = vunpack.c.l.b16 %v1749
        %v1814 = vunpack.c.l.b16 %v1750
        %v1815 = vunpack.c.l.b16 %v1751
        %v1816 = vunpack.c.l.b16 %v1752
        %v1817 = vunpack.c.l.b16 %v1753
        %v1818 = vpack.c.b16 %v1787, %v1786
        %v1819 = vpack.c.b16 %v1789, %v1788
        %v1820 = vpack.c.b16 %v1791, %v1790
        %v1821 = vpack.c.b16 %v1793, %v1792
        %v1822 = vpack.c.b16 %v1795, %v1794
        %v1823 = vpack.c.b16 %v1797, %v1796
        %v1824 = vpack.c.b16 %v1799, %v1798
        %v1825 = vpack.c.b16 %v1801, %v1800
        %v1826 = vpack.c.b16 %v1803, %v1802
        %v1827 = vpack.c.b16 %v1805, %v1804
        %v1828 = vpack.c.b16 %v1807, %v1806
        %v1829 = vpack.c.b16 %v1809, %v1808
        %v1830 = vpack.c.b16 %v1811, %v1810
        %v1831 = vpack.c.b16 %v1813, %v1812
        %v1832 = vpack.c.b16 %v1815, %v1814
        %v1833 = vpack.c.b16 %v1817, %v1816
        %1850 = vmatprep.subr.bf16.mxu0 0
        %1851 = vmatpush1.bf16.msra.mxu0 %v1818
        %1852 = vmatprep.subr.bf16.mxu0 0
        %1853 = vmatpush1.bf16.msra.mxu0 %v1819
        %1854 = vmatprep.subr.bf16.mxu0 0
        %1855 = vmatpush1.bf16.msra.mxu0 %v1820
        %1856 = vmatprep.subr.bf16.mxu0 0
        %1857 = vmatpush1.bf16.msra.mxu0 %v1821
        %1858 = vmatprep.subr.bf16.mxu0 0
        %1859 = vmatpush1.bf16.msra.mxu0 %v1822
        %1860 = vmatprep.subr.bf16.mxu0 0
        %1861 = vmatpush1.bf16.msra.mxu0 %v1823
        %1862 = vmatprep.subr.bf16.mxu0 0
        %1863 = vmatpush1.bf16.msra.mxu0 %v1824
        %1864 = vmatprep.subr.bf16.mxu0 0
        %1865 = vmatpush1.bf16.msra.mxu0 %v1825
        %1866 = vmatprep.subr.bf16.mxu0 0
        %1867 = vmatpush1.bf16.msra.mxu0 %v1826
        %1868 = vmatprep.subr.bf16.mxu0 0
        %1869 = vmatpush1.bf16.msra.mxu0 %v1827
        %1870 = vmatprep.subr.bf16.mxu0 0
        %1871 = vmatpush1.bf16.msra.mxu0 %v1828
        %1872 = vmatprep.subr.bf16.mxu0 0
        %1873 = vmatpush1.bf16.msra.mxu0 %v1829
        %1874 = vmatprep.subr.bf16.mxu0 0
        %1875 = vmatpush1.bf16.msra.mxu0 %v1830
        %1876 = vmatprep.subr.bf16.mxu0 0
        %1877 = vmatpush1.bf16.msra.mxu0 %v1831
        %1878 = vmatprep.subr.bf16.mxu0 0
        %1879 = vmatpush1.bf16.msra.mxu0 %v1832
        %1880 = vmatprep.subr.bf16.mxu0 0
        %1881 = vmatpush1.bf16.msra.mxu0 %v1833
        %1882 = vmatprep.mubr.bf16.mxu0 %v1721
        %1883 = vmatmul.mubr.bf16.gmra.mrb[0].mxu0 %v1720
        %v1884 = vpop.f32.mrb[0].mxu0
        %v1885 = vadd.f32 0.0, %v1884
        %v1886 = vpop.f32.mrb[0].mxu0
        %v1887 = vpop.f32.mrb[0].mxu0
        %v1888 = vpop.f32.mrb[0].mxu0
        %1889 = vdwg.mxu0
        %v1890 = vadd.f32 %v1414, %v1885
        %v1891 = vpack.c.bf16 %v1890, %v1890
        %1892 = vst [vmem:[%s418] sm:$0xf] %v1891
        %p1893 = scmp.lt.s32.totalorder %s23, 1
        %s1894 = scalar_select %p1893, %s23, 1
        %s1895 = smul.addr %s1894, 4
        %s1896 = scalar_lea.vmem %s10, %s1895
        // Predicated region
        $region69: #{llama_embedding_forward.3} parent=59 // pred_check
          %p1897 = pneg %p266
        $region70: #{llama_embedding_forward.3} parent=59 // pred_check_branch
          %1899 = sbr.rel (%p1897) target = $region72
        $region71: #{llama_embedding_forward.3} parent=59 // pred_region
          _
        $region72: #{llama_embedding_forward.3} parent=59 // pred_fallthru
          _
      $region60: #{llama_embedding_forward.3} parent=5 // pred_fallthru
        _
      %p1900 = scmp.le.s32.totalorder 2, %s18
      // Predicated region
      $region73: #{llama_embedding_forward.3} parent=5 // pred_check
        %p1901 = pneg %p1900
      $region74: #{llama_embedding_forward.3} parent=5 // pred_check_branch
        %1903 = sbr.rel (%p1901) target = $region76
      $region75: #{llama_embedding_forward.3} parent=5 // pred_region
        %s1904 = ssub.s32 %s18, 2
        // Predicated region
        $region77: #{llama_embedding_forward.3} parent=75 // pred_check
          %p1905 = pneg %p272
        $region78: #{llama_embedding_forward.3} parent=75 // pred_check_branch
          %1907 = sbr.rel (%p1905) target = $region80
        $region79: #{llama_embedding_forward.3} parent=75 // pred_region
          %p1908 = scmp.lt.s32.totalorder %s24, 1
          %s1909 = scalar_select %p1908, %s24, 1
          %s1910 = smul.addr %s1909, 4
          %s1911 = scalar_lea.vmem %s10, %s1910
        $region80: #{llama_embedding_forward.3} parent=75 // pred_fallthru
          _
      $region76: #{llama_embedding_forward.3} parent=5 // pred_fallthru
        _
    $region6: #{llama_embedding_forward.3} parent=1 // loop_footer
      %s22 = sadd.s32 1, %s18
    $region7: #{llama_embedding_forward.3} parent=1 // loop_footer_branch
      %17 = sbr.rel target = $region3
    $region8: #{llama_embedding_forward.3} parent=1 // loop_exit
      _
    %1912 = vsyncpa [#allocation4], 1
    %s1913 = scalar_lea.sflag [#allocation4], 1
    %1914 = vsyncpa %s1913, 1
    %1915 = vsyncpa [#allocation6], 1

// kernel: llama_embedding_forward.4
$region0: #{llama_embedding_forward.4}
  #allocation0 [shape = 'u32[]', space=smem, size = 0x4, offset = 0x4, fixed_abs, tag = 'smem constant byte address 0x4 - core index']
  #allocation1 [shape = 'u32[144,128]{1,0:T(1,128)}', space=vmem, size = 0x12000, scoped, tag = 'internal scratch']
  #allocation2 [shape = 'f32[8,128]{1,0:T(8,128)}', space=vmem, size = 0x1000, scoped, tag = 'scratch operand']
  %s0 = inlined_call_operand.vmem [shape: bf16[2,8,128], index: 0, kind: input, shape index: {}]
  %s1 = inlined_call_operand.vmem [shape: f32[2,8,128], index: 1, kind: input, shape index: {}]
  %s2 = inlined_call_operand.vmem [shape: f32[2,8,128], index: 2, kind: input, shape index: {}]
  %s3 = inlined_call_operand.vmem [shape: bf16[128,128], index: 3, kind: input, shape index: {}]
  %s4 = inlined_call_operand.vmem [shape: bf16[1,128], index: 4, kind: input, shape index: {}]
  %s5 = inlined_call_operand.vmem [shape: bf16[1,128], index: 5, kind: input, shape index: {}]
  %s6 = inlined_call_operand.vmem [shape: bf16[128,384], index: 6, kind: input, shape index: {}]
  %s7 = inlined_call_operand.vmem [shape: bf16[128,128], index: 7, kind: input, shape index: {}]
  %s8 = inlined_call_operand.vmem [shape: bf16[128,512], index: 8, kind: input, shape index: {}]
  %s9 = inlined_call_operand.vmem [shape: bf16[256,128], index: 9, kind: input, shape index: {}]
  %s10 = inlined_call_operand.vmem [shape: bf16[2,8,128], index: 10, kind: output, shape index: {}]
  %s11 = sld [smem:[#allocation0]]
  $region73: #{llama_embedding_forward.4} parent=0
    _
  %s13 = ssub.s32 1, %s11
  %s14 = scalar_select 0, %s13, %s11
  loop: start=0, step=1, limit=4
  $region2: #{llama_embedding_forward.4} parent=0 // loop_pre_header
    _
  $region3: #{llama_embedding_forward.4} parent=0 // loop_header
    %s16 = sphi 0, %s20
    %p17 = scmp.ge.s32.totalorder %s16, 4
    %s26 = sphi 0, %s28
    %s29 = sphi 0, %s26
    %s30 = sphi 0, %s29
    %s46 = sphi 0, %s30
    %s52 = sphi 0, %s54
    %s55 = sphi 0, %s52
    %s56 = sphi 0, %s55
    %s72 = sphi 0, %s56
    %s78 = sphi 0, %s80
    %s81 = sphi 0, %s78
    %s82 = sphi 0, %s81
    %s98 = sphi 0, %s82
    %s102 = sphi 0, %s102
    %s104 = sphi 0, %s102
    %s105 = sphi 0, %s104
    %s119 = sphi 0, %s105
    %s123 = sphi 0, %s123
    %s125 = sphi 0, %s123
    %s126 = sphi 0, %s125
    %s140 = sphi 0, %s126
    %s144 = sphi 0, %s144
    %s146 = sphi 0, %s144
    %s147 = sphi 0, %s146
    %s161 = sphi 0, %s147
    %s165 = sphi 0, %s165
    %s167 = sphi 0, %s165
    %s168 = sphi 0, %s167
    %s182 = sphi 0, %s168
    %s186 = sphi 0, %s186
    %s188 = sphi 0, %s186
    %s189 = sphi 0, %s188
    %s203 = sphi 0, %s189
    %s207 = sphi 0, %s207
    %s209 = sphi 0, %s207
    %s210 = sphi 0, %s209
    %s224 = sphi 0, %s210
    %s228 = sphi 0, %s228
    %s230 = sphi 0, %s228
    %s231 = sphi 0, %s230
    %s245 = sphi 0, %s231
    %s251 = sphi 0, %s253
    %s254 = sphi 0, %s251
    %s255 = sphi 0, %s254
    %s271 = sphi 0, %s255
  $region4: #{llama_embedding_forward.4} parent=0 // loop_header_branch
    %19 = sbr.rel (%p17) target = $region8
  $region5: #{llama_embedding_forward.4} parent=0 // loop_body
    %s21 = ssub.s32 %s16, 1
    %s22 = ssub.s32 %s16, 2
    %s23 = sadd.s32 %s16, 1
    %s24 = ssub.s32 %s16, %s23
    %p25 = scmp.eq.s32.totalorder %s24, 0
    %s27 = sadd.s32 %s26, 1
    %s28 = scalar_select %p25, %s26, %s27
    %p31 = pneg %p25
    %p32 = scmp.eq.s32.totalorder %s16, 1
    %p33 = por %p31, %p32
    %p34 = scmp.ne.s32.totalorder %s26, %s29
    %p35 = scmp.eq.s32.totalorder %s16, 0
    %p36 = por %p34, %p35
    %p37 = scmp.ne.s32.totalorder %s26, %s29
    %p38 = scmp.eq.s32.totalorder %s21, 1
    %p39 = por %p37, %p38
    %p40 = scmp.ne.s32.totalorder %s29, %s30
    %p41 = scmp.eq.s32.totalorder %s21, 0
    %p42 = por %p40, %p41
    %p43 = scmp.ne.s32.totalorder %s29, %s30
    %p44 = scmp.eq.s32.totalorder %s22, 1
    %p45 = por %p43, %p44
    %p47 = scmp.ne.s32.totalorder %s30, %s46
    %p48 = scmp.eq.s32.totalorder %s22, 0
    %p49 = por %p47, %p48
    %s50 = ssub.s32 %s16, %s23
    %p51 = scmp.eq.s32.totalorder %s50, 0
    %s53 = sadd.s32 %s52, 1
    %s54 = scalar_select %p51, %s52, %s53
    %p57 = pneg %p51
    %p58 = scmp.eq.s32.totalorder %s16, 1
    %p59 = por %p57, %p58
    %p60 = scmp.ne.s32.totalorder %s52, %s55
    %p61 = scmp.eq.s32.totalorder %s16, 0
    %p62 = por %p60, %p61
    %p63 = scmp.ne.s32.totalorder %s52, %s55
    %p64 = scmp.eq.s32.totalorder %s21, 1
    %p65 = por %p63, %p64
    %p66 = scmp.ne.s32.totalorder %s55, %s56
    %p67 = scmp.eq.s32.totalorder %s21, 0
    %p68 = por %p66, %p67
    %p69 = scmp.ne.s32.totalorder %s55, %s56
    %p70 = scmp.eq.s32.totalorder %s22, 1
    %p71 = por %p69, %p70
    %p73 = scmp.ne.s32.totalorder %s56, %s72
    %p74 = scmp.eq.s32.totalorder %s22, 0
    %p75 = por %p73, %p74
    %s76 = ssub.s32 %s16, %s23
    %p77 = scmp.eq.s32.totalorder %s76, 0
    %s79 = sadd.s32 %s78, 1
    %s80 = scalar_select %p77, %s78, %s79
    %p83 = pneg %p77
    %p84 = scmp.eq.s32.totalorder %s16, 1
    %p85 = por %p83, %p84
    %p86 = scmp.ne.s32.totalorder %s78, %s81
    %p87 = scmp.eq.s32.totalorder %s16, 0
    %p88 = por %p86, %p87
    %p89 = scmp.ne.s32.totalorder %s78, %s81
    %p90 = scmp.eq.s32.totalorder %s21, 1
    %p91 = por %p89, %p90
    %p92 = scmp.ne.s32.totalorder %s81, %s82
    %p93 = scmp.eq.s32.totalorder %s21, 0
    %p94 = por %p92, %p93
    %p95 = scmp.ne.s32.totalorder %s81, %s82
    %p96 = scmp.eq.s32.totalorder %s22, 1
    %p97 = por %p95, %p96
    %p99 = scmp.ne.s32.totalorder %s82, %s98
    %p100 = scmp.eq.s32.totalorder %s22, 0
    %p101 = por %p99, %p100
    %s103 = sadd.s32 %s102, 1
    %p106 = scmp.eq.s32.totalorder %s16, 1
    %p107 = scmp.ne.s32.totalorder %s102, %s104
    %p108 = scmp.eq.s32.totalorder %s16, 0
    %p109 = por %p107, %p108
    %p110 = scmp.ne.s32.totalorder %s102, %s104
    %p111 = scmp.eq.s32.totalorder %s21, 1
    %p112 = por %p110, %p111
    %p113 = scmp.ne.s32.totalorder %s104, %s105
    %p114 = scmp.eq.s32.totalorder %s21, 0
    %p115 = por %p113, %p114
    %p116 = scmp.ne.s32.totalorder %s104, %s105
    %p117 = scmp.eq.s32.totalorder %s22, 1
    %p118 = por %p116, %p117
    %p120 = scmp.ne.s32.totalorder %s105, %s119
    %p121 = scmp.eq.s32.totalorder %s22, 0
    %p122 = por %p120, %p121
    %s124 = sadd.s32 %s123, 1
    %p127 = scmp.eq.s32.totalorder %s16, 1
    %p128 = scmp.ne.s32.totalorder %s123, %s125
    %p129 = scmp.eq.s32.totalorder %s16, 0
    %p130 = por %p128, %p129
    %p131 = scmp.ne.s32.totalorder %s123, %s125
    %p132 = scmp.eq.s32.totalorder %s21, 1
    %p133 = por %p131, %p132
    %p134 = scmp.ne.s32.totalorder %s125, %s126
    %p135 = scmp.eq.s32.totalorder %s21, 0
    %p136 = por %p134, %p135
    %p137 = scmp.ne.s32.totalorder %s125, %s126
    %p138 = scmp.eq.s32.totalorder %s22, 1
    %p139 = por %p137, %p138
    %p141 = scmp.ne.s32.totalorder %s126, %s140
    %p142 = scmp.eq.s32.totalorder %s22, 0
    %p143 = por %p141, %p142
    %s145 = sadd.s32 %s144, 1
    %p148 = scmp.eq.s32.totalorder %s16, 1
    %p149 = scmp.ne.s32.totalorder %s144, %s146
    %p150 = scmp.eq.s32.totalorder %s16, 0
    %p151 = por %p149, %p150
    %p152 = scmp.ne.s32.totalorder %s144, %s146
    %p153 = scmp.eq.s32.totalorder %s21, 1
    %p154 = por %p152, %p153
    %p155 = scmp.ne.s32.totalorder %s146, %s147
    %p156 = scmp.eq.s32.totalorder %s21, 0
    %p157 = por %p155, %p156
    %p158 = scmp.ne.s32.totalorder %s146, %s147
    %p159 = scmp.eq.s32.totalorder %s22, 1
    %p160 = por %p158, %p159
    %p162 = scmp.ne.s32.totalorder %s147, %s161
    %p163 = scmp.eq.s32.totalorder %s22, 0
    %p164 = por %p162, %p163
    %s166 = sadd.s32 %s165, 1
    %p169 = scmp.eq.s32.totalorder %s16, 1
    %p170 = scmp.ne.s32.totalorder %s165, %s167
    %p171 = scmp.eq.s32.totalorder %s16, 0
    %p172 = por %p170, %p171
    %p173 = scmp.ne.s32.totalorder %s165, %s167
    %p174 = scmp.eq.s32.totalorder %s21, 1
    %p175 = por %p173, %p174
    %p176 = scmp.ne.s32.totalorder %s167, %s168
    %p177 = scmp.eq.s32.totalorder %s21, 0
    %p178 = por %p176, %p177
    %p179 = scmp.ne.s32.totalorder %s167, %s168
    %p180 = scmp.eq.s32.totalorder %s22, 1
    %p181 = por %p179, %p180
    %p183 = scmp.ne.s32.totalorder %s168, %s182
    %p184 = scmp.eq.s32.totalorder %s22, 0
    %p185 = por %p183, %p184
    %s187 = sadd.s32 %s186, 1
    %p190 = scmp.eq.s32.totalorder %s16, 1
    %p191 = scmp.ne.s32.totalorder %s186, %s188
    %p192 = scmp.eq.s32.totalorder %s16, 0
    %p193 = por %p191, %p192
    %p194 = scmp.ne.s32.totalorder %s186, %s188
    %p195 = scmp.eq.s32.totalorder %s21, 1
    %p196 = por %p194, %p195
    %p197 = scmp.ne.s32.totalorder %s188, %s189
    %p198 = scmp.eq.s32.totalorder %s21, 0
    %p199 = por %p197, %p198
    %p200 = scmp.ne.s32.totalorder %s188, %s189
    %p201 = scmp.eq.s32.totalorder %s22, 1
    %p202 = por %p200, %p201
    %p204 = scmp.ne.s32.totalorder %s189, %s203
    %p205 = scmp.eq.s32.totalorder %s22, 0
    %p206 = por %p204, %p205
    %s208 = sadd.s32 %s207, 1
    %p211 = scmp.eq.s32.totalorder %s16, 1
    %p212 = scmp.ne.s32.totalorder %s207, %s209
    %p213 = scmp.eq.s32.totalorder %s16, 0
    %p214 = por %p212, %p213
    %p215 = scmp.ne.s32.totalorder %s207, %s209
    %p216 = scmp.eq.s32.totalorder %s21, 1
    %p217 = por %p215, %p216
    %p218 = scmp.ne.s32.totalorder %s209, %s210
    %p219 = scmp.eq.s32.totalorder %s21, 0
    %p220 = por %p218, %p219
    %p221 = scmp.ne.s32.totalorder %s209, %s210
    %p222 = scmp.eq.s32.totalorder %s22, 1
    %p223 = por %p221, %p222
    %p225 = scmp.ne.s32.totalorder %s210, %s224
    %p226 = scmp.eq.s32.totalorder %s22, 0
    %p227 = por %p225, %p226
    %s229 = sadd.s32 %s228, 1
    %p232 = scmp.eq.s32.totalorder %s16, 1
    %p233 = scmp.ne.s32.totalorder %s228, %s230
    %p234 = scmp.eq.s32.totalorder %s16, 0
    %p235 = por %p233, %p234
    %p236 = scmp.ne.s32.totalorder %s228, %s230
    %p237 = scmp.eq.s32.totalorder %s21, 1
    %p238 = por %p236, %p237
    %p239 = scmp.ne.s32.totalorder %s230, %s231
    %p240 = scmp.eq.s32.totalorder %s21, 0
    %p241 = por %p239, %p240
    %p242 = scmp.ne.s32.totalorder %s230, %s231
    %p243 = scmp.eq.s32.totalorder %s22, 1
    %p244 = por %p242, %p243
    %p246 = scmp.ne.s32.totalorder %s231, %s245
    %p247 = scmp.eq.s32.totalorder %s22, 0
    %p248 = por %p246, %p247
    %s249 = ssub.s32 %s16, %s23
    %p250 = scmp.eq.s32.totalorder %s249, 0
    %s252 = sadd.s32 %s251, 1
    %s253 = scalar_select %p250, %s251, %s252
    %p256 = pneg %p250
    %p257 = scmp.eq.s32.totalorder %s16, 1
    %p258 = por %p256, %p257
    %p259 = scmp.ne.s32.totalorder %s251, %s254
    %p260 = scmp.eq.s32.totalorder %s16, 0
    %p261 = por %p259, %p260
    %p262 = scmp.ne.s32.totalorder %s251, %s254
    %p263 = scmp.eq.s32.totalorder %s21, 1
    %p264 = por %p262, %p263
    %p265 = scmp.ne.s32.totalorder %s254, %s255
    %p266 = scmp.eq.s32.totalorder %s21, 0
    %p267 = por %p265, %p266
    %p268 = scmp.ne.s32.totalorder %s254, %s255
    %p269 = scmp.eq.s32.totalorder %s22, 1
    %p270 = por %p268, %p269
    %p272 = scmp.ne.s32.totalorder %s255, %s271
    %p273 = scmp.eq.s32.totalorder %s22, 0
    %p274 = por %p272, %p273
    %p275 = scmp.le.s32.totalorder 1, %s16
    %p276 = scmp.lt.s32.totalorder %s16, 3
    %p277 = pnand %p275, %p276
    %p278 = pneg %p277
    // Predicated region
    $region9: #{llama_embedding_forward.4} parent=5 // pred_check
      _
    $region10: #{llama_embedding_forward.4} parent=5 // pred_check_branch
      %280 = sbr.rel (%p277) target = $region12
    $region11: #{llama_embedding_forward.4} parent=5 // pred_region
      %s281 = ssub.s32 %s16, 1
      // Predicated region
      $region13: #{llama_embedding_forward.4} parent=11 // pred_check
        %p282 = pneg %p115
      $region14: #{llama_embedding_forward.4} parent=11 // pred_check_branch
        %284 = sbr.rel (%p282) target = $region16
      $region15: #{llama_embedding_forward.4} parent=11 // pred_region
        _
      $region16: #{llama_embedding_forward.4} parent=11 // pred_fallthru
        _
      // Predicated region
      $region17: #{llama_embedding_forward.4} parent=11 // pred_check
        %p285 = pneg %p136
      $region18: #{llama_embedding_forward.4} parent=11 // pred_check_branch
        %287 = sbr.rel (%p285) target = $region20
      $region19: #{llama_embedding_forward.4} parent=11 // pred_region
        _
      $region20: #{llama_embedding_forward.4} parent=11 // pred_fallthru
        _
      // Predicated region
      $region21: #{llama_embedding_forward.4} parent=11 // pred_check
        %p288 = pneg %p157
      $region22: #{llama_embedding_forward.4} parent=11 // pred_check_branch
        %290 = sbr.rel (%p288) target = $region24
      $region23: #{llama_embedding_forward.4} parent=11 // pred_region
        _
      $region24: #{llama_embedding_forward.4} parent=11 // pred_fallthru
        _
      // Predicated region
      $region25: #{llama_embedding_forward.4} parent=11 // pred_check
        %p291 = pneg %p178
      $region26: #{llama_embedding_forward.4} parent=11 // pred_check_branch
        %293 = sbr.rel (%p291) target = $region28
      $region27: #{llama_embedding_forward.4} parent=11 // pred_region
        _
      $region28: #{llama_embedding_forward.4} parent=11 // pred_fallthru
        _
      // Predicated region
      $region29: #{llama_embedding_forward.4} parent=11 // pred_check
        %p294 = pneg %p199
      $region30: #{llama_embedding_forward.4} parent=11 // pred_check_branch
        %296 = sbr.rel (%p294) target = $region32
      $region31: #{llama_embedding_forward.4} parent=11 // pred_region
        _
      $region32: #{llama_embedding_forward.4} parent=11 // pred_fallthru
        _
      // Predicated region
      $region33: #{llama_embedding_forward.4} parent=11 // pred_check
        %p297 = pneg %p220
      $region34: #{llama_embedding_forward.4} parent=11 // pred_check_branch
        %299 = sbr.rel (%p297) target = $region36
      $region35: #{llama_embedding_forward.4} parent=11 // pred_region
        _
      $region36: #{llama_embedding_forward.4} parent=11 // pred_fallthru
        _
      // Predicated region
      $region37: #{llama_embedding_forward.4} parent=11 // pred_check
        %p300 = pneg %p241
      $region38: #{llama_embedding_forward.4} parent=11 // pred_check_branch
        %302 = sbr.rel (%p300) target = $region40
      $region39: #{llama_embedding_forward.4} parent=11 // pred_region
        _
      $region40: #{llama_embedding_forward.4} parent=11 // pred_fallthru
        _
    $region12: #{llama_embedding_forward.4} parent=5 // pred_fallthru
      _
    %p303 = scmp.lt.s32.totalorder %s16, 2
    // Predicated region
    $region41: #{llama_embedding_forward.4} parent=5 // pred_check
      %p304 = pneg %p303
    $region42: #{llama_embedding_forward.4} parent=5 // pred_check_branch
      %306 = sbr.rel (%p304) target = $region44
    $region43: #{llama_embedding_forward.4} parent=5 // pred_region
      // Predicated region
      $region45: #{llama_embedding_forward.4} parent=43 // pred_check
        %p307 = pneg %p36
      $region46: #{llama_embedding_forward.4} parent=43 // pred_check_branch
        %309 = sbr.rel (%p307) target = $region48
      $region47: #{llama_embedding_forward.4} parent=43 // pred_region
        %p310 = scmp.lt.s32.totalorder %s16, 1
        %s311 = scalar_select %p310, %s16, 1
        %s312 = smul.addr %s311, 4
        %s313 = scalar_lea.vmem %s0, %s312
      $region48: #{llama_embedding_forward.4} parent=43 // pred_fallthru
        _
      // Predicated region
      $region49: #{llama_embedding_forward.4} parent=43 // pred_check
        %p314 = pneg %p62
      $region50: #{llama_embedding_forward.4} parent=43 // pred_check_branch
        %316 = sbr.rel (%p314) target = $region52
      $region51: #{llama_embedding_forward.4} parent=43 // pred_region
        %p317 = scmp.lt.s32.totalorder %s16, 1
        %s318 = scalar_select %p317, %s16, 1
        %s319 = smul.addr %s318, 8
        %s320 = scalar_lea.vmem %s1, %s319
      $region52: #{llama_embedding_forward.4} parent=43 // pred_fallthru
        _
      // Predicated region
      $region53: #{llama_embedding_forward.4} parent=43 // pred_check
        %p321 = pneg %p88
      $region54: #{llama_embedding_forward.4} parent=43 // pred_check_branch
        %323 = sbr.rel (%p321) target = $region56
      $region55: #{llama_embedding_forward.4} parent=43 // pred_region
        %p324 = scmp.lt.s32.totalorder %s16, 1
        %s325 = scalar_select %p324, %s16, 1
        %s326 = smul.addr %s325, 8
        %s327 = scalar_lea.vmem %s2, %s326
      $region56: #{llama_embedding_forward.4} parent=43 // pred_fallthru
        _
    $region44: #{llama_embedding_forward.4} parent=5 // pred_fallthru
      _
    %p328 = scmp.le.s32.totalorder 1, %s16
    %p329 = scmp.lt.s32.totalorder %s16, 3
    %p330 = pnand %p328, %p329
    %p331 = pneg %p330
    // Predicated region
    $region57: #{llama_embedding_forward.4} parent=5 // pred_check
      _
    $region58: #{llama_embedding_forward.4} parent=5 // pred_check_branch
      %333 = sbr.rel (%p330) target = $region60
    $region59: #{llama_embedding_forward.4} parent=5 // pred_region
      %s334 = ssub.s32 %s16, 1
      %p335 = scmp.lt.s32.totalorder %s21, 1
      %s336 = scalar_select %p335, %s21, 1
      %s337 = smul.addr %s336, 4
      %s338 = scalar_lea.vmem %s0, %s337
      %p339 = pneg %p42
      %p340 = pneg %p39
      %p341 = scmp.lt.s32.totalorder %s21, 1
      %s342 = scalar_select %p341, %s21, 1
      %s343 = smul.addr %s342, 8
      %s344 = scalar_lea.vmem %s1, %s343
      %p345 = pneg %p68
      %p346 = pneg %p65
      %p347 = scmp.lt.s32.totalorder %s21, 1
      %s348 = scalar_select %p347, %s21, 1
      %s349 = smul.addr %s348, 8
      %s350 = scalar_lea.vmem %s2, %s349
      %p351 = pneg %p94
      %p352 = pneg %p91
      %p353 = pneg %p115
      %p354 = pneg %p112
      %p355 = pneg %p136
      %p356 = pneg %p133
      %p357 = pneg %p157
      %p358 = pneg %p154
      %p359 = pneg %p178
      %p360 = pneg %p175
      %p361 = pneg %p199
      %p362 = pneg %p196
      %p363 = pneg %p220
      %p364 = pneg %p217
      %p365 = pneg %p241
      %p366 = pneg %p238
      %p367 = pneg %p267
      %p368 = pneg %p264
      %p369 = scmp.lt.s32.totalorder %s21, 1
      %s370 = scalar_select %p369, %s21, 1
      %s371 = smul.addr %s370, 4
      %s372 = scalar_lea.vmem %s10, %s371
      %p373 = scmp.lt.s32.totalorder %s21, 1
      %s374 = scalar_select %p373, %s21, 1
      %s375 = smul.addr %s374, 4
      %s376 = scalar_lea.vmem %s0, %s375
      %p377 = scmp.lt.s32.totalorder %s21, 1
      %s378 = scalar_select %p377, %s21, 1
      %s379 = smul.addr %s378, 8
      %s380 = scalar_lea.vmem %s1, %s379
      %p381 = scmp.lt.s32.totalorder %s21, 1
      %s382 = scalar_select %p381, %s21, 1
      %s383 = smul.addr %s382, 8
      %s384 = scalar_lea.vmem %s2, %s383
      %p385 = scmp.lt.s32.totalorder %s21, 1
      %s386 = scalar_select %p385, %s21, 1
      %s387 = smul.addr %s386, 4
      %s388 = scalar_lea.vmem %s10, %s387
      %v390 = vld [vmem:[%s376] sm:$0xf]
      %v391 = vunpack.c.l.bf16 %v390
      %v392 = vmul.f32 %v391, %v391
      %393 = vadd.xlane.f32.xlu0 %v392
      %v394 = vpop.xlane.xlu0 %393
      %v395 = vrcp.pop 128.0
      %v396 = vmul.f32 %v394, %v395
      %v397 = vadd.f32 %v396, 1e-06
      %v398 = vrsqrt.pop %v397
      %v399 = vmul.f32 %v391, %v398
      %v400 = vld [vmem:[%s4] sm:$0x1]
      %v401 = vunpack.c.l.bf16 %v400
      %v402 = vlaneseq
      %v403 = vshrl.u32 %v402, 7
      %v404 = vsub.s32 0, %v403
      %v405 = vrot.slane %v401, %v404
      %v406 = vmul.f32 %v399, %v405
      %v407 = vpack.c.bf16 %v406, %v406
      %v408 = vld [vmem:[%s6] sm:$0xff]
      %v409 = vld [vmem:[%s6 + $0x8] sm:$0xf]
      %v410 = vld [vmem:[%s6 + $0xc] sm:$0xff]
      %v411 = vld [vmem:[%s6 + $0x14] sm:$0xf]
      %v412 = vld [vmem:[%s6 + $0x18] sm:$0xff]
      %v413 = vld [vmem:[%s6 + $0x20] sm:$0xf]
      %v414 = vld [vmem:[%s6 + $0x24] sm:$0xff]
      %v415 = vld [vmem:[%s6 + $0x2c] sm:$0xf]
      %v416 = vld [vmem:[%s6 + $0x30] sm:$0xff]
      %v417 = vld [vmem:[%s6 + $0x38] sm:$0xf]
      %v418 = vld [vmem:[%s6 + $0x3c] sm:$0xff]
      %v419 = vld [vmem:[%s6 + $0x44] sm:$0xf]
      %v420 = vld [vmem:[%s6 + $0x48] sm:$0xff]
      %v421 = vld [vmem:[%s6 + $0x50] sm:$0xf]
      %v422 = vld [vmem:[%s6 + $0x54] sm:$0xff]
      %v423 = vld [vmem:[%s6 + $0x5c] sm:$0xf]
      %v424 = vld [vmem:[%s6 + $0x60] sm:$0xff]
      %v425 = vld [vmem:[%s6 + $0x68] sm:$0xf]
      %v426 = vld [vmem:[%s6 + $0x6c] sm:$0xff]
      %v427 = vld [vmem:[%s6 + $0x74] sm:$0xf]
      %v428 = vld [vmem:[%s6 + $0x78] sm:$0xff]
      %v429 = vld [vmem:[%s6 + $0x80] sm:$0xf]
      %v430 = vld [vmem:[%s6 + $0x84] sm:$0xff]
      %v431 = vld [vmem:[%s6 + $0x8c] sm:$0xf]
      %v432 = vld [vmem:[%s6 + $0x90] sm:$0xff]
      %v433 = vld [vmem:[%s6 + $0x98] sm:$0xf]
      %v434 = vld [vmem:[%s6 + $0x9c] sm:$0xff]
      %v435 = vld [vmem:[%s6 + $0xa4] sm:$0xf]
      %v436 = vld [vmem:[%s6 + $0xa8] sm:$0xff]
      %v437 = vld [vmem:[%s6 + $0xb0] sm:$0xf]
      %v438 = vld [vmem:[%s6 + $0xb4] sm:$0xff]
      %v439 = vld [vmem:[%s6 + $0xbc] sm:$0xf]
      %v472 = vunpack.c.l.b16 %v408
      %v473 = vunpack.c.h.b16 %v408
      %v474 = vunpack.c.l.b16 %v409
      %v475 = vunpack.c.l.b16 %v410
      %v476 = vunpack.c.h.b16 %v410
      %v477 = vunpack.c.l.b16 %v411
      %v478 = vunpack.c.l.b16 %v412
      %v479 = vunpack.c.h.b16 %v412
      %v480 = vunpack.c.l.b16 %v413
      %v481 = vunpack.c.l.b16 %v414
      %v482 = vunpack.c.h.b16 %v414
      %v483 = vunpack.c.l.b16 %v415
      %v484 = vunpack.c.l.b16 %v416
      %v485 = vunpack.c.h.b16 %v416
      %v486 = vunpack.c.l.b16 %v417
      %v487 = vunpack.c.l.b16 %v418
      %v488 = vunpack.c.h.b16 %v418
      %v489 = vunpack.c.l.b16 %v419
      %v490 = vunpack.c.l.b16 %v420
      %v491 = vunpack.c.h.b16 %v420
      %v492 = vunpack.c.l.b16 %v421
      %v493 = vunpack.c.l.b16 %v422
      %v494 = vunpack.c.h.b16 %v422
      %v495 = vunpack.c.l.b16 %v423
      %v496 = vunpack.c.l.b16 %v424
      %v497 = vunpack.c.h.b16 %v424
      %v498 = vunpack.c.l.b16 %v425
      %v499 = vunpack.c.l.b16 %v426
      %v500 = vunpack.c.h.b16 %v426
      %v501 = vunpack.c.l.b16 %v427
      %v502 = vunpack.c.l.b16 %v428
      %v503 = vunpack.c.h.b16 %v428
      %v504 = vunpack.c.l.b16 %v429
      %v505 = vunpack.c.l.b16 %v430
      %v506 = vunpack.c.h.b16 %v430
      %v507 = vunpack.c.l.b16 %v431
      %v508 = vunpack.c.l.b16 %v432
      %v509 = vunpack.c.h.b16 %v432
      %v510 = vunpack.c.l.b16 %v433
      %v511 = vunpack.c.l.b16 %v434
      %v512 = vunpack.c.h.b16 %v434
      %v513 = vunpack.c.l.b16 %v435
      %v514 = vunpack.c.l.b16 %v436
      %v515 = vunpack.c.h.b16 %v436
      %v516 = vunpack.c.l.b16 %v437
      %v517 = vunpack.c.l.b16 %v438
      %v518 = vunpack.c.h.b16 %v438
      %v519 = vunpack.c.l.b16 %v439
      %v520 = vpack.c.b16 %v475, %v472
      %v521 = vpack.c.b16 %v476, %v473
      %v522 = vpack.c.b16 %v477, %v474
      %v523 = vpack.c.b16 %v481, %v478
      %v524 = vpack.c.b16 %v482, %v479
      %v525 = vpack.c.b16 %v483, %v480
      %v526 = vpack.c.b16 %v487, %v484
      %v527 = vpack.c.b16 %v488, %v485
      %v528 = vpack.c.b16 %v489, %v486
      %v529 = vpack.c.b16 %v493, %v490
      %v530 = vpack.c.b16 %v494, %v491
      %v531 = vpack.c.b16 %v495, %v492
      %v532 = vpack.c.b16 %v499, %v496
      %v533 = vpack.c.b16 %v500, %v497
      %v534 = vpack.c.b16 %v501, %v498
      %v535 = vpack.c.b16 %v505, %v502
      %v536 = vpack.c.b16 %v506, %v503
      %v537 = vpack.c.b16 %v507, %v504
      %v538 = vpack.c.b16 %v511, %v508
      %v539 = vpack.c.b16 %v512, %v509
      %v540 = vpack.c.b16 %v513, %v510
      %v541 = vpack.c.b16 %v517, %v514
      %v542 = vpack.c.b16 %v518, %v515
      %v543 = vpack.c.b16 %v519, %v516
      %568 = vmatprep.subr.bf16.mxu0 %v521
      %569 = vmatpush1.bf16.msra.mxu0 %v520
      %570 = vmatprep.subr.bf16.mxu0 %v524
      %571 = vmatpush1.bf16.msra.mxu0 %v523
      %572 = vmatprep.subr.bf16.mxu0 %v527
      %573 = vmatpush1.bf16.msra.mxu0 %v526
      %574 = vmatprep.subr.bf16.mxu0 %v530
      %575 = vmatpush1.bf16.msra.mxu0 %v529
      %576 = vmatprep.subr.bf16.mxu0 %v533
      %577 = vmatpush1.bf16.msra.mxu0 %v532
      %578 = vmatprep.subr.bf16.mxu0 %v536
      %579 = vmatpush1.bf16.msra.mxu0 %v535
      %580 = vmatprep.subr.bf16.mxu0 %v539
      %581 = vmatpush1.bf16.msra.mxu0 %v538
      %582 = vmatprep.subr.bf16.mxu0 %v542
      %583 = vmatpush1.bf16.msra.mxu0 %v541
      %584 = vmatprep.subr.bf16.mxu0 0
      %585 = vmatpush1.bf16.msra.mxu0 0
      %586 = vmatprep.subr.bf16.mxu0 0
      %587 = vmatpush1.bf16.msra.mxu0 0
      %588 = vmatprep.subr.bf16.mxu0 0
      %589 = vmatpush1.bf16.msra.mxu0 0
      %590 = vmatprep.subr.bf16.mxu0 0
      %591 = vmatpush1.bf16.msra.mxu0 0
      %592 = vmatprep.subr.bf16.mxu0 0
      %593 = vmatpush1.bf16.msra.mxu0 0
      %594 = vmatprep.subr.bf16.mxu0 0
      %595 = vmatpush1.bf16.msra.mxu0 0
      %596 = vmatprep.subr.bf16.mxu0 0
      %597 = vmatpush1.bf16.msra.mxu0 0
      %598 = vmatprep.subr.bf16.mxu0 0
      %599 = vmatpush1.bf16.msra.mxu0 0
      %600 = vmatprep.mubr.bf16.mxu0 0
      %601 = vmatmul.mubr.bf16.gmra.mrb[0].mxu0 %v407
      %v602 = vpop.f32.mrb[0].mxu0
      %v603 = vadd.f32 0.0, %v602
      %v604 = vpop.f32.mrb[0].mxu0
      %v605 = vadd.f32 0.0, %v604
      %v606 = vpop.f32.mrb[0].mxu0
      %v607 = vpop.f32.mrb[0].mxu0
      %608 = vdwg.mxu0
      %609 = vmatprep.subr.bf16.mxu0 0
      %610 = vmatpush1.bf16.msra.mxu0 %v522
      %611 = vmatprep.subr.bf16.mxu0 0
      %612 = vmatpush1.bf16.msra.mxu0 %v525
      %613 = vmatprep.subr.bf16.mxu0 0
      %614 = vmatpush1.bf16.msra.mxu0 %v528
      %615 = vmatprep.subr.bf16.mxu0 0
      %616 = vmatpush1.bf16.msra.mxu0 %v531
      %617 = vmatprep.subr.bf16.mxu0 0
      %618 = vmatpush1.bf16.msra.mxu0 %v534
      %619 = vmatprep.subr.bf16.mxu0 0
      %620 = vmatpush1.bf16.msra.mxu0 %v537
      %621 = vmatprep.subr.bf16.mxu0 0
      %622 = vmatpush1.bf16.msra.mxu0 %v540
      %623 = vmatprep.subr.bf16.mxu0 0
      %624 = vmatpush1.bf16.msra.mxu0 %v543
      %625 = vmatprep.subr.bf16.mxu0 0
      %626 = vmatpush1.bf16.msra.mxu0 0
      %627 = vmatprep.subr.bf16.mxu0 0
      %628 = vmatpush1.bf16.msra.mxu0 0
      %629 = vmatprep.subr.bf16.mxu0 0
      %630 = vmatpush1.bf16.msra.mxu0 0
      %631 = vmatprep.subr.bf16.mxu0 0
      %632 = vmatpush1.bf16.msra.mxu0 0
      %633 = vmatprep.subr.bf16.mxu0 0
      %634 = vmatpush1.bf16.msra.mxu0 0
      %635 = vmatprep.subr.bf16.mxu0 0
      %636 = vmatpush1.bf16.msra.mxu0 0
      %637 = vmatprep.subr.bf16.mxu0 0
      %638 = vmatpush1.bf16.msra.mxu0 0
      %639 = vmatprep.subr.bf16.mxu0 0
      %640 = vmatpush1.bf16.msra.mxu0 0
      %641 = vmatprep.mubr.bf16.mxu0 0
      %642 = vmatmul.mubr.bf16.gmra.mrb[0].mxu0 %v407
      %v643 = vpop.f32.mrb[0].mxu0
      %v644 = vadd.f32 0.0, %v643
      %v645 = vpop.f32.mrb[0].mxu0
      %v646 = vpop.f32.mrb[0].mxu0
      %v647 = vpop.f32.mrb[0].mxu0
      %648 = vdwg.mxu0
      %v649 = vpack.c.bf16 %v644, %v644
      %v650 = vld [vmem:[%s380] sm:$0xff]
      %v651 = vld [vmem:[%s384] sm:$0xff]
      %v652 = vpack.c.bf16 %v603, %v603
      %v653 = vld [vmem:[%s3] sm:$0xf]
      %v654 = vld [vmem:[%s3 + $0x4] sm:$0xf]
      %v655 = vld [vmem:[%s3 + $0x8] sm:$0xf]
      %v656 = vld [vmem:[%s3 + $0xc] sm:$0xf]
      %v657 = vld [vmem:[%s3 + $0x10] sm:$0xf]
      %v658 = vld [vmem:[%s3 + $0x14] sm:$0xf]
      %v659 = vld [vmem:[%s3 + $0x18] sm:$0xf]
      %v660 = vld [vmem:[%s3 + $0x1c] sm:$0xf]
      %v661 = vld [vmem:[%s3 + $0x20] sm:$0xf]
      %v662 = vld [vmem:[%s3 + $0x24] sm:$0xf]
      %v663 = vld [vmem:[%s3 + $0x28] sm:$0xf]
      %v664 = vld [vmem:[%s3 + $0x2c] sm:$0xf]
      %v665 = vld [vmem:[%s3 + $0x30] sm:$0xf]
      %v666 = vld [vmem:[%s3 + $0x34] sm:$0xf]
      %v667 = vld [vmem:[%s3 + $0x38] sm:$0xf]
      %v668 = vld [vmem:[%s3 + $0x3c] sm:$0xf]
      %v685 = vunpack.c.l.b16 %v653
      %v686 = vunpack.c.l.b16 %v654
      %v687 = vunpack.c.l.b16 %v655
      %v688 = vunpack.c.l.b16 %v656
      %v689 = vunpack.c.l.b16 %v657
      %v690 = vunpack.c.l.b16 %v658
      %v691 = vunpack.c.l.b16 %v659
      %v692 = vunpack.c.l.b16 %v660
      %v693 = vunpack.c.l.b16 %v661
      %v694 = vunpack.c.l.b16 %v662
      %v695 = vunpack.c.l.b16 %v663
      %v696 = vunpack.c.l.b16 %v664
      %v697 = vunpack.c.l.b16 %v665
      %v698 = vunpack.c.l.b16 %v666
      %v699 = vunpack.c.l.b16 %v667
      %v700 = vunpack.c.l.b16 %v668
      %v701 = vpack.c.b16 %v686, %v685
      %v702 = vpack.c.b16 %v688, %v687
      %v703 = vpack.c.b16 %v690, %v689
      %v704 = vpack.c.b16 %v692, %v691
      %v705 = vpack.c.b16 %v694, %v693
      %v706 = vpack.c.b16 %v696, %v695
      %v707 = vpack.c.b16 %v698, %v697
      %v708 = vpack.c.b16 %v700, %v699
      %717 = vmatprep.subr.bf16.mxu0 0
      %718 = vmatpush1.bf16.msra.mxu0 %v701
      %719 = vmatprep.subr.bf16.mxu0 0
      %720 = vmatpush1.bf16.msra.mxu0 %v702
      %721 = vmatprep.subr.bf16.mxu0 0
      %722 = vmatpush1.bf16.msra.mxu0 %v703
      %723 = vmatprep.subr.bf16.mxu0 0
      %724 = vmatpush1.bf16.msra.mxu0 %v704
      %725 = vmatprep.subr.bf16.mxu0 0
      %726 = vmatpush1.bf16.msra.mxu0 %v705
      %727 = vmatprep.subr.bf16.mxu0 0
      %728 = vmatpush1.bf16.msra.mxu0 %v706
      %729 = vmatprep.subr.bf16.mxu0 0
      %730 = vmatpush1.bf16.msra.mxu0 %v707
      %731 = vmatprep.subr.bf16.mxu0 0
      %732 = vmatpush1.bf16.msra.mxu0 %v708
      %733 = vmatprep.subr.bf16.mxu0 0
      %734 = vmatpush1.bf16.msra.mxu0 0
      %735 = vmatprep.subr.bf16.mxu0 0
      %736 = vmatpush1.bf16.msra.mxu0 0
      %737 = vmatprep.subr.bf16.mxu0 0
      %738 = vmatpush1.bf16.msra.mxu0 0
      %739 = vmatprep.subr.bf16.mxu0 0
      %740 = vmatpush1.bf16.msra.mxu0 0
      %741 = vmatprep.subr.bf16.mxu0 0
      %742 = vmatpush1.bf16.msra.mxu0 0
      %743 = vmatprep.subr.bf16.mxu0 0
      %744 = vmatpush1.bf16.msra.mxu0 0
      %745 = vmatprep.subr.bf16.mxu0 0
      %746 = vmatpush1.bf16.msra.mxu0 0
      %747 = vmatprep.subr.bf16.mxu0 0
      %748 = vmatpush1.bf16.msra.mxu0 0
      %749 = vmatprep.mubr.bf16.mxu0 0
      %750 = vmatmul.mubr.bf16.gmra.mrb[0].mxu0 %v652
      %v751 = vpop.f32.mrb[0].mxu0
      %v752 = vadd.f32 0.0, %v751
      %v753 = vpop.f32.mrb[0].mxu0
      %v754 = vpop.f32.mrb[0].mxu0
      %v755 = vpop.f32.mrb[0].mxu0
      %756 = vdwg.mxu0
      %v757 = vpack.c.bf16 %v605, %v605
      %758 = vmatprep.subr.bf16.mxu0 0
      %759 = vmatpush1.bf16.msra.mxu0 %v701
      %760 = vmatprep.subr.bf16.mxu0 0
      %761 = vmatpush1.bf16.msra.mxu0 %v702
      %762 = vmatprep.subr.bf16.mxu0 0
      %763 = vmatpush1.bf16.msra.mxu0 %v703
      %764 = vmatprep.subr.bf16.mxu0 0
      %765 = vmatpush1.bf16.msra.mxu0 %v704
      %766 = vmatprep.subr.bf16.mxu0 0
      %767 = vmatpush1.bf16.msra.mxu0 %v705
      %768 = vmatprep.subr.bf16.mxu0 0
      %769 = vmatpush1.bf16.msra.mxu0 %v706
      %770 = vmatprep.subr.bf16.mxu0 0
      %771 = vmatpush1.bf16.msra.mxu0 %v707
      %772 = vmatprep.subr.bf16.mxu0 0
      %773 = vmatpush1.bf16.msra.mxu0 %v708
      %774 = vmatprep.subr.bf16.mxu0 0
      %775 = vmatpush1.bf16.msra.mxu0 0
      %776 = vmatprep.subr.bf16.mxu0 0
      %777 = vmatpush1.bf16.msra.mxu0 0
      %778 = vmatprep.subr.bf16.mxu0 0
      %779 = vmatpush1.bf16.msra.mxu0 0
      %780 = vmatprep.subr.bf16.mxu0 0
      %781 = vmatpush1.bf16.msra.mxu0 0
      %782 = vmatprep.subr.bf16.mxu0 0
      %783 = vmatpush1.bf16.msra.mxu0 0
      %784 = vmatprep.subr.bf16.mxu0 0
      %785 = vmatpush1.bf16.msra.mxu0 0
      %786 = vmatprep.subr.bf16.mxu0 0
      %787 = vmatpush1.bf16.msra.mxu0 0
      %788 = vmatprep.subr.bf16.mxu0 0
      %789 = vmatpush1.bf16.msra.mxu0 0
      %790 = vmatprep.mubr.bf16.mxu0 0
      %791 = vmatmul.mubr.bf16.gmra.mrb[0].mxu0 %v757
      %v792 = vpop.f32.mrb[0].mxu0
      %v793 = vadd.f32 0.0, %v792
      %v794 = vpop.f32.mrb[0].mxu0
      %v795 = vpop.f32.mrb[0].mxu0
      %v796 = vpop.f32.mrb[0].mxu0
      %797 = vdwg.mxu0
      %v798 = vmul.f32 %v603, %v650
      %v799 = vmul.f32 %v752, %v651
      %v800 = vadd.f32 %v798, %v799
      %v801 = vpack.c.bf16 %v800, %v800
      %v802 = vmul.f32 %v605, %v650
      %v803 = vmul.f32 %v793, %v651
      %v804 = vadd.f32 %v802, %v803
      %v805 = vpack.c.bf16 %v804, %v804
      %v806 = vlaneseq
      %v807 = vshrl.u32 %v806, 7
      %v808 = vlaneseq
      %v809 = vand.u32 %v808, 127
      %vm810 = vcmp.le.s32.totalorder %v809, %v807
      %vm811 = vcmask 261120
      %v813 = vsel %vm811, %v801, 0
      %v816 = vsel %vm811, %v805, 0
      %818 = vmatprep.subr.bf16.mxu0 0
      %819 = vmatpush1.bf16.xpose.msra.mxu0 %v816
      %820 = vmatprep.subr.bf16.mxu0 0
      %821 = vmatpush1.bf16.xpose.msra.mxu0 0
      %822 = vmatprep.subr.bf16.mxu0 0
      %823 = vmatpush1.bf16.xpose.msra.mxu0 0
      %824 = vmatprep.subr.bf16.mxu0 0
      %825 = vmatpush1.bf16.xpose.msra.mxu0 0
      %826 = vmatprep.subr.bf16.mxu0 0
      %827 = vmatpush1.bf16.xpose.msra.mxu0 0
      %828 = vmatprep.subr.bf16.mxu0 0
      %829 = vmatpush1.bf16.xpose.msra.mxu0 0
      %830 = vmatprep.subr.bf16.mxu0 0
      %831 = vmatpush1.bf16.xpose.msra.mxu0 0
      %832 = vmatprep.subr.bf16.mxu0 0
      %833 = vmatpush1.bf16.xpose.msra.mxu0 0
      %834 = vmatprep.subr.bf16.mxu0 0
      %835 = vmatpush1.bf16.xpose.msra.mxu0 0
      %836 = vmatprep.subr.bf16.mxu0 0
      %837 = vmatpush1.bf16.xpose.msra.mxu0 0
      %838 = vmatprep.subr.bf16.mxu0 0
      %839 = vmatpush1.bf16.xpose.msra.mxu0 0
      %840 = vmatprep.subr.bf16.mxu0 0
      %841 = vmatpush1.bf16.xpose.msra.mxu0 0
      %842 = vmatprep.subr.bf16.mxu0 0
      %843 = vmatpush1.bf16.xpose.msra.mxu0 0
      %844 = vmatprep.subr.bf16.mxu0 0
      %845 = vmatpush1.bf16.xpose.msra.mxu0 0
      %846 = vmatprep.subr.bf16.mxu0 0
      %847 = vmatpush1.bf16.xpose.msra.mxu0 0
      %848 = vmatprep.subr.bf16.mxu0 0
      %849 = vmatpush1.bf16.xpose.msra.mxu0 0
      %850 = vmatprep.mubr.bf16.mxu0 0
      %851 = vmatmul.mubr.bf16.gmra.mrb[0].mxu0 %v813
      %v852 = vpop.f32.mrb[0].mxu0
      %v853 = vadd.f32 0.0, %v852
      %v854 = vpop.f32.mrb[0].mxu0
      %v855 = vpop.f32.mrb[0].mxu0
      %v856 = vpop.f32.mrb[0].mxu0
      %857 = vdwg.mxu0
      %v858 = vmul.f32 %v853, 0.17677669
      %v859 = vsel %vm810, %v858, -1e+30
      %vm860 = vcmask 64512
      %v861 = vsel %vm860, %v859, -inf
      %862 = vmax.xlane.f32.xlu0 %v861
      %v863 = vpop.xlane.xlu0 %862
      %v864 = vsub.f32 %v859, %v863
      %v865 = vmul.f32 %v864, 1.442695
      %v866 = vpow.pop %v865
      %v867 = vsel %vm860, %v866, 0.0
      %868 = vadd.xlane.f32.xlu0 %v867
      %v869 = vpop.xlane.xlu0 %868
      %v870 = vrcp.pop %v869
      %v871 = vmul.f32 %v866, %v870
      %v872 = vpack.c.bf16 %v871, %v871
      %v874 = vsel %vm860, %v872, 0
      %vm876 = vcmask 1043456
      %v878 = vsel %vm876, %v649, 0
      %880 = vmatprep.subr.bf16.mxu0 0
      %881 = vmatpush1.bf16.msra.mxu0 %v878
      %882 = vmatprep.subr.bf16.mxu0 0
      %883 = vmatpush1.bf16.msra.mxu0 0
      %884 = vmatprep.subr.bf16.mxu0 0
      %885 = vmatpush1.bf16.msra.mxu0 0
      %886 = vmatprep.subr.bf16.mxu0 0
      %887 = vmatpush1.bf16.msra.mxu0 0
      %888 = vmatprep.subr.bf16.mxu0 0
      %889 = vmatpush1.bf16.msra.mxu0 0
      %890 = vmatprep.subr.bf16.mxu0 0
      %891 = vmatpush1.bf16.msra.mxu0 0
      %892 = vmatprep.subr.bf16.mxu0 0
      %893 = vmatpush1.bf16.msra.mxu0 0
      %894 = vmatprep.subr.bf16.mxu0 0
      %895 = vmatpush1.bf16.msra.mxu0 0
      %896 = vmatprep.subr.bf16.mxu0 0
      %897 = vmatpush1.bf16.msra.mxu0 0
      %898 = vmatprep.subr.bf16.mxu0 0
      %899 = vmatpush1.bf16.msra.mxu0 0
      %900 = vmatprep.subr.bf16.mxu0 0
      %901 = vmatpush1.bf16.msra.mxu0 0
      %902 = vmatprep.subr.bf16.mxu0 0
      %903 = vmatpush1.bf16.msra.mxu0 0
      %904 = vmatprep.subr.bf16.mxu0 0
      %905 = vmatpush1.bf16.msra.mxu0 0
      %906 = vmatprep.subr.bf16.mxu0 0
      %907 = vmatpush1.bf16.msra.mxu0 0
      %908 = vmatprep.subr.bf16.mxu0 0
      %909 = vmatpush1.bf16.msra.mxu0 0
      %910 = vmatprep.subr.bf16.mxu0 0
      %911 = vmatpush1.bf16.msra.mxu0 0
      %912 = vmatprep.mubr.bf16.mxu0 0
      %913 = vmatmul.mubr.bf16.gmra.mrb[0].mxu0 %v874
      %v914 = vpop.f32.mrb[0].mxu0
      %v915 = vadd.f32 0.0, %v914
      %v916 = vpop.f32.mrb[0].mxu0
      %v917 = vpop.f32.mrb[0].mxu0
      %v918 = vpop.f32.mrb[0].mxu0
      %919 = vdwg.mxu0
      %920 = vst.msk [vmem:[#allocation2] sm:$0xff] %vm811, %v915
      %922 = vrot.lane.b32.xlu0 %v801, 96
      %v923 = vpop.permute.xlu0 %922
      %925 = vrot.lane.b32.xlu0 %v805, 96
      %v926 = vpop.permute.xlu0 %925
      %v928 = vsel %vm811, %v923, 0
      %v931 = vsel %vm811, %v926, 0
      %933 = vmatprep.subr.bf16.mxu0 0
      %934 = vmatpush1.bf16.xpose.msra.mxu0 %v931
      %935 = vmatprep.subr.bf16.mxu0 0
      %936 = vmatpush1.bf16.xpose.msra.mxu0 0
      %937 = vmatprep.subr.bf16.mxu0 0
      %938 = vmatpush1.bf16.xpose.msra.mxu0 0
      %939 = vmatprep.subr.bf16.mxu0 0
      %940 = vmatpush1.bf16.xpose.msra.mxu0 0
      %941 = vmatprep.subr.bf16.mxu0 0
      %942 = vmatpush1.bf16.xpose.msra.mxu0 0
      %943 = vmatprep.subr.bf16.mxu0 0
      %944 = vmatpush1.bf16.xpose.msra.mxu0 0
      %945 = vmatprep.subr.bf16.mxu0 0
      %946 = vmatpush1.bf16.xpose.msra.mxu0 0
      %947 = vmatprep.subr.bf16.mxu0 0
      %948 = vmatpush1.bf16.xpose.msra.mxu0 0
      %949 = vmatprep.subr.bf16.mxu0 0
      %950 = vmatpush1.bf16.xpose.msra.mxu0 0
      %951 = vmatprep.subr.bf16.mxu0 0
      %952 = vmatpush1.bf16.xpose.msra.mxu0 0
      %953 = vmatprep.subr.bf16.mxu0 0
      %954 = vmatpush1.bf16.xpose.msra.mxu0 0
      %955 = vmatprep.subr.bf16.mxu0 0
      %956 = vmatpush1.bf16.xpose.msra.mxu0 0
      %957 = vmatprep.subr.bf16.mxu0 0
      %958 = vmatpush1.bf16.xpose.msra.mxu0 0
      %959 = vmatprep.subr.bf16.mxu0 0
      %960 = vmatpush1.bf16.xpose.msra.mxu0 0
      %961 = vmatprep.subr.bf16.mxu0 0
      %962 = vmatpush1.bf16.xpose.msra.mxu0 0
      %963 = vmatprep.subr.bf16.mxu0 0
      %964 = vmatpush1.bf16.xpose.msra.mxu0 0
      %965 = vmatprep.mubr.bf16.mxu0 0
      %966 = vmatmul.mubr.bf16.gmra.mrb[0].mxu0 %v928
      %v967 = vpop.f32.mrb[0].mxu0
      %v968 = vadd.f32 0.0, %v967
      %v969 = vpop.f32.mrb[0].mxu0
      %v970 = vpop.f32.mrb[0].mxu0
      %v971 = vpop.f32.mrb[0].mxu0
      %972 = vdwg.mxu0
      %v973 = vmul.f32 %v968, 0.17677669
      %v974 = vsel %vm810, %v973, -1e+30
      %v975 = vsel %vm860, %v974, -inf
      %976 = vmax.xlane.f32.xlu0 %v975
      %v977 = vpop.xlane.xlu0 %976
      %v978 = vsub.f32 %v974, %v977
      %v979 = vmul.f32 %v978, 1.442695
      %v980 = vpow.pop %v979
      %v981 = vsel %vm860, %v980, 0.0
      %982 = vadd.xlane.f32.xlu0 %v981
      %v983 = vpop.xlane.xlu0 %982
      %v984 = vrcp.pop %v983
      %v985 = vmul.f32 %v980, %v984
      %v986 = vpack.c.bf16 %v985, %v985
      %988 = vrot.lane.b32.xlu0 %v649, 96
      %v989 = vpop.permute.xlu0 %988
      %v991 = vsel %vm860, %v986, 0
      %v994 = vsel %vm876, %v989, 0
      %996 = vmatprep.subr.bf16.mxu0 0
      %997 = vmatpush1.bf16.msra.mxu0 %v994
      %998 = vmatprep.subr.bf16.mxu0 0
      %999 = vmatpush1.bf16.msra.mxu0 0
      %1000 = vmatprep.subr.bf16.mxu0 0
      %1001 = vmatpush1.bf16.msra.mxu0 0
      %1002 = vmatprep.subr.bf16.mxu0 0
      %1003 = vmatpush1.bf16.msra.mxu0 0
      %1004 = vmatprep.subr.bf16.mxu0 0
      %1005 = vmatpush1.bf16.msra.mxu0 0
      %1006 = vmatprep.subr.bf16.mxu0 0
      %1007 = vmatpush1.bf16.msra.mxu0 0
      %1008 = vmatprep.subr.bf16.mxu0 0
      %1009 = vmatpush1.bf16.msra.mxu0 0
      %1010 = vmatprep.subr.bf16.mxu0 0
      %1011 = vmatpush1.bf16.msra.mxu0 0
      %1012 = vmatprep.subr.bf16.mxu0 0
      %1013 = vmatpush1.bf16.msra.mxu0 0
      %1014 = vmatprep.subr.bf16.mxu0 0
      %1015 = vmatpush1.bf16.msra.mxu0 0
      %1016 = vmatprep.subr.bf16.mxu0 0
      %1017 = vmatpush1.bf16.msra.mxu0 0
      %1018 = vmatprep.subr.bf16.mxu0 0
      %1019 = vmatpush1.bf16.msra.mxu0 0
      %1020 = vmatprep.subr.bf16.mxu0 0
      %1021 = vmatpush1.bf16.msra.mxu0 0
      %1022 = vmatprep.subr.bf16.mxu0 0
      %1023 = vmatpush1.bf16.msra.mxu0 0
      %1024 = vmatprep.subr.bf16.mxu0 0
      %1025 = vmatpush1.bf16.msra.mxu0 0
      %1026 = vmatprep.subr.bf16.mxu0 0
      %1027 = vmatpush1.bf16.msra.mxu0 0
      %1028 = vmatprep.mubr.bf16.mxu0 0
      %1029 = vmatmul.mubr.bf16.gmra.mrb[0].mxu0 %v991
      %v1030 = vpop.f32.mrb[0].mxu0
      %v1031 = vadd.f32 0.0, %v1030
      %v1032 = vpop.f32.mrb[0].mxu0
      %v1033 = vpop.f32.mrb[0].mxu0
      %v1034 = vpop.f32.mrb[0].mxu0
      %1035 = vdwg.mxu0
      %1037 = vrot.lane.b32.xlu0 %v1031, 32
      %v1038 = vpop.permute.xlu0 %1037
      %vm1040 = vcmask 523520
      %1041 = vst.msk [vmem:[#allocation2] sm:$0xff] %vm1040, %v1038
      %1042 = vrot.lane.b32.xlu0 %v801, 64
      %v1043 = vpop.permute.xlu0 %1042
      %1044 = vrot.lane.b32.xlu0 %v805, 64
      %v1045 = vpop.permute.xlu0 %1044
      %v1047 = vsel %vm811, %v1043, 0
      %v1050 = vsel %vm811, %v1045, 0
      %1052 = vmatprep.subr.bf16.mxu0 0
      %1053 = vmatpush1.bf16.xpose.msra.mxu0 %v1050
      %1054 = vmatprep.subr.bf16.mxu0 0
      %1055 = vmatpush1.bf16.xpose.msra.mxu0 0
      %1056 = vmatprep.subr.bf16.mxu0 0
      %1057 = vmatpush1.bf16.xpose.msra.mxu0 0
      %1058 = vmatprep.subr.bf16.mxu0 0
      %1059 = vmatpush1.bf16.xpose.msra.mxu0 0
      %1060 = vmatprep.subr.bf16.mxu0 0
      %1061 = vmatpush1.bf16.xpose.msra.mxu0 0
      %1062 = vmatprep.subr.bf16.mxu0 0
      %1063 = vmatpush1.bf16.xpose.msra.mxu0 0
      %1064 = vmatprep.subr.bf16.mxu0 0
      %1065 = vmatpush1.bf16.xpose.msra.mxu0 0
      %1066 = vmatprep.subr.bf16.mxu0 0
      %1067 = vmatpush1.bf16.xpose.msra.mxu0 0
      %1068 = vmatprep.subr.bf16.mxu0 0
      %1069 = vmatpush1.bf16.xpose.msra.mxu0 0
      %1070 = vmatprep.subr.bf16.mxu0 0
      %1071 = vmatpush1.bf16.xpose.msra.mxu0 0
      %1072 = vmatprep.subr.bf16.mxu0 0
      %1073 = vmatpush1.bf16.xpose.msra.mxu0 0
      %1074 = vmatprep.subr.bf16.mxu0 0
      %1075 = vmatpush1.bf16.xpose.msra.mxu0 0
      %1076 = vmatprep.subr.bf16.mxu0 0
      %1077 = vmatpush1.bf16.xpose.msra.mxu0 0
      %1078 = vmatprep.subr.bf16.mxu0 0
      %1079 = vmatpush1.bf16.xpose.msra.mxu0 0
      %1080 = vmatprep.subr.bf16.mxu0 0
      %1081 = vmatpush1.bf16.xpose.msra.mxu0 0
      %1082 = vmatprep.subr.bf16.mxu0 0
      %1083 = vmatpush1.bf16.xpose.msra.mxu0 0
      %1084 = vmatprep.mubr.bf16.mxu0 0
      %1085 = vmatmul.mubr.bf16.gmra.mrb[0].mxu0 %v1047
      %v1086 = vpop.f32.mrb[0].mxu0
      %v1087 = vadd.f32 0.0, %v1086
      %v1088 = vpop.f32.mrb[0].mxu0
      %v1089 = vpop.f32.mrb[0].mxu0
      %v1090 = vpop.f32.mrb[0].mxu0
      %1091 = vdwg.mxu0
      %v1092 = vmul.f32 %v1087, 0.17677669
      %v1093 = vsel %vm810, %v1092, -1e+30
      %v1094 = vsel %vm860, %v1093, -inf
      %1095 = vmax.xlane.f32.xlu0 %v1094
      %v1096 = vpop.xlane.xlu0 %1095
      %v1097 = vsub.f32 %v1093, %v1096
      %v1098 = vmul.f32 %v1097, 1.442695
      %v1099 = vpow.pop %v1098
      %v1100 = vsel %vm860, %v1099, 0.0
      %1101 = vadd.xlane.f32.xlu0 %v1100
      %v1102 = vpop.xlane.xlu0 %1101
      %v1103 = vrcp.pop %v1102
      %v1104 = vmul.f32 %v1099, %v1103
      %v1105 = vpack.c.bf16 %v1104, %v1104
      %1106 = vrot.lane.b32.xlu0 %v649, 64
      %v1107 = vpop.permute.xlu0 %1106
      %v1109 = vsel %vm860, %v1105, 0
      %v1112 = vsel %vm876, %v1107, 0
      %1114 = vmatprep.subr.bf16.mxu0 0
      %1115 = vmatpush1.bf16.msra.mxu0 %v1112
      %1116 = vmatprep.subr.bf16.mxu0 0
      %1117 = vmatpush1.bf16.msra.mxu0 0
      %1118 = vmatprep.subr.bf16.mxu0 0
      %1119 = vmatpush1.bf16.msra.mxu0 0
      %1120 = vmatprep.subr.bf16.mxu0 0
      %1121 = vmatpush1.bf16.msra.mxu0 0
      %1122 = vmatprep.subr.bf16.mxu0 0
      %1123 = vmatpush1.bf16.msra.mxu0 0
      %1124 = vmatprep.subr.bf16.mxu0 0
      %1125 = vmatpush1.bf16.msra.mxu0 0
      %1126 = vmatprep.subr.bf16.mxu0 0
      %1127 = vmatpush1.bf16.msra.mxu0 0
      %1128 = vmatprep.subr.bf16.mxu0 0
      %1129 = vmatpush1.bf16.msra.mxu0 0
      %1130 = vmatprep.subr.bf16.mxu0 0
      %1131 = vmatpush1.bf16.msra.mxu0 0
      %1132 = vmatprep.subr.bf16.mxu0 0
      %1133 = vmatpush1.bf16.msra.mxu0 0
      %1134 = vmatprep.subr.bf16.mxu0 0
      %1135 = vmatpush1.bf16.msra.mxu0 0
      %1136 = vmatprep.subr.bf16.mxu0 0
      %1137 = vmatpush1.bf16.msra.mxu0 0
      %1138 = vmatprep.subr.bf16.mxu0 0
      %1139 = vmatpush1.bf16.msra.mxu0 0
      %1140 = vmatprep.subr.bf16.mxu0 0
      %1141 = vmatpush1.bf16.msra.mxu0 0
      %1142 = vmatprep.subr.bf16.mxu0 0
      %1143 = vmatpush1.bf16.msra.mxu0 0
      %1144 = vmatprep.subr.bf16.mxu0 0
      %1145 = vmatpush1.bf16.msra.mxu0 0
      %1146 = vmatprep.mubr.bf16.mxu0 0
      %1147 = vmatmul.mubr.bf16.gmra.mrb[0].mxu0 %v1109
      %v1148 = vpop.f32.mrb[0].mxu0
      %v1149 = vadd.f32 0.0, %v1148
      %v1150 = vpop.f32.mrb[0].mxu0
      %v1151 = vpop.f32.mrb[0].mxu0
      %v1152 = vpop.f32.mrb[0].mxu0
      %1153 = vdwg.mxu0
      %1155 = vrot.lane.b32.xlu0 %v1149, 64
      %v1156 = vpop.permute.xlu0 %1155
      %vm1158 = vcmask 785920
      %1159 = vst.msk [vmem:[#allocation2] sm:$0xff] %vm1158, %v1156
      %1160 = vrot.lane.b32.xlu0 %v801, 32
      %v1161 = vpop.permute.xlu0 %1160
      %1162 = vrot.lane.b32.xlu0 %v805, 32
      %v1163 = vpop.permute.xlu0 %1162
      %v1165 = vsel %vm811, %v1161, 0
      %v1168 = vsel %vm811, %v1163, 0
      %1170 = vmatprep.subr.bf16.mxu0 0
      %1171 = vmatpush1.bf16.xpose.msra.mxu0 %v1168
      %1172 = vmatprep.subr.bf16.mxu0 0
      %1173 = vmatpush1.bf16.xpose.msra.mxu0 0
      %1174 = vmatprep.subr.bf16.mxu0 0
      %1175 = vmatpush1.bf16.xpose.msra.mxu0 0
      %1176 = vmatprep.subr.bf16.mxu0 0
      %1177 = vmatpush1.bf16.xpose.msra.mxu0 0
      %1178 = vmatprep.subr.bf16.mxu0 0
      %1179 = vmatpush1.bf16.xpose.msra.mxu0 0
      %1180 = vmatprep.subr.bf16.mxu0 0
      %1181 = vmatpush1.bf16.xpose.msra.mxu0 0
      %1182 = vmatprep.subr.bf16.mxu0 0
      %1183 = vmatpush1.bf16.xpose.msra.mxu0 0
      %1184 = vmatprep.subr.bf16.mxu0 0
      %1185 = vmatpush1.bf16.xpose.msra.mxu0 0
      %1186 = vmatprep.subr.bf16.mxu0 0
      %1187 = vmatpush1.bf16.xpose.msra.mxu0 0
      %1188 = vmatprep.subr.bf16.mxu0 0
      %1189 = vmatpush1.bf16.xpose.msra.mxu0 0
      %1190 = vmatprep.subr.bf16.mxu0 0
      %1191 = vmatpush1.bf16.xpose.msra.mxu0 0
      %1192 = vmatprep.subr.bf16.mxu0 0
      %1193 = vmatpush1.bf16.xpose.msra.mxu0 0
      %1194 = vmatprep.subr.bf16.mxu0 0
      %1195 = vmatpush1.bf16.xpose.msra.mxu0 0
      %1196 = vmatprep.subr.bf16.mxu0 0
      %1197 = vmatpush1.bf16.xpose.msra.mxu0 0
      %1198 = vmatprep.subr.bf16.mxu0 0
      %1199 = vmatpush1.bf16.xpose.msra.mxu0 0
      %1200 = vmatprep.subr.bf16.mxu0 0
      %1201 = vmatpush1.bf16.xpose.msra.mxu0 0
      %1202 = vmatprep.mubr.bf16.mxu0 0
      %1203 = vmatmul.mubr.bf16.gmra.mrb[0].mxu0 %v1165
      %v1204 = vpop.f32.mrb[0].mxu0
      %v1205 = vadd.f32 0.0, %v1204
      %v1206 = vpop.f32.mrb[0].mxu0
      %v1207 = vpop.f32.mrb[0].mxu0
      %v1208 = vpop.f32.mrb[0].mxu0
      %1209 = vdwg.mxu0
      %v1210 = vmul.f32 %v1205, 0.17677669
      %v1211 = vsel %vm810, %v1210, -1e+30
      %v1212 = vsel %vm860, %v1211, -inf
      %1213 = vmax.xlane.f32.xlu0 %v1212
      %v1214 = vpop.xlane.xlu0 %1213
      %v1215 = vsub.f32 %v1211, %v1214
      %v1216 = vmul.f32 %v1215, 1.442695
      %v1217 = vpow.pop %v1216
      %v1218 = vsel %vm860, %v1217, 0.0
      %1219 = vadd.xlane.f32.xlu0 %v1218
      %v1220 = vpop.xlane.xlu0 %1219
      %v1221 = vrcp.pop %v1220
      %v1222 = vmul.f32 %v1217, %v1221
      %v1223 = vpack.c.bf16 %v1222, %v1222
      %1224 = vrot.lane.b32.xlu0 %v649, 32
      %v1225 = vpop.permute.xlu0 %1224
      %v1227 = vsel %vm860, %v1223, 0
      %v1230 = vsel %vm876, %v1225, 0
      %1232 = vmatprep.subr.bf16.mxu0 0
      %1233 = vmatpush1.bf16.msra.mxu0 %v1230
      %1234 = vmatprep.subr.bf16.mxu0 0
      %1235 = vmatpush1.bf16.msra.mxu0 0
      %1236 = vmatprep.subr.bf16.mxu0 0
      %1237 = vmatpush1.bf16.msra.mxu0 0
      %1238 = vmatprep.subr.bf16.mxu0 0
      %1239 = vmatpush1.bf16.msra.mxu0 0
      %1240 = vmatprep.subr.bf16.mxu0 0
      %1241 = vmatpush1.bf16.msra.mxu0 0
      %1242 = vmatprep.subr.bf16.mxu0 0
      %1243 = vmatpush1.bf16.msra.mxu0 0
      %1244 = vmatprep.subr.bf16.mxu0 0
      %1245 = vmatpush1.bf16.msra.mxu0 0
      %1246 = vmatprep.subr.bf16.mxu0 0
      %1247 = vmatpush1.bf16.msra.mxu0 0
      %1248 = vmatprep.subr.bf16.mxu0 0
      %1249 = vmatpush1.bf16.msra.mxu0 0
      %1250 = vmatprep.subr.bf16.mxu0 0
      %1251 = vmatpush1.bf16.msra.mxu0 0
      %1252 = vmatprep.subr.bf16.mxu0 0
      %1253 = vmatpush1.bf16.msra.mxu0 0
      %1254 = vmatprep.subr.bf16.mxu0 0
      %1255 = vmatpush1.bf16.msra.mxu0 0
      %1256 = vmatprep.subr.bf16.mxu0 0
      %1257 = vmatpush1.bf16.msra.mxu0 0
      %1258 = vmatprep.subr.bf16.mxu0 0
      %1259 = vmatpush1.bf16.msra.mxu0 0
      %1260 = vmatprep.subr.bf16.mxu0 0
      %1261 = vmatpush1.bf16.msra.mxu0 0
      %1262 = vmatprep.subr.bf16.mxu0 0
      %1263 = vmatpush1.bf16.msra.mxu0 0
      %1264 = vmatprep.mubr.bf16.mxu0 0
      %1265 = vmatmul.mubr.bf16.gmra.mrb[0].mxu0 %v1227
      %v1266 = vpop.f32.mrb[0].mxu0
      %v1267 = vadd.f32 0.0, %v1266
      %v1268 = vpop.f32.mrb[0].mxu0
      %v1269 = vpop.f32.mrb[0].mxu0
      %v1270 = vpop.f32.mrb[0].mxu0
      %1271 = vdwg.mxu0
      %1273 = vrot.lane.b32.xlu0 %v1267, 96
      %v1274 = vpop.permute.xlu0 %1273
      %vm1276 = vcmask 1048320
      %1277 = vst.msk [vmem:[#allocation2] sm:$0xff] %vm1276, %v1274
      %v1278 = vld [vmem:[#allocation2] sm:$0xff]
      %v1279 = vpack.c.bf16 %v1278, %v1278
      %v1280 = vld [vmem:[%s7] sm:$0xf]
      %v1281 = vld [vmem:[%s7 + $0x4] sm:$0xf]
      %v1282 = vld [vmem:[%s7 + $0x8] sm:$0xf]
      %v1283 = vld [vmem:[%s7 + $0xc] sm:$0xf]
      %v1284 = vld [vmem:[%s7 + $0x10] sm:$0xf]
      %v1285 = vld [vmem:[%s7 + $0x14] sm:$0xf]
      %v1286 = vld [vmem:[%s7 + $0x18] sm:$0xf]
      %v1287 = vld [vmem:[%s7 + $0x1c] sm:$0xf]
      %v1288 = vld [vmem:[%s7 + $0x20] sm:$0xf]
      %v1289 = vld [vmem:[%s7 + $0x24] sm:$0xf]
      %v1290 = vld [vmem:[%s7 + $0x28] sm:$0xf]
      %v1291 = vld [vmem:[%s7 + $0x2c] sm:$0xf]
      %v1292 = vld [vmem:[%s7 + $0x30] sm:$0xf]
      %v1293 = vld [vmem:[%s7 + $0x34] sm:$0xf]
      %v1294 = vld [vmem:[%s7 + $0x38] sm:$0xf]
      %v1295 = vld [vmem:[%s7 + $0x3c] sm:$0xf]
      %v1312 = vunpack.c.l.b16 %v1280
      %v1313 = vunpack.c.l.b16 %v1281
      %v1314 = vunpack.c.l.b16 %v1282
      %v1315 = vunpack.c.l.b16 %v1283
      %v1316 = vunpack.c.l.b16 %v1284
      %v1317 = vunpack.c.l.b16 %v1285
      %v1318 = vunpack.c.l.b16 %v1286
      %v1319 = vunpack.c.l.b16 %v1287
      %v1320 = vunpack.c.l.b16 %v1288
      %v1321 = vunpack.c.l.b16 %v1289
      %v1322 = vunpack.c.l.b16 %v1290
      %v1323 = vunpack.c.l.b16 %v1291
      %v1324 = vunpack.c.l.b16 %v1292
      %v1325 = vunpack.c.l.b16 %v1293
      %v1326 = vunpack.c.l.b16 %v1294
      %v1327 = vunpack.c.l.b16 %v1295
      %v1328 = vpack.c.b16 %v1313, %v1312
      %v1329 = vpack.c.b16 %v1315, %v1314
      %v1330 = vpack.c.b16 %v1317, %v1316
      %v1331 = vpack.c.b16 %v1319, %v1318
      %v1332 = vpack.c.b16 %v1321, %v1320
      %v1333 = vpack.c.b16 %v1323, %v1322
      %v1334 = vpack.c.b16 %v1325, %v1324
      %v1335 = vpack.c.b16 %v1327, %v1326
      %1344 = vmatprep.subr.bf16.mxu0 0
      %1345 = vmatpush1.bf16.msra.mxu0 %v1328
      %1346 = vmatprep.subr.bf16.mxu0 0
      %1347 = vmatpush1.bf16.msra.mxu0 %v1329
      %1348 = vmatprep.subr.bf16.mxu0 0
      %1349 = vmatpush1.bf16.msra.mxu0 %v1330
      %1350 = vmatprep.subr.bf16.mxu0 0
      %1351 = vmatpush1.bf16.msra.mxu0 %v1331
      %1352 = vmatprep.subr.bf16.mxu0 0
      %1353 = vmatpush1.bf16.msra.mxu0 %v1332
      %1354 = vmatprep.subr.bf16.mxu0 0
      %1355 = vmatpush1.bf16.msra.mxu0 %v1333
      %1356 = vmatprep.subr.bf16.mxu0 0
      %1357 = vmatpush1.bf16.msra.mxu0 %v1334
      %1358 = vmatprep.subr.bf16.mxu0 0
      %1359 = vmatpush1.bf16.msra.mxu0 %v1335
      %1360 = vmatprep.subr.bf16.mxu0 0
      %1361 = vmatpush1.bf16.msra.mxu0 0
      %1362 = vmatprep.subr.bf16.mxu0 0
      %1363 = vmatpush1.bf16.msra.mxu0 0
      %1364 = vmatprep.subr.bf16.mxu0 0
      %1365 = vmatpush1.bf16.msra.mxu0 0
      %1366 = vmatprep.subr.bf16.mxu0 0
      %1367 = vmatpush1.bf16.msra.mxu0 0
      %1368 = vmatprep.subr.bf16.mxu0 0
      %1369 = vmatpush1.bf16.msra.mxu0 0
      %1370 = vmatprep.subr.bf16.mxu0 0
      %1371 = vmatpush1.bf16.msra.mxu0 0
      %1372 = vmatprep.subr.bf16.mxu0 0
      %1373 = vmatpush1.bf16.msra.mxu0 0
      %1374 = vmatprep.subr.bf16.mxu0 0
      %1375 = vmatpush1.bf16.msra.mxu0 0
      %1376 = vmatprep.mubr.bf16.mxu0 0
      %1377 = vmatmul.mubr.bf16.gmra.mrb[0].mxu0 %v1279
      %v1378 = vpop.f32.mrb[0].mxu0
      %v1379 = vadd.f32 0.0, %v1378
      %v1380 = vpop.f32.mrb[0].mxu0
      %v1381 = vpop.f32.mrb[0].mxu0
      %v1382 = vpop.f32.mrb[0].mxu0
      %1383 = vdwg.mxu0
      %v1384 = vadd.f32 %v391, %v1379
      %v1385 = vmul.f32 %v1384, %v1384
      %1386 = vadd.xlane.f32.xlu0 %v1385
      %v1387 = vpop.xlane.xlu0 %1386
      %v1388 = vmul.f32 %v1387, %v395
      %v1389 = vadd.f32 %v1388, 1e-06
      %v1390 = vrsqrt.pop %v1389
      %v1391 = vmul.f32 %v1384, %v1390
      %v1392 = vld [vmem:[%s5] sm:$0x1]
      %v1393 = vunpack.c.l.bf16 %v1392
      %v1394 = vlaneseq
      %v1395 = vshrl.u32 %v1394, 7
      %v1396 = vsub.s32 0, %v1395
      %v1397 = vrot.slane %v1393, %v1396
      %v1398 = vmul.f32 %v1391, %v1397
      %v1399 = vpack.c.bf16 %v1398, %v1398
      %v1400 = vld [vmem:[%s8] sm:$0xff]
      %v1401 = vld [vmem:[%s8 + $0x8] sm:$0xff]
      %v1402 = vld [vmem:[%s8 + $0x10] sm:$0xff]
      %v1403 = vld [vmem:[%s8 + $0x18] sm:$0xff]
      %v1404 = vld [vmem:[%s8 + $0x20] sm:$0xff]
      %v1405 = vld [vmem:[%s8 + $0x28] sm:$0xff]
      %v1406 = vld [vmem:[%s8 + $0x30] sm:$0xff]
      %v1407 = vld [vmem:[%s8 + $0x38] sm:$0xff]
      %v1408 = vld [vmem:[%s8 + $0x40] sm:$0xff]
      %v1409 = vld [vmem:[%s8 + $0x48] sm:$0xff]
      %v1410 = vld [vmem:[%s8 + $0x50] sm:$0xff]
      %v1411 = vld [vmem:[%s8 + $0x58] sm:$0xff]
      %v1412 = vld [vmem:[%s8 + $0x60] sm:$0xff]
      %v1413 = vld [vmem:[%s8 + $0x68] sm:$0xff]
      %v1414 = vld [vmem:[%s8 + $0x70] sm:$0xff]
      %v1415 = vld [vmem:[%s8 + $0x78] sm:$0xff]
      %v1416 = vld [vmem:[%s8 + $0x80] sm:$0xff]
      %v1417 = vld [vmem:[%s8 + $0x88] sm:$0xff]
      %v1418 = vld [vmem:[%s8 + $0x90] sm:$0xff]
      %v1419 = vld [vmem:[%s8 + $0x98] sm:$0xff]
      %v1420 = vld [vmem:[%s8 + $0xa0] sm:$0xff]
      %v1421 = vld [vmem:[%s8 + $0xa8] sm:$0xff]
      %v1422 = vld [vmem:[%s8 + $0xb0] sm:$0xff]
      %v1423 = vld [vmem:[%s8 + $0xb8] sm:$0xff]
      %v1424 = vld [vmem:[%s8 + $0xc0] sm:$0xff]
      %v1425 = vld [vmem:[%s8 + $0xc8] sm:$0xff]
      %v1426 = vld [vmem:[%s8 + $0xd0] sm:$0xff]
      %v1427 = vld [vmem:[%s8 + $0xd8] sm:$0xff]
      %v1428 = vld [vmem:[%s8 + $0xe0] sm:$0xff]
      %v1429 = vld [vmem:[%s8 + $0xe8] sm:$0xff]
      %v1430 = vld [vmem:[%s8 + $0xf0] sm:$0xff]
      %v1431 = vld [vmem:[%s8 + $0xf8] sm:$0xff]
      %v1464 = vunpack.c.l.b16 %v1400
      %v1465 = vunpack.c.h.b16 %v1400
      %v1466 = vunpack.c.l.b16 %v1401
      %v1467 = vunpack.c.h.b16 %v1401
      %v1468 = vunpack.c.l.b16 %v1402
      %v1469 = vunpack.c.h.b16 %v1402
      %v1470 = vunpack.c.l.b16 %v1403
      %v1471 = vunpack.c.h.b16 %v1403
      %v1472 = vunpack.c.l.b16 %v1404
      %v1473 = vunpack.c.h.b16 %v1404
      %v1474 = vunpack.c.l.b16 %v1405
      %v1475 = vunpack.c.h.b16 %v1405
      %v1476 = vunpack.c.l.b16 %v1406
      %v1477 = vunpack.c.h.b16 %v1406
      %v1478 = vunpack.c.l.b16 %v1407
      %v1479 = vunpack.c.h.b16 %v1407
      %v1480 = vunpack.c.l.b16 %v1408
      %v1481 = vunpack.c.h.b16 %v1408
      %v1482 = vunpack.c.l.b16 %v1409
      %v1483 = vunpack.c.h.b16 %v1409
      %v1484 = vunpack.c.l.b16 %v1410
      %v1485 = vunpack.c.h.b16 %v1410
      %v1486 = vunpack.c.l.b16 %v1411
      %v1487 = vunpack.c.h.b16 %v1411
      %v1488 = vunpack.c.l.b16 %v1412
      %v1489 = vunpack.c.h.b16 %v1412
      %v1490 = vunpack.c.l.b16 %v1413
      %v1491 = vunpack.c.h.b16 %v1413
      %v1492 = vunpack.c.l.b16 %v1414
      %v1493 = vunpack.c.h.b16 %v1414
      %v1494 = vunpack.c.l.b16 %v1415
      %v1495 = vunpack.c.h.b16 %v1415
      %v1496 = vunpack.c.l.b16 %v1416
      %v1497 = vunpack.c.h.b16 %v1416
      %v1498 = vunpack.c.l.b16 %v1417
      %v1499 = vunpack.c.h.b16 %v1417
      %v1500 = vunpack.c.l.b16 %v1418
      %v1501 = vunpack.c.h.b16 %v1418
      %v1502 = vunpack.c.l.b16 %v1419
      %v1503 = vunpack.c.h.b16 %v1419
      %v1504 = vunpack.c.l.b16 %v1420
      %v1505 = vunpack.c.h.b16 %v1420
      %v1506 = vunpack.c.l.b16 %v1421
      %v1507 = vunpack.c.h.b16 %v1421
      %v1508 = vunpack.c.l.b16 %v1422
      %v1509 = vunpack.c.h.b16 %v1422
      %v1510 = vunpack.c.l.b16 %v1423
      %v1511 = vunpack.c.h.b16 %v1423
      %v1512 = vunpack.c.l.b16 %v1424
      %v1513 = vunpack.c.h.b16 %v1424
      %v1514 = vunpack.c.l.b16 %v1425
      %v1515 = vunpack.c.h.b16 %v1425
      %v1516 = vunpack.c.l.b16 %v1426
      %v1517 = vunpack.c.h.b16 %v1426
      %v1518 = vunpack.c.l.b16 %v1427
      %v1519 = vunpack.c.h.b16 %v1427
      %v1520 = vunpack.c.l.b16 %v1428
      %v1521 = vunpack.c.h.b16 %v1428
      %v1522 = vunpack.c.l.b16 %v1429
      %v1523 = vunpack.c.h.b16 %v1429
      %v1524 = vunpack.c.l.b16 %v1430
      %v1525 = vunpack.c.h.b16 %v1430
      %v1526 = vunpack.c.l.b16 %v1431
      %v1527 = vunpack.c.h.b16 %v1431
      %v1528 = vpack.c.b16 %v1468, %v1464
      %v1529 = vpack.c.b16 %v1469, %v1465
      %v1530 = vpack.c.b16 %v1470, %v1466
      %v1531 = vpack.c.b16 %v1471, %v1467
      %v1532 = vpack.c.b16 %v1476, %v1472
      %v1533 = vpack.c.b16 %v1477, %v1473
      %v1534 = vpack.c.b16 %v1478, %v1474
      %v1535 = vpack.c.b16 %v1479, %v1475
      %v1536 = vpack.c.b16 %v1484, %v1480
      %v1537 = vpack.c.b16 %v1485, %v1481
      %v1538 = vpack.c.b16 %v1486, %v1482
      %v1539 = vpack.c.b16 %v1487, %v1483
      %v1540 = vpack.c.b16 %v1492, %v1488
      %v1541 = vpack.c.b16 %v1493, %v1489
      %v1542 = vpack.c.b16 %v1494, %v1490
      %v1543 = vpack.c.b16 %v1495, %v1491
      %v1544 = vpack.c.b16 %v1500, %v1496
      %v1545 = vpack.c.b16 %v1501, %v1497
      %v1546 = vpack.c.b16 %v1502, %v1498
      %v1547 = vpack.c.b16 %v1503, %v1499
      %v1548 = vpack.c.b16 %v1508, %v1504
      %v1549 = vpack.c.b16 %v1509, %v1505
      %v1550 = vpack.c.b16 %v1510, %v1506
      %v1551 = vpack.c.b16 %v1511, %v1507
      %v1552 = vpack.c.b16 %v1516, %v1512
      %v1553 = vpack.c.b16 %v1517, %v1513
      %v1554 = vpack.c.b16 %v1518, %v1514
      %v1555 = vpack.c.b16 %v1519, %v1515
      %v1556 = vpack.c.b16 %v1524, %v1520
      %v1557 = vpack.c.b16 %v1525, %v1521
      %v1558 = vpack.c.b16 %v1526, %v1522
      %v1559 = vpack.c.b16 %v1527, %v1523
      %1592 = vmatprep.subr.bf16.mxu0 %v1529
      %1593 = vmatpush1.bf16.msra.mxu0 %v1528
      %1594 = vmatprep.subr.bf16.mxu0 %v1533
      %1595 = vmatpush1.bf16.msra.mxu0 %v1532
      %1596 = vmatprep.subr.bf16.mxu0 %v1537
      %1597 = vmatpush1.bf16.msra.mxu0 %v1536
      %1598 = vmatprep.subr.bf16.mxu0 %v1541
      %1599 = vmatpush1.bf16.msra.mxu0 %v1540
      %1600 = vmatprep.subr.bf16.mxu0 %v1545
      %1601 = vmatpush1.bf16.msra.mxu0 %v1544
      %1602 = vmatprep.subr.bf16.mxu0 %v1549
      %1603 = vmatpush1.bf16.msra.mxu0 %v1548
      %1604 = vmatprep.subr.bf16.mxu0 %v1553
      %1605 = vmatpush1.bf16.msra.mxu0 %v1552
      %1606 = vmatprep.subr.bf16.mxu0 %v1557
      %1607 = vmatpush1.bf16.msra.mxu0 %v1556
      %1608 = vmatprep.subr.bf16.mxu0 0
      %1609 = vmatpush1.bf16.msra.mxu0 0
      %1610 = vmatprep.subr.bf16.mxu0 0
      %1611 = vmatpush1.bf16.msra.mxu0 0
      %1612 = vmatprep.subr.bf16.mxu0 0
      %1613 = vmatpush1.bf16.msra.mxu0 0
      %1614 = vmatprep.subr.bf16.mxu0 0
      %1615 = vmatpush1.bf16.msra.mxu0 0
      %1616 = vmatprep.subr.bf16.mxu0 0
      %1617 = vmatpush1.bf16.msra.mxu0 0
      %1618 = vmatprep.subr.bf16.mxu0 0
      %1619 = vmatpush1.bf16.msra.mxu0 0
      %1620 = vmatprep.subr.bf16.mxu0 0
      %1621 = vmatpush1.bf16.msra.mxu0 0
      %1622 = vmatprep.subr.bf16.mxu0 0
      %1623 = vmatpush1.bf16.msra.mxu0 0
      %1624 = vmatprep.mubr.bf16.mxu0 0
      %1625 = vmatmul.mubr.bf16.gmra.mrb[0].mxu0 %v1399
      %v1626 = vpop.f32.mrb[0].mxu0
      %v1627 = vadd.f32 0.0, %v1626
      %v1628 = vpop.f32.mrb[0].mxu0
      %v1629 = vadd.f32 0.0, %v1628
      %v1630 = vpop.f32.mrb[0].mxu0
      %v1631 = vpop.f32.mrb[0].mxu0
      %1632 = vdwg.mxu0
      %1633 = vmatprep.subr.bf16.mxu0 %v1531
      %1634 = vmatpush1.bf16.msra.mxu0 %v1530
      %1635 = vmatprep.subr.bf16.mxu0 %v1535
      %1636 = vmatpush1.bf16.msra.mxu0 %v1534
      %1637 = vmatprep.subr.bf16.mxu0 %v1539
      %1638 = vmatpush1.bf16.msra.mxu0 %v1538
      %1639 = vmatprep.subr.bf16.mxu0 %v1543
      %1640 = vmatpush1.bf16.msra.mxu0 %v1542
      %1641 = vmatprep.subr.bf16.mxu0 %v1547
      %1642 = vmatpush1.bf16.msra.mxu0 %v1546
      %1643 = vmatprep.subr.bf16.mxu0 %v1551
      %1644 = vmatpush1.bf16.msra.mxu0 %v1550
      %1645 = vmatprep.subr.bf16.mxu0 %v1555
      %1646 = vmatpush1.bf16.msra.mxu0 %v1554
      %1647 = vmatprep.subr.bf16.mxu0 %v1559
      %1648 = vmatpush1.bf16.msra.mxu0 %v1558
      %1649 = vmatprep.subr.bf16.mxu0 0
      %1650 = vmatpush1.bf16.msra.mxu0 0
      %1651 = vmatprep.subr.bf16.mxu0 0
      %1652 = vmatpush1.bf16.msra.mxu0 0
      %1653 = vmatprep.subr.bf16.mxu0 0
      %1654 = vmatpush1.bf16.msra.mxu0 0
      %1655 = vmatprep.subr.bf16.mxu0 0
      %1656 = vmatpush1.bf16.msra.mxu0 0
      %1657 = vmatprep.subr.bf16.mxu0 0
      %1658 = vmatpush1.bf16.msra.mxu0 0
      %1659 = vmatprep.subr.bf16.mxu0 0
      %1660 = vmatpush1.bf16.msra.mxu0 0
      %1661 = vmatprep.subr.bf16.mxu0 0
      %1662 = vmatpush1.bf16.msra.mxu0 0
      %1663 = vmatprep.subr.bf16.mxu0 0
      %1664 = vmatpush1.bf16.msra.mxu0 0
      %1665 = vmatprep.mubr.bf16.mxu0 0
      %1666 = vmatmul.mubr.bf16.gmra.mrb[0].mxu0 %v1399
      %v1667 = vpop.f32.mrb[0].mxu0
      %v1668 = vadd.f32 0.0, %v1667
      %v1669 = vpop.f32.mrb[0].mxu0
      %v1670 = vadd.f32 0.0, %v1669
      %v1671 = vpop.f32.mrb[0].mxu0
      %v1672 = vpop.f32.mrb[0].mxu0
      %1673 = vdwg.mxu0
      %v1674 = vxor.u32 %v1627, 2147483648
      %v1675 = vxor.u32 %v1629, 2147483648
      %v1676 = vmul.f32 %v1674, 1.442695
      %v1677 = vpow.pop %v1676
      %v1678 = vmul.f32 %v1675, 1.442695
      %v1679 = vpow.pop %v1678
      %v1680 = vadd.f32 %v1677, 1.0
      %v1681 = vadd.f32 %v1679, 1.0
      %v1682 = vrcp.pop %v1680
      %v1683 = vmul.f32 1.0, %v1682
      %v1684 = vrcp.pop %v1681
      %v1685 = vmul.f32 1.0, %v1684
      %v1686 = vmul.f32 %v1627, %v1683
      %v1687 = vmul.f32 %v1629, %v1685
      %v1688 = vmul.f32 %v1686, %v1668
      %v1689 = vmul.f32 %v1687, %v1670
      %v1690 = vpack.c.bf16 %v1688, %v1688
      %v1691 = vpack.c.bf16 %v1689, %v1689
      %v1692 = vld [vmem:[%s9] sm:$0xf]
      %v1693 = vld [vmem:[%s9 + $0x4] sm:$0xf]
      %v1694 = vld [vmem:[%s9 + $0x8] sm:$0xf]
      %v1695 = vld [vmem:[%s9 + $0xc] sm:$0xf]
      %v1696 = vld [vmem:[%s9 + $0x10] sm:$0xf]
      %v1697 = vld [vmem:[%s9 + $0x14] sm:$0xf]
      %v1698 = vld [vmem:[%s9 + $0x18] sm:$0xf]
      %v1699 = vld [vmem:[%s9 + $0x1c] sm:$0xf]
      %v1700 = vld [vmem:[%s9 + $0x20] sm:$0xf]
      %v1701 = vld [vmem:[%s9 + $0x24] sm:$0xf]
      %v1702 = vld [vmem:[%s9 + $0x28] sm:$0xf]
      %v1703 = vld [vmem:[%s9 + $0x2c] sm:$0xf]
      %v1704 = vld [vmem:[%s9 + $0x30] sm:$0xf]
      %v1705 = vld [vmem:[%s9 + $0x34] sm:$0xf]
      %v1706 = vld [vmem:[%s9 + $0x38] sm:$0xf]
      %v1707 = vld [vmem:[%s9 + $0x3c] sm:$0xf]
      %v1708 = vld [vmem:[%s9 + $0x40] sm:$0xf]
      %v1709 = vld [vmem:[%s9 + $0x44] sm:$0xf]
      %v1710 = vld [vmem:[%s9 + $0x48] sm:$0xf]
      %v1711 = vld [vmem:[%s9 + $0x4c] sm:$0xf]
      %v1712 = vld [vmem:[%s9 + $0x50] sm:$0xf]
      %v1713 = vld [vmem:[%s9 + $0x54] sm:$0xf]
      %v1714 = vld [vmem:[%s9 + $0x58] sm:$0xf]
      %v1715 = vld [vmem:[%s9 + $0x5c] sm:$0xf]
      %v1716 = vld [vmem:[%s9 + $0x60] sm:$0xf]
      %v1717 = vld [vmem:[%s9 + $0x64] sm:$0xf]
      %v1718 = vld [vmem:[%s9 + $0x68] sm:$0xf]
      %v1719 = vld [vmem:[%s9 + $0x6c] sm:$0xf]
      %v1720 = vld [vmem:[%s9 + $0x70] sm:$0xf]
      %v1721 = vld [vmem:[%s9 + $0x74] sm:$0xf]
      %v1722 = vld [vmem:[%s9 + $0x78] sm:$0xf]
      %v1723 = vld [vmem:[%s9 + $0x7c] sm:$0xf]
      %v1756 = vunpack.c.l.b16 %v1692
      %v1757 = vunpack.c.l.b16 %v1693
      %v1758 = vunpack.c.l.b16 %v1694
      %v1759 = vunpack.c.l.b16 %v1695
      %v1760 = vunpack.c.l.b16 %v1696
      %v1761 = vunpack.c.l.b16 %v1697
      %v1762 = vunpack.c.l.b16 %v1698
      %v1763 = vunpack.c.l.b16 %v1699
      %v1764 = vunpack.c.l.b16 %v1700
      %v1765 = vunpack.c.l.b16 %v1701
      %v1766 = vunpack.c.l.b16 %v1702
      %v1767 = vunpack.c.l.b16 %v1703
      %v1768 = vunpack.c.l.b16 %v1704
      %v1769 = vunpack.c.l.b16 %v1705
      %v1770 = vunpack.c.l.b16 %v1706
      %v1771 = vunpack.c.l.b16 %v1707
      %v1772 = vunpack.c.l.b16 %v1708
      %v1773 = vunpack.c.l.b16 %v1709
      %v1774 = vunpack.c.l.b16 %v1710
      %v1775 = vunpack.c.l.b16 %v1711
      %v1776 = vunpack.c.l.b16 %v1712
      %v1777 = vunpack.c.l.b16 %v1713
      %v1778 = vunpack.c.l.b16 %v1714
      %v1779 = vunpack.c.l.b16 %v1715
      %v1780 = vunpack.c.l.b16 %v1716
      %v1781 = vunpack.c.l.b16 %v1717
      %v1782 = vunpack.c.l.b16 %v1718
      %v1783 = vunpack.c.l.b16 %v1719
      %v1784 = vunpack.c.l.b16 %v1720
      %v1785 = vunpack.c.l.b16 %v1721
      %v1786 = vunpack.c.l.b16 %v1722
      %v1787 = vunpack.c.l.b16 %v1723
      %v1788 = vpack.c.b16 %v1757, %v1756
      %v1789 = vpack.c.b16 %v1759, %v1758
      %v1790 = vpack.c.b16 %v1761, %v1760
      %v1791 = vpack.c.b16 %v1763, %v1762
      %v1792 = vpack.c.b16 %v1765, %v1764
      %v1793 = vpack.c.b16 %v1767, %v1766
      %v1794 = vpack.c.b16 %v1769, %v1768
      %v1795 = vpack.c.b16 %v1771, %v1770
      %v1796 = vpack.c.b16 %v1773, %v1772
      %v1797 = vpack.c.b16 %v1775, %v1774
      %v1798 = vpack.c.b16 %v1777, %v1776
      %v1799 = vpack.c.b16 %v1779, %v1778
      %v1800 = vpack.c.b16 %v1781, %v1780
      %v1801 = vpack.c.b16 %v1783, %v1782
      %v1802 = vpack.c.b16 %v1785, %v1784
      %v1803 = vpack.c.b16 %v1787, %v1786
      %1820 = vmatprep.subr.bf16.mxu0 0
      %1821 = vmatpush1.bf16.msra.mxu0 %v1788
      %1822 = vmatprep.subr.bf16.mxu0 0
      %1823 = vmatpush1.bf16.msra.mxu0 %v1789
      %1824 = vmatprep.subr.bf16.mxu0 0
      %1825 = vmatpush1.bf16.msra.mxu0 %v1790
      %1826 = vmatprep.subr.bf16.mxu0 0
      %1827 = vmatpush1.bf16.msra.mxu0 %v1791
      %1828 = vmatprep.subr.bf16.mxu0 0
      %1829 = vmatpush1.bf16.msra.mxu0 %v1792
      %1830 = vmatprep.subr.bf16.mxu0 0
      %1831 = vmatpush1.bf16.msra.mxu0 %v1793
      %1832 = vmatprep.subr.bf16.mxu0 0
      %1833 = vmatpush1.bf16.msra.mxu0 %v1794
      %1834 = vmatprep.subr.bf16.mxu0 0
      %1835 = vmatpush1.bf16.msra.mxu0 %v1795
      %1836 = vmatprep.subr.bf16.mxu0 0
      %1837 = vmatpush1.bf16.msra.mxu0 %v1796
      %1838 = vmatprep.subr.bf16.mxu0 0
      %1839 = vmatpush1.bf16.msra.mxu0 %v1797
      %1840 = vmatprep.subr.bf16.mxu0 0
      %1841 = vmatpush1.bf16.msra.mxu0 %v1798
      %1842 = vmatprep.subr.bf16.mxu0 0
      %1843 = vmatpush1.bf16.msra.mxu0 %v1799
      %1844 = vmatprep.subr.bf16.mxu0 0
      %1845 = vmatpush1.bf16.msra.mxu0 %v1800
      %1846 = vmatprep.subr.bf16.mxu0 0
      %1847 = vmatpush1.bf16.msra.mxu0 %v1801
      %1848 = vmatprep.subr.bf16.mxu0 0
      %1849 = vmatpush1.bf16.msra.mxu0 %v1802
      %1850 = vmatprep.subr.bf16.mxu0 0
      %1851 = vmatpush1.bf16.msra.mxu0 %v1803
      %1852 = vmatprep.mubr.bf16.mxu0 %v1691
      %1853 = vmatmul.mubr.bf16.gmra.mrb[0].mxu0 %v1690
      %v1854 = vpop.f32.mrb[0].mxu0
      %v1855 = vadd.f32 0.0, %v1854
      %v1856 = vpop.f32.mrb[0].mxu0
      %v1857 = vpop.f32.mrb[0].mxu0
      %v1858 = vpop.f32.mrb[0].mxu0
      %1859 = vdwg.mxu0
      %v1860 = vadd.f32 %v1384, %v1855
      %v1861 = vpack.c.bf16 %v1860, %v1860
      %1862 = vst [vmem:[%s388] sm:$0xf] %v1861
      %p1863 = scmp.lt.s32.totalorder %s21, 1
      %s1864 = scalar_select %p1863, %s21, 1
      %s1865 = smul.addr %s1864, 4
      %s1866 = scalar_lea.vmem %s10, %s1865
      // Predicated region
      $region61: #{llama_embedding_forward.4} parent=59 // pred_check
        %p1867 = pneg %p264
      $region62: #{llama_embedding_forward.4} parent=59 // pred_check_branch
        %1869 = sbr.rel (%p1867) target = $region64
      $region63: #{llama_embedding_forward.4} parent=59 // pred_region
        _
      $region64: #{llama_embedding_forward.4} parent=59 // pred_fallthru
        _
    $region60: #{llama_embedding_forward.4} parent=5 // pred_fallthru
      _
    %p1870 = scmp.le.s32.totalorder 2, %s16
    // Predicated region
    $region65: #{llama_embedding_forward.4} parent=5 // pred_check
      %p1871 = pneg %p1870
    $region66: #{llama_embedding_forward.4} parent=5 // pred_check_branch
      %1873 = sbr.rel (%p1871) target = $region68
    $region67: #{llama_embedding_forward.4} parent=5 // pred_region
      %s1874 = ssub.s32 %s16, 2
      // Predicated region
      $region69: #{llama_embedding_forward.4} parent=67 // pred_check
        %p1875 = pneg %p270
      $region70: #{llama_embedding_forward.4} parent=67 // pred_check_branch
        %1877 = sbr.rel (%p1875) target = $region72
      $region71: #{llama_embedding_forward.4} parent=67 // pred_region
        %p1878 = scmp.lt.s32.totalorder %s22, 1
        %s1879 = scalar_select %p1878, %s22, 1
        %s1880 = smul.addr %s1879, 4
        %s1881 = scalar_lea.vmem %s10, %s1880
      $region72: #{llama_embedding_forward.4} parent=67 // pred_fallthru
        _
    $region68: #{llama_embedding_forward.4} parent=5 // pred_fallthru
      _
  $region6: #{llama_embedding_forward.4} parent=0 // loop_footer
    %s20 = sadd.s32 1, %s16
  $region7: #{llama_embedding_forward.4} parent=0 // loop_footer_branch
    %15 = sbr.rel target = $region3
  $region8: #{llama_embedding_forward.4} parent=0 // loop_exit
    _

</llo_original>
